<compile_context>
chip_gen: v7x
topology: tpu7x:2x2x1
jax: 0.10.0
libtpu: 0.0.40
codegen_flags: <defaults>
</compile_context>

<pallas_src>
import functools

import numpy as np
import jax
import jax.numpy as jnp
from jax.experimental import pallas as pl
from jax.experimental.pallas import tpu as pltpu


# ----------------------------------------------------------------------------
# The fused per-tile kernel (NB samples per grid step)
# ----------------------------------------------------------------------------
def _lenet_kernel(x_ref, w1b_ref, b1_ref, w2b_ref, b2_ref, s2r_ref,
                  wfc1_ref, bfc1_ref, wfc2_ref, bfc2_ref, wfc3_ref, bfc3_ref,
                  o_ref, p1_ref, *, nb):
    rows = nb * 16                       # pooled-1 rows per tile: (sample, ph<16)
    nbp = ((nb + 7) // 8) * 8            # 8-aligned ph2-slab stride in p2

    def mm(a, b):
        return jnp.dot(a, b, preferred_element_type=jnp.float32)

    # ---- conv1 + bias + ReLU -----------------------------------------------
    # Row taps are pre-shifted & pre-split by output-row parity in the wrapper:
    # x_ref[i, 0] -> even conv rows, x_ref[i, 1] -> odd conv rows.
    # Banded weights put even output cols in lanes [0,128), odd in [128,256).
    hA = mm(x_ref[0, 0, :, :], w1b_ref[0, :, :])
    hB = mm(x_ref[0, 1, :, :], w1b_ref[0, :, :])
    for i in range(1, 5):
        hA += mm(x_ref[i, 0, :, :], w1b_ref[i, :, :])
        hB += mm(x_ref[i, 1, :, :], w1b_ref[i, :, :])
    hA = jnp.maximum(hA + b1_ref[...], 0.0)
    hB = jnp.maximum(hB + b1_ref[...], 0.0)

    # ---- 2x2 max-pool #1: rows = max of parity halves, cols = lane halves --
    pr1 = jnp.maximum(hA, hB)                                   # (rows, 256)
    p1_ref[pl.ds(0, rows), :] = jnp.maximum(pr1[:, :128], pr1[:, 128:])
    p1_ref[pl.ds(rows, 8), :] = jnp.zeros((8, 128), jnp.float32)  # halo rows

    # ---- conv2 + bias + ReLU: 5 row-tap matmuls over the staged pooled map -
    h2 = mm(p1_ref[pl.ds(0, rows), :], w2b_ref[0, :, :])
    for i in range(1, 5):
        h2 += mm(p1_ref[pl.ds(i, rows), :], w2b_ref[i, :, :])
    h2 = jnp.maximum(h2 + b2_ref[...], 0.0)                     # (rows, 256)

    # ---- 2x2 max-pool #2: cols via lane halves; rows via tiny per-tile
    #      0/1 selectors that also reorder rows into ph2-major slabs for fc1 -
    prc = jnp.maximum(h2[:, :128], h2[:, 128:])                 # (rows, 128)
    p2 = jnp.maximum(mm(s2r_ref[0, :, :], prc),
                     mm(s2r_ref[1, :, :], prc))                 # (5*nbp, 128)

    # ---- fc1 (torch flatten folded into the wfc1 slabs) + fc2 + fc3 --------
    y = mm(p2[0:nb, :], wfc1_ref[0, :, :])
    for ph2 in range(1, 5):
        y += mm(p2[ph2 * nbp:ph2 * nbp + nb, :], wfc1_ref[ph2, :, :])
    y = jnp.maximum(y + bfc1_ref[...], 0.0)                     # (nb, 128)
    y = jnp.maximum(mm(y, wfc2_ref[...]) + bfc2_ref[...], 0.0)  # (nb, 128)
    o_ref[0, :, :] = mm(y, wfc3_ref[...]) + bfc3_ref[...]       # (nb, 128)


# ----------------------------------------------------------------------------
# Wrapper
# ----------------------------------------------------------------------------
def _const_spec(a):
    nd = a.ndim
    return pl.BlockSpec(a.shape, lambda b, _nd=nd: (0,) * _nd)


def lenet_forward(x_nchw, consts):
    nb = consts["s2r"].shape[-1] // 16      # tile size baked into the selectors
    batch = x_nchw.shape[0]
    num_chunks = -(-batch // nb)
    bpad = num_chunks * nb

    # NCHW -> rows = (sample, image-row), lanes = (col*3 + chan).
    x = jnp.transpose(x_nchw, (0, 2, 3, 1)).astype(jnp.float32)
    if bpad != batch:
        x = jnp.pad(x, ((0, bpad - batch), (0, 0), (0, 0), (0, 0)))
    x_rows = jnp.pad(x.reshape(bpad * 32, 96), ((0, 8), (0, 0)))

    # Pre-shifted conv1 row taps, split by output-row parity:
    #   x_taps[i, p, s*16 + q, :] = image row (2*q + p + i) of sample s.
    s = np.arange(bpad, dtype=np.int32)
    q = np.arange(16, dtype=np.int32)
    base = (s[:, None] * 32 + 2 * q[None, :]).reshape(-1)             # (bpad*16,)
    idx = (base[None, None, :]
           + np.arange(2, dtype=np.int32)[None, :, None]
           + np.arange(5, dtype=np.int32)[:, None, None])             # (5,2,bpad*16)
    x_taps = x_rows[jnp.asarray(idx)]                                 # (5,2,bpad*16,96)

    weights = (consts["w1b"], consts["b1"], consts["w2b"], consts["b2"],
               consts["s2r"], consts["wfc1"], consts["bfc1"], consts["wfc2"],
               consts["bfc2"], consts["wfc3"], consts["bfc3"])

    out = pl.pallas_call(
        functools.partial(_lenet_kernel, nb=nb),
        grid=(num_chunks,),
        out_shape=jax.ShapeDtypeStruct((num_chunks, nb, 128), jnp.float32),
        in_specs=[pl.BlockSpec((5, 2, nb * 16, 96), lambda b: (0, 0, b, 0))]
                 + [_const_spec(a) for a in weights],
        out_specs=pl.BlockSpec((1, nb, 128), lambda b: (b, 0, 0)),
        scratch_shapes=[pltpu.VMEM((nb * 16 + 8, 128), jnp.float32)],
        compiler_params=pltpu.CompilerParams(
            dimension_semantics=("parallel",),
            vmem_limit_bytes=32 * 1024 * 1024),
    )(x_taps, *weights)

    return out.reshape(bpad, 128)[:batch, :10]


# ----------------------------------------------------------------------------
# One-time parameter preprocessing (banded conv weights with even/odd column
# lane-splits, per-tile pool2 row selectors, flatten-folded / padded FC weights).
# Depends only on the tile size nb, never on the batch.
# ----------------------------------------------------------------------------
def prepare_constants(params, nb=8):
    f32 = np.float32
    w1 = np.asarray(params["conv1_w"], f32)   # (6, 3, 5, 5)
    b1 = np.asarray(params["conv1_b"], f32)
    w2 = np.asarray(params["conv2_w"], f32)   # (16, 6, 5, 5)
    b2 = np.asarray(params["conv2_b"], f32)
    fc1_w = np.asarray(params["fc1_w"], f32)  # (120, 400)
    fc1_b = np.asarray(params["fc1_b"], f32)
    fc2_w = np.asarray(params["fc2_w"], f32)  # (84, 120)
    fc2_b = np.asarray(params["fc2_b"], f32)
    fc3_w = np.asarray(params["fc3_w"], f32)  # (10, 84)
    fc3_b = np.asarray(params["fc3_b"], f32)

    # conv1 banded weights: 96 input lanes (col*3 + ci) -> 256 output lanes
    # (even output cols in [0,84), odd in [128,212), rest zero).
    w1b = np.zeros((5, 96, 256), f32)
    b1t = np.zeros((1, 256), f32)
    for ow in range(28):
        col0 = (ow // 2) * 6 + (0 if ow % 2 == 0 else 128)
        b1t[0, col0:col0 + 6] = b1
        for i in range(5):
            for j in range(5):
                w1b[i, (ow + j) * 3:(ow + j + 1) * 3, col0:col0 + 6] = \
                    w1[:, :, i, j].T
    # conv2 banded weights: 128 input lanes (pw*6 + c, 84 valid) -> 256 output
    # lanes (even output cols in [0,80), odd in [128,208), rest zero).
    w2b = np.zeros((5, 128, 256), f32)
    b2t = np.zeros((1, 256), f32)
    for ow2 in range(10):
        col0 = (ow2 // 2) * 16 + (0 if ow2 % 2 == 0 else 128)
        b2t[0, col0:col0 + 16] = b2
        for i in range(5):
            for j in range(5):
                pw_in = ow2 + j
                w2b[i, pw_in * 6:(pw_in + 1) * 6, col0:col0 + 16] = \
                    w2[:, :, i, j].T

    # pool2 row selectors (per-tile, O(nb)): pick h2 rows (n, 2*ph2) and
    # (n, 2*ph2+1), reordered into 8-aligned ph2-major slabs for fc1.
    nbp = ((nb + 7) // 8) * 8
    s2r = np.zeros((2, 5 * nbp, nb * 16), f32)
    for ph2 in range(5):
        for n in range(nb):
            s2r[0, ph2 * nbp + n, n * 16 + 2 * ph2] = 1.0
            s2r[1, ph2 * nbp + n, n * 16 + 2 * ph2 + 1] = 1.0

    # fc1: fold torch's view(-1, 400) flatten (feature = c*25 + ph2*5 + pw2)
    # into 5 lane-padded (128-row) slabs; fc2/fc3 pre-transposed & zero-padded.
    wfc1 = np.zeros((5, 128, 128), f32)
    for ph2 in range(5):
        for pw2 in range(5):
            for c in range(16):
                wfc1[ph2, pw2 * 16 + c, :120] = fc1_w[:, c * 25 + ph2 * 5 + pw2]
    bfc1 = np.zeros((1, 128), f32); bfc1[0, :120] = fc1_b
    wfc2 = np.zeros((128, 128), f32); wfc2[:120, :84] = fc2_w.T
    bfc2 = np.zeros((1, 128), f32); bfc2[0, :84] = fc2_b
    wfc3 = np.zeros((128, 128), f32); wfc3[:84, :10] = fc3_w.T
    bfc3 = np.zeros((1, 128), f32); bfc3[0, :10] = fc3_b

    consts = {"w1b": w1b, "b1": b1t, "w2b": w2b, "b2": b2t, "s2r": s2r,
              "wfc1": wfc1, "bfc1": bfc1, "wfc2": wfc2, "bfc2": bfc2,
              "wfc3": wfc3, "bfc3": bfc3}
    return {k: jnp.asarray(v) for k, v in consts.items()}


# ----------------------------------------------------------------------------
# Deterministic parameter init (PyTorch default U(-1/sqrt(fan_in), +1/sqrt(fan_in)))
# ----------------------------------------------------------------------------
def init_params(key):
    def uniform(k, shape, fan_in):
        bound = 1.0 / jnp.sqrt(jnp.float32(fan_in))
        return jax.random.uniform(k, shape, jnp.float32, -bound, bound)

    keys = jax.random.split(key, 10)
    return {
        "conv1_w": uniform(keys[0], (6, 3, 5, 5), 3 * 5 * 5),
        "conv1_b": uniform(keys[1], (6,), 3 * 5 * 5),
        "conv2_w": uniform(keys[2], (16, 6, 5, 5), 6 * 5 * 5),
        "conv2_b": uniform(keys[3], (16,), 6 * 5 * 5),
        "fc1_w": uniform(keys[4], (120, 400), 400),
        "fc1_b": uniform(keys[5], (120,), 400),
        "fc2_w": uniform(keys[6], (84, 120), 120),
        "fc2_b": uniform(keys[7], (84,), 120),
        "fc3_w": uniform(keys[8], (10, 84), 84),
        "fc3_b": uniform(keys[9], (10,), 84),
    }


# ----------------------------------------------------------------------------
# Pure-JAX reference (same semantics as the PyTorch module), for self-check
# ----------------------------------------------------------------------------
def reference_forward(params, x_nchw):
    hp = jax.lax.Precision.HIGHEST
    dn = ("NCHW", "OIHW", "NCHW")
    x = x_nchw.astype(jnp.float32)
    x = jax.lax.conv_general_dilated(x, params["conv1_w"], (1, 1), "VALID",
                                     dimension_numbers=dn, precision=hp)
    x = jax.nn.relu(x + params["conv1_b"][None, :, None, None])
    x = jax.lax.reduce_window(x, -jnp.inf, jax.lax.max,
                              (1, 1, 2, 2), (1, 1, 2, 2), "VALID")
    x = jax.lax.conv_general_dilated(x, params["conv2_w"], (1, 1), "VALID",
                                     dimension_numbers=dn, precision=hp)
    x = jax.nn.relu(x + params["conv2_b"][None, :, None, None])
    x = jax.lax.reduce_window(x, -jnp.inf, jax.lax.max,
                              (1, 1, 2, 2), (1, 1, 2, 2), "VALID")
    x = x.reshape(x.shape[0], 16 * 5 * 5)
    x = jax.nn.relu(jnp.dot(x, params["fc1_w"].T, precision=hp) + params["fc1_b"])
    x = jax.nn.relu(jnp.dot(x, params["fc2_w"].T, precision=hp) + params["fc2_b"])
    return jnp.dot(x, params["fc3_w"].T, precision=hp) + params["fc3_b"]


if __name__ == "__main__":
    root = jax.random.PRNGKey(0)
    kp, kx = jax.random.split(root)
    params = init_params(kp)
    consts = prepare_constants(params, nb=4)                  # 4 samples per grid step
    x = jax.random.normal(kx, (6, 3, 32, 32), jnp.float32)    # batch 6 -> 2 grid steps

    out = jax.block_until_ready(jax.jit(lenet_forward)(x, consts))
    assert out.shape == (6, 10) and out.dtype == jnp.float32

    ref = jax.block_until_ready(jax.jit(reference_forward)(params, x))
    # generous tolerance: covers MXU pass-count / accumulation-order differences
    if not bool(jnp.allclose(out, ref, atol=3e-2, rtol=3e-2)):
        raise AssertionError(
            f"kernel/reference mismatch, max abs err = "
            f"{float(jnp.max(jnp.abs(out - ref)))}")
    print("KERNEL_OK")
</pallas_src>

<mosaic_0001>
module attributes {stable_mosaic.version = 11 : i64} {
  func.func @_lenet_kernel(%arg0: i32, %arg1: memref<5x2x64x96xf32, #tpu.memory_space<vmem>>, %arg2: memref<5x96x256xf32, #tpu.memory_space<vmem>>, %arg3: memref<1x256xf32, #tpu.memory_space<vmem>>, %arg4: memref<5x128x256xf32, #tpu.memory_space<vmem>>, %arg5: memref<1x256xf32, #tpu.memory_space<vmem>>, %arg6: memref<2x40x64xf32, #tpu.memory_space<vmem>>, %arg7: memref<5x128x128xf32, #tpu.memory_space<vmem>>, %arg8: memref<1x128xf32, #tpu.memory_space<vmem>>, %arg9: memref<128x128xf32, #tpu.memory_space<vmem>>, %arg10: memref<1x128xf32, #tpu.memory_space<vmem>>, %arg11: memref<128x128xf32, #tpu.memory_space<vmem>>, %arg12: memref<1x128xf32, #tpu.memory_space<vmem>>, %arg13: memref<1x4x128xf32, #tpu.memory_space<vmem>>, %arg14: memref<72x128xf32, #tpu.memory_space<vmem>>) attributes {dimension_semantics = [#tpu.dimension_semantics<parallel>], iteration_bounds = array<i64: 2>, scalar_prefetch = 0 : i64, scratch_operands = 1 : i64, tpu.core_type = #tpu.core_type<tc>, window_params = [{transform_indices = @transform_0, window_bounds = array<i64: 5, 2, 64, 96>}, {pipeline_mode = #tpu.pipeline_mode<synchronous>, transform_indices = @transform_1, window_bounds = array<i64: 5, 96, 256>}, {pipeline_mode = #tpu.pipeline_mode<synchronous>, transform_indices = @transform_2, window_bounds = array<i64: 1, 256>}, {pipeline_mode = #tpu.pipeline_mode<synchronous>, transform_indices = @transform_3, window_bounds = array<i64: 5, 128, 256>}, {pipeline_mode = #tpu.pipeline_mode<synchronous>, transform_indices = @transform_4, window_bounds = array<i64: 1, 256>}, {pipeline_mode = #tpu.pipeline_mode<synchronous>, transform_indices = @transform_5, window_bounds = array<i64: 2, 40, 64>}, {pipeline_mode = #tpu.pipeline_mode<synchronous>, transform_indices = @transform_6, window_bounds = array<i64: 5, 128, 128>}, {pipeline_mode = #tpu.pipeline_mode<synchronous>, transform_indices = @transform_7, window_bounds = array<i64: 1, 128>}, {pipeline_mode = #tpu.pipeline_mode<synchronous>, transform_indices = @transform_8, window_bounds = array<i64: 128, 128>}, {pipeline_mode = #tpu.pipeline_mode<synchronous>, transform_indices = @transform_9, window_bounds = array<i64: 1, 128>}, {pipeline_mode = #tpu.pipeline_mode<synchronous>, transform_indices = @transform_10, window_bounds = array<i64: 128, 128>}, {pipeline_mode = #tpu.pipeline_mode<synchronous>, transform_indices = @transform_11, window_bounds = array<i64: 1, 128>}, {transform_indices = @transform_12, window_bounds = array<i64: 1, 4, 128>}]} {
    %c0 = arith.constant 0 : index
    %c0_0 = arith.constant 0 : index
    %c0_1 = arith.constant 0 : index
    %c0_2 = arith.constant 0 : index
    %0 = vector.load %arg1[%c0, %c0_0, %c0_1, %c0_2] : memref<5x2x64x96xf32, #tpu.memory_space<vmem>>, vector<1x1x64x96xf32>
    %1 = vector.shape_cast %0 : vector<1x1x64x96xf32> to vector<64x96xf32>
    %c0_3 = arith.constant 0 : index
    %c0_4 = arith.constant 0 : index
    %c0_5 = arith.constant 0 : index
    %2 = vector.load %arg2[%c0_3, %c0_4, %c0_5] : memref<5x96x256xf32, #tpu.memory_space<vmem>>, vector<1x96x256xf32>
    %3 = vector.shape_cast %2 : vector<1x96x256xf32> to vector<96x256xf32>
    %cst = arith.constant dense<0.000000e+00> : vector<64x256xf32>
    %4 = tpu.matmul %1, %3, %cst {dimension_numbers = #tpu.dot_dimension_numbers<[1], [0], [0], [1], [0, 0, 1, 1], [], []>} : vector<64x96xf32>, vector<96x256xf32>, vector<64x256xf32> -> vector<64x256xf32>
    %c0_6 = arith.constant 0 : index
    %c1 = arith.constant 1 : index
    %c0_7 = arith.constant 0 : index
    %c0_8 = arith.constant 0 : index
    %5 = vector.load %arg1[%c0_6, %c1, %c0_7, %c0_8] : memref<5x2x64x96xf32, #tpu.memory_space<vmem>>, vector<1x1x64x96xf32>
    %6 = vector.shape_cast %5 : vector<1x1x64x96xf32> to vector<64x96xf32>
    %c0_9 = arith.constant 0 : index
    %c0_10 = arith.constant 0 : index
    %c0_11 = arith.constant 0 : index
    %7 = vector.load %arg2[%c0_9, %c0_10, %c0_11] : memref<5x96x256xf32, #tpu.memory_space<vmem>>, vector<1x96x256xf32>
    %8 = vector.shape_cast %7 : vector<1x96x256xf32> to vector<96x256xf32>
    %cst_12 = arith.constant dense<0.000000e+00> : vector<64x256xf32>
    %9 = tpu.matmul %6, %8, %cst_12 {dimension_numbers = #tpu.dot_dimension_numbers<[1], [0], [0], [1], [0, 0, 1, 1], [], []>} : vector<64x96xf32>, vector<96x256xf32>, vector<64x256xf32> -> vector<64x256xf32>
    %c1_13 = arith.constant 1 : index
    %c0_14 = arith.constant 0 : index
    %c0_15 = arith.constant 0 : index
    %c0_16 = arith.constant 0 : index
    %10 = vector.load %arg1[%c1_13, %c0_14, %c0_15, %c0_16] : memref<5x2x64x96xf32, #tpu.memory_space<vmem>>, vector<1x1x64x96xf32>
    %11 = vector.shape_cast %10 : vector<1x1x64x96xf32> to vector<64x96xf32>
    %c1_17 = arith.constant 1 : index
    %c0_18 = arith.constant 0 : index
    %c0_19 = arith.constant 0 : index
    %12 = vector.load %arg2[%c1_17, %c0_18, %c0_19] : memref<5x96x256xf32, #tpu.memory_space<vmem>>, vector<1x96x256xf32>
    %13 = vector.shape_cast %12 : vector<1x96x256xf32> to vector<96x256xf32>
    %cst_20 = arith.constant dense<0.000000e+00> : vector<64x256xf32>
    %14 = tpu.matmul %11, %13, %cst_20 {dimension_numbers = #tpu.dot_dimension_numbers<[1], [0], [0], [1], [0, 0, 1, 1], [], []>} : vector<64x96xf32>, vector<96x256xf32>, vector<64x256xf32> -> vector<64x256xf32>
    %15 = arith.addf %4, %14 : vector<64x256xf32>
    %c1_21 = arith.constant 1 : index
    %c1_22 = arith.constant 1 : index
    %c0_23 = arith.constant 0 : index
    %c0_24 = arith.constant 0 : index
    %16 = vector.load %arg1[%c1_21, %c1_22, %c0_23, %c0_24] : memref<5x2x64x96xf32, #tpu.memory_space<vmem>>, vector<1x1x64x96xf32>
    %17 = vector.shape_cast %16 : vector<1x1x64x96xf32> to vector<64x96xf32>
    %c1_25 = arith.constant 1 : index
    %c0_26 = arith.constant 0 : index
    %c0_27 = arith.constant 0 : index
    %18 = vector.load %arg2[%c1_25, %c0_26, %c0_27] : memref<5x96x256xf32, #tpu.memory_space<vmem>>, vector<1x96x256xf32>
    %19 = vector.shape_cast %18 : vector<1x96x256xf32> to vector<96x256xf32>
    %cst_28 = arith.constant dense<0.000000e+00> : vector<64x256xf32>
    %20 = tpu.matmul %17, %19, %cst_28 {dimension_numbers = #tpu.dot_dimension_numbers<[1], [0], [0], [1], [0, 0, 1, 1], [], []>} : vector<64x96xf32>, vector<96x256xf32>, vector<64x256xf32> -> vector<64x256xf32>
    %21 = arith.addf %9, %20 : vector<64x256xf32>
    %c2 = arith.constant 2 : index
    %c0_29 = arith.constant 0 : index
    %c0_30 = arith.constant 0 : index
    %c0_31 = arith.constant 0 : index
    %22 = vector.load %arg1[%c2, %c0_29, %c0_30, %c0_31] : memref<5x2x64x96xf32, #tpu.memory_space<vmem>>, vector<1x1x64x96xf32>
    %23 = vector.shape_cast %22 : vector<1x1x64x96xf32> to vector<64x96xf32>
    %c2_32 = arith.constant 2 : index
    %c0_33 = arith.constant 0 : index
    %c0_34 = arith.constant 0 : index
    %24 = vector.load %arg2[%c2_32, %c0_33, %c0_34] : memref<5x96x256xf32, #tpu.memory_space<vmem>>, vector<1x96x256xf32>
    %25 = vector.shape_cast %24 : vector<1x96x256xf32> to vector<96x256xf32>
    %cst_35 = arith.constant dense<0.000000e+00> : vector<64x256xf32>
    %26 = tpu.matmul %23, %25, %cst_35 {dimension_numbers = #tpu.dot_dimension_numbers<[1], [0], [0], [1], [0, 0, 1, 1], [], []>} : vector<64x96xf32>, vector<96x256xf32>, vector<64x256xf32> -> vector<64x256xf32>
    %27 = arith.addf %15, %26 : vector<64x256xf32>
    %c2_36 = arith.constant 2 : index
    %c1_37 = arith.constant 1 : index
    %c0_38 = arith.constant 0 : index
    %c0_39 = arith.constant 0 : index
    %28 = vector.load %arg1[%c2_36, %c1_37, %c0_38, %c0_39] : memref<5x2x64x96xf32, #tpu.memory_space<vmem>>, vector<1x1x64x96xf32>
    %29 = vector.shape_cast %28 : vector<1x1x64x96xf32> to vector<64x96xf32>
    %c2_40 = arith.constant 2 : index
    %c0_41 = arith.constant 0 : index
    %c0_42 = arith.constant 0 : index
    %30 = vector.load %arg2[%c2_40, %c0_41, %c0_42] : memref<5x96x256xf32, #tpu.memory_space<vmem>>, vector<1x96x256xf32>
    %31 = vector.shape_cast %30 : vector<1x96x256xf32> to vector<96x256xf32>
    %cst_43 = arith.constant dense<0.000000e+00> : vector<64x256xf32>
    %32 = tpu.matmul %29, %31, %cst_43 {dimension_numbers = #tpu.dot_dimension_numbers<[1], [0], [0], [1], [0, 0, 1, 1], [], []>} : vector<64x96xf32>, vector<96x256xf32>, vector<64x256xf32> -> vector<64x256xf32>
    %33 = arith.addf %21, %32 : vector<64x256xf32>
    %c3 = arith.constant 3 : index
    %c0_44 = arith.constant 0 : index
    %c0_45 = arith.constant 0 : index
    %c0_46 = arith.constant 0 : index
    %34 = vector.load %arg1[%c3, %c0_44, %c0_45, %c0_46] : memref<5x2x64x96xf32, #tpu.memory_space<vmem>>, vector<1x1x64x96xf32>
    %35 = vector.shape_cast %34 : vector<1x1x64x96xf32> to vector<64x96xf32>
    %c3_47 = arith.constant 3 : index
    %c0_48 = arith.constant 0 : index
    %c0_49 = arith.constant 0 : index
    %36 = vector.load %arg2[%c3_47, %c0_48, %c0_49] : memref<5x96x256xf32, #tpu.memory_space<vmem>>, vector<1x96x256xf32>
    %37 = vector.shape_cast %36 : vector<1x96x256xf32> to vector<96x256xf32>
    %cst_50 = arith.constant dense<0.000000e+00> : vector<64x256xf32>
    %38 = tpu.matmul %35, %37, %cst_50 {dimension_numbers = #tpu.dot_dimension_numbers<[1], [0], [0], [1], [0, 0, 1, 1], [], []>} : vector<64x96xf32>, vector<96x256xf32>, vector<64x256xf32> -> vector<64x256xf32>
    %39 = arith.addf %27, %38 : vector<64x256xf32>
    %c3_51 = arith.constant 3 : index
    %c1_52 = arith.constant 1 : index
    %c0_53 = arith.constant 0 : index
    %c0_54 = arith.constant 0 : index
    %40 = vector.load %arg1[%c3_51, %c1_52, %c0_53, %c0_54] : memref<5x2x64x96xf32, #tpu.memory_space<vmem>>, vector<1x1x64x96xf32>
    %41 = vector.shape_cast %40 : vector<1x1x64x96xf32> to vector<64x96xf32>
    %c3_55 = arith.constant 3 : index
    %c0_56 = arith.constant 0 : index
    %c0_57 = arith.constant 0 : index
    %42 = vector.load %arg2[%c3_55, %c0_56, %c0_57] : memref<5x96x256xf32, #tpu.memory_space<vmem>>, vector<1x96x256xf32>
    %43 = vector.shape_cast %42 : vector<1x96x256xf32> to vector<96x256xf32>
    %cst_58 = arith.constant dense<0.000000e+00> : vector<64x256xf32>
    %44 = tpu.matmul %41, %43, %cst_58 {dimension_numbers = #tpu.dot_dimension_numbers<[1], [0], [0], [1], [0, 0, 1, 1], [], []>} : vector<64x96xf32>, vector<96x256xf32>, vector<64x256xf32> -> vector<64x256xf32>
    %45 = arith.addf %33, %44 : vector<64x256xf32>
    %c4 = arith.constant 4 : index
    %c0_59 = arith.constant 0 : index
    %c0_60 = arith.constant 0 : index
    %c0_61 = arith.constant 0 : index
    %46 = vector.load %arg1[%c4, %c0_59, %c0_60, %c0_61] : memref<5x2x64x96xf32, #tpu.memory_space<vmem>>, vector<1x1x64x96xf32>
    %47 = vector.shape_cast %46 : vector<1x1x64x96xf32> to vector<64x96xf32>
    %c4_62 = arith.constant 4 : index
    %c0_63 = arith.constant 0 : index
    %c0_64 = arith.constant 0 : index
    %48 = vector.load %arg2[%c4_62, %c0_63, %c0_64] : memref<5x96x256xf32, #tpu.memory_space<vmem>>, vector<1x96x256xf32>
    %49 = vector.shape_cast %48 : vector<1x96x256xf32> to vector<96x256xf32>
    %cst_65 = arith.constant dense<0.000000e+00> : vector<64x256xf32>
    %50 = tpu.matmul %47, %49, %cst_65 {dimension_numbers = #tpu.dot_dimension_numbers<[1], [0], [0], [1], [0, 0, 1, 1], [], []>} : vector<64x96xf32>, vector<96x256xf32>, vector<64x256xf32> -> vector<64x256xf32>
    %51 = arith.addf %39, %50 : vector<64x256xf32>
    %c4_66 = arith.constant 4 : index
    %c1_67 = arith.constant 1 : index
    %c0_68 = arith.constant 0 : index
    %c0_69 = arith.constant 0 : index
    %52 = vector.load %arg1[%c4_66, %c1_67, %c0_68, %c0_69] : memref<5x2x64x96xf32, #tpu.memory_space<vmem>>, vector<1x1x64x96xf32>
    %53 = vector.shape_cast %52 : vector<1x1x64x96xf32> to vector<64x96xf32>
    %c4_70 = arith.constant 4 : index
    %c0_71 = arith.constant 0 : index
    %c0_72 = arith.constant 0 : index
    %54 = vector.load %arg2[%c4_70, %c0_71, %c0_72] : memref<5x96x256xf32, #tpu.memory_space<vmem>>, vector<1x96x256xf32>
    %55 = vector.shape_cast %54 : vector<1x96x256xf32> to vector<96x256xf32>
    %cst_73 = arith.constant dense<0.000000e+00> : vector<64x256xf32>
    %56 = tpu.matmul %53, %55, %cst_73 {dimension_numbers = #tpu.dot_dimension_numbers<[1], [0], [0], [1], [0, 0, 1, 1], [], []>} : vector<64x96xf32>, vector<96x256xf32>, vector<64x256xf32> -> vector<64x256xf32>
    %57 = arith.addf %45, %56 : vector<64x256xf32>
    %c0_74 = arith.constant 0 : index
    %c0_75 = arith.constant 0 : index
    %58 = vector.load %arg3[%c0_74, %c0_75] : memref<1x256xf32, #tpu.memory_space<vmem>>, vector<1x256xf32>
    %59 = vector.broadcast %58 : vector<1x256xf32> to vector<64x256xf32>
    %60 = arith.addf %51, %59 : vector<64x256xf32>
    %cst_76 = arith.constant 0.000000e+00 : f32
    %61 = vector.broadcast %cst_76 : f32 to vector<64x256xf32>
    %62 = arith.maximumf %60, %61 : vector<64x256xf32>
    %c0_77 = arith.constant 0 : index
    %c0_78 = arith.constant 0 : index
    %63 = vector.load %arg3[%c0_77, %c0_78] : memref<1x256xf32, #tpu.memory_space<vmem>>, vector<1x256xf32>
    %64 = vector.broadcast %63 : vector<1x256xf32> to vector<64x256xf32>
    %65 = arith.addf %57, %64 : vector<64x256xf32>
    %cst_79 = arith.constant 0.000000e+00 : f32
    %66 = vector.broadcast %cst_79 : f32 to vector<64x256xf32>
    %67 = arith.maximumf %65, %66 : vector<64x256xf32>
    %68 = arith.maximumf %62, %67 : vector<64x256xf32>
    %69 = vector.extract_strided_slice %68 {offsets = [0, 0], sizes = [64, 128], strides = [1, 1]} : vector<64x256xf32> to vector<64x128xf32>
    %70 = vector.extract_strided_slice %68 {offsets = [0, 128], sizes = [64, 128], strides = [1, 1]} : vector<64x256xf32> to vector<64x128xf32>
    %71 = arith.maximumf %69, %70 : vector<64x128xf32>
    %c0_80 = arith.constant 0 : index
    %c0_81 = arith.constant 0 : index
    %72 = vector.load %arg14[%c0_80, %c0_81] : memref<72x128xf32, #tpu.memory_space<vmem>>, vector<64x128xf32>
    tpu.vector_store %arg14[%c0_80, %c0_81], %71 {strides = array<i32>} : memref<72x128xf32, #tpu.memory_space<vmem>>, vector<64x128xf32>,
    %cst_82 = arith.constant 0.000000e+00 : f32
    %73 = vector.broadcast %cst_82 : f32 to vector<8x128xf32>
    %c64 = arith.constant 64 : index
    %c0_83 = arith.constant 0 : index
    %74 = vector.load %arg14[%c64, %c0_83] : memref<72x128xf32, #tpu.memory_space<vmem>>, vector<8x128xf32>
    tpu.vector_store %arg14[%c64, %c0_83], %73 {strides = array<i32>} : memref<72x128xf32, #tpu.memory_space<vmem>>, vector<8x128xf32>,
    %c0_84 = arith.constant 0 : index
    %c0_85 = arith.constant 0 : index
    %75 = vector.load %arg14[%c0_84, %c0_85] : memref<72x128xf32, #tpu.memory_space<vmem>>, vector<64x128xf32>
    %c0_86 = arith.constant 0 : index
    %c0_87 = arith.constant 0 : index
    %c0_88 = arith.constant 0 : index
    %76 = vector.load %arg4[%c0_86, %c0_87, %c0_88] : memref<5x128x256xf32, #tpu.memory_space<vmem>>, vector<1x128x256xf32>
    %77 = vector.shape_cast %76 : vector<1x128x256xf32> to vector<128x256xf32>
    %cst_89 = arith.constant dense<0.000000e+00> : vector<64x256xf32>
    %78 = tpu.matmul %75, %77, %cst_89 {dimension_numbers = #tpu.dot_dimension_numbers<[1], [0], [0], [1], [0, 0, 1, 1], [], []>} : vector<64x128xf32>, vector<128x256xf32>, vector<64x256xf32> -> vector<64x256xf32>
    %c1_90 = arith.constant 1 : index
    %c0_91 = arith.constant 0 : index
    %79 = vector.load %arg14[%c1_90, %c0_91] : memref<72x128xf32, #tpu.memory_space<vmem>>, vector<64x128xf32>
    %c1_92 = arith.constant 1 : index
    %c0_93 = arith.constant 0 : index
    %c0_94 = arith.constant 0 : index
    %80 = vector.load %arg4[%c1_92, %c0_93, %c0_94] : memref<5x128x256xf32, #tpu.memory_space<vmem>>, vector<1x128x256xf32>
    %81 = vector.shape_cast %80 : vector<1x128x256xf32> to vector<128x256xf32>
    %cst_95 = arith.constant dense<0.000000e+00> : vector<64x256xf32>
    %82 = tpu.matmul %79, %81, %cst_95 {dimension_numbers = #tpu.dot_dimension_numbers<[1], [0], [0], [1], [0, 0, 1, 1], [], []>} : vector<64x128xf32>, vector<128x256xf32>, vector<64x256xf32> -> vector<64x256xf32>
    %83 = arith.addf %78, %82 : vector<64x256xf32>
    %c2_96 = arith.constant 2 : index
    %c0_97 = arith.constant 0 : index
    %84 = vector.load %arg14[%c2_96, %c0_97] : memref<72x128xf32, #tpu.memory_space<vmem>>, vector<64x128xf32>
    %c2_98 = arith.constant 2 : index
    %c0_99 = arith.constant 0 : index
    %c0_100 = arith.constant 0 : index
    %85 = vector.load %arg4[%c2_98, %c0_99, %c0_100] : memref<5x128x256xf32, #tpu.memory_space<vmem>>, vector<1x128x256xf32>
    %86 = vector.shape_cast %85 : vector<1x128x256xf32> to vector<128x256xf32>
    %cst_101 = arith.constant dense<0.000000e+00> : vector<64x256xf32>
    %87 = tpu.matmul %84, %86, %cst_101 {dimension_numbers = #tpu.dot_dimension_numbers<[1], [0], [0], [1], [0, 0, 1, 1], [], []>} : vector<64x128xf32>, vector<128x256xf32>, vector<64x256xf32> -> vector<64x256xf32>
    %88 = arith.addf %83, %87 : vector<64x256xf32>
    %c3_102 = arith.constant 3 : index
    %c0_103 = arith.constant 0 : index
    %89 = vector.load %arg14[%c3_102, %c0_103] : memref<72x128xf32, #tpu.memory_space<vmem>>, vector<64x128xf32>
    %c3_104 = arith.constant 3 : index
    %c0_105 = arith.constant 0 : index
    %c0_106 = arith.constant 0 : index
    %90 = vector.load %arg4[%c3_104, %c0_105, %c0_106] : memref<5x128x256xf32, #tpu.memory_space<vmem>>, vector<1x128x256xf32>
    %91 = vector.shape_cast %90 : vector<1x128x256xf32> to vector<128x256xf32>
    %cst_107 = arith.constant dense<0.000000e+00> : vector<64x256xf32>
    %92 = tpu.matmul %89, %91, %cst_107 {dimension_numbers = #tpu.dot_dimension_numbers<[1], [0], [0], [1], [0, 0, 1, 1], [], []>} : vector<64x128xf32>, vector<128x256xf32>, vector<64x256xf32> -> vector<64x256xf32>
    %93 = arith.addf %88, %92 : vector<64x256xf32>
    %c4_108 = arith.constant 4 : index
    %c0_109 = arith.constant 0 : index
    %94 = vector.load %arg14[%c4_108, %c0_109] : memref<72x128xf32, #tpu.memory_space<vmem>>, vector<64x128xf32>
    %c4_110 = arith.constant 4 : index
    %c0_111 = arith.constant 0 : index
    %c0_112 = arith.constant 0 : index
    %95 = vector.load %arg4[%c4_110, %c0_111, %c0_112] : memref<5x128x256xf32, #tpu.memory_space<vmem>>, vector<1x128x256xf32>
    %96 = vector.shape_cast %95 : vector<1x128x256xf32> to vector<128x256xf32>
    %cst_113 = arith.constant dense<0.000000e+00> : vector<64x256xf32>
    %97 = tpu.matmul %94, %96, %cst_113 {dimension_numbers = #tpu.dot_dimension_numbers<[1], [0], [0], [1], [0, 0, 1, 1], [], []>} : vector<64x128xf32>, vector<128x256xf32>, vector<64x256xf32> -> vector<64x256xf32>
    %98 = arith.addf %93, %97 : vector<64x256xf32>
    %c0_114 = arith.constant 0 : index
    %c0_115 = arith.constant 0 : index
    %99 = vector.load %arg5[%c0_114, %c0_115] : memref<1x256xf32, #tpu.memory_space<vmem>>, vector<1x256xf32>
    %100 = vector.broadcast %99 : vector<1x256xf32> to vector<64x256xf32>
    %101 = arith.addf %98, %100 : vector<64x256xf32>
    %cst_116 = arith.constant 0.000000e+00 : f32
    %102 = vector.broadcast %cst_116 : f32 to vector<64x256xf32>
    %103 = arith.maximumf %101, %102 : vector<64x256xf32>
    %104 = vector.extract_strided_slice %103 {offsets = [0, 0], sizes = [64, 128], strides = [1, 1]} : vector<64x256xf32> to vector<64x128xf32>
    %105 = vector.extract_strided_slice %103 {offsets = [0, 128], sizes = [64, 128], strides = [1, 1]} : vector<64x256xf32> to vector<64x128xf32>
    %106 = arith.maximumf %104, %105 : vector<64x128xf32>
    %c0_117 = arith.constant 0 : index
    %c0_118 = arith.constant 0 : index
    %c0_119 = arith.constant 0 : index
    %107 = vector.load %arg6[%c0_117, %c0_118, %c0_119] : memref<2x40x64xf32, #tpu.memory_space<vmem>>, vector<1x40x64xf32>
    %108 = vector.shape_cast %107 : vector<1x40x64xf32> to vector<40x64xf32>
    %cst_120 = arith.constant dense<0.000000e+00> : vector<40x128xf32>
    %109 = tpu.matmul %108, %106, %cst_120 {dimension_numbers = #tpu.dot_dimension_numbers<[1], [0], [0], [1], [0, 0, 1, 1], [], []>} : vector<40x64xf32>, vector<64x128xf32>, vector<40x128xf32> -> vector<40x128xf32>
    %c1_121 = arith.constant 1 : index
    %c0_122 = arith.constant 0 : index
    %c0_123 = arith.constant 0 : index
    %110 = vector.load %arg6[%c1_121, %c0_122, %c0_123] : memref<2x40x64xf32, #tpu.memory_space<vmem>>, vector<1x40x64xf32>
    %111 = vector.shape_cast %110 : vector<1x40x64xf32> to vector<40x64xf32>
    %cst_124 = arith.constant dense<0.000000e+00> : vector<40x128xf32>
    %112 = tpu.matmul %111, %106, %cst_124 {dimension_numbers = #tpu.dot_dimension_numbers<[1], [0], [0], [1], [0, 0, 1, 1], [], []>} : vector<40x64xf32>, vector<64x128xf32>, vector<40x128xf32> -> vector<40x128xf32>
    %113 = arith.maximumf %109, %112 : vector<40x128xf32>
    %114 = vector.extract_strided_slice %113 {offsets = [0, 0], sizes = [4, 128], strides = [1, 1]} : vector<40x128xf32> to vector<4x128xf32>
    %c0_125 = arith.constant 0 : index
    %c0_126 = arith.constant 0 : index
    %c0_127 = arith.constant 0 : index
    %115 = vector.load %arg7[%c0_125, %c0_126, %c0_127] : memref<5x128x128xf32, #tpu.memory_space<vmem>>, vector<1x128x128xf32>
    %116 = vector.shape_cast %115 : vector<1x128x128xf32> to vector<128x128xf32>
    %cst_128 = arith.constant dense<0.000000e+00> : vector<4x128xf32>
    %117 = tpu.matmul %114, %116, %cst_128 {dimension_numbers = #tpu.dot_dimension_numbers<[1], [0], [0], [1], [0, 0, 1, 1], [], []>} : vector<4x128xf32>, vector<128x128xf32>, vector<4x128xf32> -> vector<4x128xf32>
    %118 = vector.extract_strided_slice %113 {offsets = [8, 0], sizes = [4, 128], strides = [1, 1]} : vector<40x128xf32> to vector<4x128xf32>
    %c1_129 = arith.constant 1 : index
    %c0_130 = arith.constant 0 : index
    %c0_131 = arith.constant 0 : index
    %119 = vector.load %arg7[%c1_129, %c0_130, %c0_131] : memref<5x128x128xf32, #tpu.memory_space<vmem>>, vector<1x128x128xf32>
    %120 = vector.shape_cast %119 : vector<1x128x128xf32> to vector<128x128xf32>
    %cst_132 = arith.constant dense<0.000000e+00> : vector<4x128xf32>
    %121 = tpu.matmul %118, %120, %cst_132 {dimension_numbers = #tpu.dot_dimension_numbers<[1], [0], [0], [1], [0, 0, 1, 1], [], []>} : vector<4x128xf32>, vector<128x128xf32>, vector<4x128xf32> -> vector<4x128xf32>
    %122 = arith.addf %117, %121 : vector<4x128xf32>
    %123 = vector.extract_strided_slice %113 {offsets = [16, 0], sizes = [4, 128], strides = [1, 1]} : vector<40x128xf32> to vector<4x128xf32>
    %c2_133 = arith.constant 2 : index
    %c0_134 = arith.constant 0 : index
    %c0_135 = arith.constant 0 : index
    %124 = vector.load %arg7[%c2_133, %c0_134, %c0_135] : memref<5x128x128xf32, #tpu.memory_space<vmem>>, vector<1x128x128xf32>
    %125 = vector.shape_cast %124 : vector<1x128x128xf32> to vector<128x128xf32>
    %cst_136 = arith.constant dense<0.000000e+00> : vector<4x128xf32>
    %126 = tpu.matmul %123, %125, %cst_136 {dimension_numbers = #tpu.dot_dimension_numbers<[1], [0], [0], [1], [0, 0, 1, 1], [], []>} : vector<4x128xf32>, vector<128x128xf32>, vector<4x128xf32> -> vector<4x128xf32>
    %127 = arith.addf %122, %126 : vector<4x128xf32>
    %128 = vector.extract_strided_slice %113 {offsets = [24, 0], sizes = [4, 128], strides = [1, 1]} : vector<40x128xf32> to vector<4x128xf32>
    %c3_137 = arith.constant 3 : index
    %c0_138 = arith.constant 0 : index
    %c0_139 = arith.constant 0 : index
    %129 = vector.load %arg7[%c3_137, %c0_138, %c0_139] : memref<5x128x128xf32, #tpu.memory_space<vmem>>, vector<1x128x128xf32>
    %130 = vector.shape_cast %129 : vector<1x128x128xf32> to vector<128x128xf32>
    %cst_140 = arith.constant dense<0.000000e+00> : vector<4x128xf32>
    %131 = tpu.matmul %128, %130, %cst_140 {dimension_numbers = #tpu.dot_dimension_numbers<[1], [0], [0], [1], [0, 0, 1, 1], [], []>} : vector<4x128xf32>, vector<128x128xf32>, vector<4x128xf32> -> vector<4x128xf32>
    %132 = arith.addf %127, %131 : vector<4x128xf32>
    %133 = vector.extract_strided_slice %113 {offsets = [32, 0], sizes = [4, 128], strides = [1, 1]} : vector<40x128xf32> to vector<4x128xf32>
    %c4_141 = arith.constant 4 : index
    %c0_142 = arith.constant 0 : index
    %c0_143 = arith.constant 0 : index
    %134 = vector.load %arg7[%c4_141, %c0_142, %c0_143] : memref<5x128x128xf32, #tpu.memory_space<vmem>>, vector<1x128x128xf32>
    %135 = vector.shape_cast %134 : vector<1x128x128xf32> to vector<128x128xf32>
    %cst_144 = arith.constant dense<0.000000e+00> : vector<4x128xf32>
    %136 = tpu.matmul %133, %135, %cst_144 {dimension_numbers = #tpu.dot_dimension_numbers<[1], [0], [0], [1], [0, 0, 1, 1], [], []>} : vector<4x128xf32>, vector<128x128xf32>, vector<4x128xf32> -> vector<4x128xf32>
    %137 = arith.addf %132, %136 : vector<4x128xf32>
    %c0_145 = arith.constant 0 : index
    %c0_146 = arith.constant 0 : index
    %138 = vector.load %arg8[%c0_145, %c0_146] : memref<1x128xf32, #tpu.memory_space<vmem>>, vector<1x128xf32>
    %139 = vector.broadcast %138 : vector<1x128xf32> to vector<4x128xf32>
    %140 = arith.addf %137, %139 : vector<4x128xf32>
    %cst_147 = arith.constant 0.000000e+00 : f32
    %141 = vector.broadcast %cst_147 : f32 to vector<4x128xf32>
    %142 = arith.maximumf %140, %141 : vector<4x128xf32>
    %c0_148 = arith.constant 0 : index
    %c0_149 = arith.constant 0 : index
    %143 = vector.load %arg9[%c0_148, %c0_149] : memref<128x128xf32, #tpu.memory_space<vmem>>, vector<128x128xf32>
    %cst_150 = arith.constant dense<0.000000e+00> : vector<4x128xf32>
    %144 = tpu.matmul %142, %143, %cst_150 {dimension_numbers = #tpu.dot_dimension_numbers<[1], [0], [0], [1], [0, 0, 1, 1], [], []>} : vector<4x128xf32>, vector<128x128xf32>, vector<4x128xf32> -> vector<4x128xf32>
    %c0_151 = arith.constant 0 : index
    %c0_152 = arith.constant 0 : index
    %145 = vector.load %arg10[%c0_151, %c0_152] : memref<1x128xf32, #tpu.memory_space<vmem>>, vector<1x128xf32>
    %146 = vector.broadcast %145 : vector<1x128xf32> to vector<4x128xf32>
    %147 = arith.addf %144, %146 : vector<4x128xf32>
    %cst_153 = arith.constant 0.000000e+00 : f32
    %148 = vector.broadcast %cst_153 : f32 to vector<4x128xf32>
    %149 = arith.maximumf %147, %148 : vector<4x128xf32>
    %c0_154 = arith.constant 0 : index
    %c0_155 = arith.constant 0 : index
    %150 = vector.load %arg11[%c0_154, %c0_155] : memref<128x128xf32, #tpu.memory_space<vmem>>, vector<128x128xf32>
    %cst_156 = arith.constant dense<0.000000e+00> : vector<4x128xf32>
    %151 = tpu.matmul %149, %150, %cst_156 {dimension_numbers = #tpu.dot_dimension_numbers<[1], [0], [0], [1], [0, 0, 1, 1], [], []>} : vector<4x128xf32>, vector<128x128xf32>, vector<4x128xf32> -> vector<4x128xf32>
    %c0_157 = arith.constant 0 : index
    %c0_158 = arith.constant 0 : index
    %152 = vector.load %arg12[%c0_157, %c0_158] : memref<1x128xf32, #tpu.memory_space<vmem>>, vector<1x128xf32>
    %153 = vector.broadcast %152 : vector<1x128xf32> to vector<4x128xf32>
    %154 = arith.addf %151, %153 : vector<4x128xf32>
    %c0_159 = arith.constant 0 : index
    %c0_160 = arith.constant 0 : index
    %c0_161 = arith.constant 0 : index
    %155 = vector.load %arg13[%c0_159, %c0_160, %c0_161] : memref<1x4x128xf32, #tpu.memory_space<vmem>>, vector<1x4x128xf32>
    %156 = vector.shape_cast %155 : vector<1x4x128xf32> to vector<4x128xf32>
    %157 = vector.shape_cast %154 : vector<4x128xf32> to vector<1x4x128xf32>
    tpu.vector_store %arg13[%c0_159, %c0_160, %c0_161], %157 {strides = array<i32>} : memref<1x4x128xf32, #tpu.memory_space<vmem>>, vector<1x4x128xf32>,
    return
  }
  func.func @transform_0(%arg0: i32) -> (i32, i32, i32, i32) {
    %c0_i32 = arith.constant 0 : i32
    %c0_i32_0 = arith.constant 0 : i32
    %c0_i32_1 = arith.constant 0 : i32
    %c0_i32_2 = arith.constant 0 : i32
    return %c0_i32, %c0_i32_0, %arg0, %c0_i32_1 : i32, i32, i32, i32
  }
  func.func @transform_1(%arg0: i32) -> (i32, i32, i32) {
    %c0_i32 = arith.constant 0 : i32
    %c0_i32_0 = arith.constant 0 : i32
    %c0_i32_1 = arith.constant 0 : i32
    %c0_i32_2 = arith.constant 0 : i32
    return %c0_i32, %c0_i32_0, %c0_i32_1 : i32, i32, i32
  }
  func.func @transform_2(%arg0: i32) -> (i32, i32) {
    %c0_i32 = arith.constant 0 : i32
    %c0_i32_0 = arith.constant 0 : i32
    %c0_i32_1 = arith.constant 0 : i32
    return %c0_i32, %c0_i32_0 : i32, i32
  }
  func.func @transform_3(%arg0: i32) -> (i32, i32, i32) {
    %c0_i32 = arith.constant 0 : i32
    %c0_i32_0 = arith.constant 0 : i32
    %c0_i32_1 = arith.constant 0 : i32
    %c0_i32_2 = arith.constant 0 : i32
    return %c0_i32, %c0_i32_0, %c0_i32_1 : i32, i32, i32
  }
  func.func @transform_4(%arg0: i32) -> (i32, i32) {
    %c0_i32 = arith.constant 0 : i32
    %c0_i32_0 = arith.constant 0 : i32
    %c0_i32_1 = arith.constant 0 : i32
    return %c0_i32, %c0_i32_0 : i32, i32
  }
  func.func @transform_5(%arg0: i32) -> (i32, i32, i32) {
    %c0_i32 = arith.constant 0 : i32
    %c0_i32_0 = arith.constant 0 : i32
    %c0_i32_1 = arith.constant 0 : i32
    %c0_i32_2 = arith.constant 0 : i32
    return %c0_i32, %c0_i32_0, %c0_i32_1 : i32, i32, i32
  }
  func.func @transform_6(%arg0: i32) -> (i32, i32, i32) {
    %c0_i32 = arith.constant 0 : i32
    %c0_i32_0 = arith.constant 0 : i32
    %c0_i32_1 = arith.constant 0 : i32
    %c0_i32_2 = arith.constant 0 : i32
    return %c0_i32, %c0_i32_0, %c0_i32_1 : i32, i32, i32
  }
  func.func @transform_7(%arg0: i32) -> (i32, i32) {
    %c0_i32 = arith.constant 0 : i32
    %c0_i32_0 = arith.constant 0 : i32
    %c0_i32_1 = arith.constant 0 : i32
    return %c0_i32, %c0_i32_0 : i32, i32
  }
  func.func @transform_8(%arg0: i32) -> (i32, i32) {
    %c0_i32 = arith.constant 0 : i32
    %c0_i32_0 = arith.constant 0 : i32
    %c0_i32_1 = arith.constant 0 : i32
    return %c0_i32, %c0_i32_0 : i32, i32
  }
  func.func @transform_9(%arg0: i32) -> (i32, i32) {
    %c0_i32 = arith.constant 0 : i32
    %c0_i32_0 = arith.constant 0 : i32
    %c0_i32_1 = arith.constant 0 : i32
    return %c0_i32, %c0_i32_0 : i32, i32
  }
  func.func @transform_10(%arg0: i32) -> (i32, i32) {
    %c0_i32 = arith.constant 0 : i32
    %c0_i32_0 = arith.constant 0 : i32
    %c0_i32_1 = arith.constant 0 : i32
    return %c0_i32, %c0_i32_0 : i32, i32
  }
  func.func @transform_11(%arg0: i32) -> (i32, i32) {
    %c0_i32 = arith.constant 0 : i32
    %c0_i32_0 = arith.constant 0 : i32
    %c0_i32_1 = arith.constant 0 : i32
    return %c0_i32, %c0_i32_0 : i32, i32
  }
  func.func @transform_12(%arg0: i32) -> (i32, i32, i32) {
    %c0_i32 = arith.constant 0 : i32
    %c0_i32_0 = arith.constant 0 : i32
    %c0_i32_1 = arith.constant 0 : i32
    return %arg0, %c0_i32, %c0_i32_0 : i32, i32, i32
  }
}

</mosaic_0001>

<llo_original>
// kernel: lenet_forward.1
$region0: #{lenet_forward.1}
  #allocation0 [shape = 'u32[]', space=smem, size = 0x4, offset = 0x4, fixed_abs, tag = 'smem constant byte address 0x4 - core index']
  #allocation1 [shape = 'u32[144,128]{1,0:T(1,128)}', space=vmem, size = 0x12000, scoped, tag = 'internal scratch']
  #allocation2 [shape = 'f32[72,128]{1,0:T(8,128)}', space=vmem, size = 0x9000, scoped, tag = 'scratch operand']
  %s0 = inlined_call_operand.vmem [shape: f32[5,2,128,96], index: 0, kind: input, shape index: {}]
  %s1 = inlined_call_operand.vmem [shape: f32[5,96,256], index: 1, kind: input, shape index: {}]
  %s2 = inlined_call_operand.vmem [shape: f32[1,256], index: 2, kind: input, shape index: {}]
  %s3 = inlined_call_operand.vmem [shape: f32[5,128,256], index: 3, kind: input, shape index: {}]
  %s4 = inlined_call_operand.vmem [shape: f32[1,256], index: 4, kind: input, shape index: {}]
  %s5 = inlined_call_operand.vmem [shape: f32[2,40,64], index: 5, kind: input, shape index: {}]
  %s6 = inlined_call_operand.vmem [shape: f32[5,128,128], index: 6, kind: input, shape index: {}]
  %s7 = inlined_call_operand.vmem [shape: f32[1,128], index: 7, kind: input, shape index: {}]
  %s8 = inlined_call_operand.vmem [shape: f32[128,128], index: 8, kind: input, shape index: {}]
  %s9 = inlined_call_operand.vmem [shape: f32[1,128], index: 9, kind: input, shape index: {}]
  %s10 = inlined_call_operand.vmem [shape: f32[128,128], index: 10, kind: input, shape index: {}]
  %s11 = inlined_call_operand.vmem [shape: f32[1,128], index: 11, kind: input, shape index: {}]
  %s12 = inlined_call_operand.hbm [shape: f32[2,4,128], index: 12, kind: output, shape index: {}]
  %s13 = sld [smem:[#allocation0]]
  $region119: #{lenet_forward.1} parent=0
    _
  %s15 = ssub.s32 1, %s13
  %s16 = scalar_select 0, %s15, %s13
  $region1: #{lenet_forward.1} parent=0
    #allocation3 [shape = 'u8[655360]{0}', space=vmem, size = 0xa0000, scoped, tag = 'input window, operand 0']
    #allocation4 [shape = 'u8[4096]{0}', space=vmem, size = 0x1000, scoped, tag = 'output window, operand 0']
    #allocation5 [shape = 's32[2]{0}', space=sflag, size = 0x8, scoped, tag = 'scoped memory for lenet_forward.1']
    %17 = vsyncpa [#allocation5], 0
    %s18 = scalar_lea.sflag [#allocation5], 1
    %19 = vsyncpa %s18, 0
    loop: start=0, step=1, limit=4
    $region2: #{lenet_forward.1} parent=1 // loop_pre_header
      _
    $region3: #{lenet_forward.1} parent=1 // loop_header
      %s21 = sphi 0, %s25
      %p22 = scmp.ge.s32.totalorder %s21, 4
      %s31 = sphi 0, %s33
      %s34 = sphi 0, %s31
      %s35 = sphi 0, %s34
      %s51 = sphi 0, %s35
      %s55 = sphi 0, %s55
      %s57 = sphi 0, %s55
      %s58 = sphi 0, %s57
      %s72 = sphi 0, %s58
      %s76 = sphi 0, %s76
      %s78 = sphi 0, %s76
      %s79 = sphi 0, %s78
      %s93 = sphi 0, %s79
      %s97 = sphi 0, %s97
      %s99 = sphi 0, %s97
      %s100 = sphi 0, %s99
      %s114 = sphi 0, %s100
      %s118 = sphi 0, %s118
      %s120 = sphi 0, %s118
      %s121 = sphi 0, %s120
      %s135 = sphi 0, %s121
      %s139 = sphi 0, %s139
      %s141 = sphi 0, %s139
      %s142 = sphi 0, %s141
      %s156 = sphi 0, %s142
      %s160 = sphi 0, %s160
      %s162 = sphi 0, %s160
      %s163 = sphi 0, %s162
      %s177 = sphi 0, %s163
      %s181 = sphi 0, %s181
      %s183 = sphi 0, %s181
      %s184 = sphi 0, %s183
      %s198 = sphi 0, %s184
      %s202 = sphi 0, %s202
      %s204 = sphi 0, %s202
      %s205 = sphi 0, %s204
      %s219 = sphi 0, %s205
      %s223 = sphi 0, %s223
      %s225 = sphi 0, %s223
      %s226 = sphi 0, %s225
      %s240 = sphi 0, %s226
      %s244 = sphi 0, %s244
      %s246 = sphi 0, %s244
      %s247 = sphi 0, %s246
      %s261 = sphi 0, %s247
      %s265 = sphi 0, %s265
      %s267 = sphi 0, %s265
      %s268 = sphi 0, %s267
      %s282 = sphi 0, %s268
      %s288 = sphi 0, %s290
      %s291 = sphi 0, %s288
      %s292 = sphi 0, %s291
      %s308 = sphi 0, %s292
    $region4: #{lenet_forward.1} parent=1 // loop_header_branch
      %24 = sbr.rel (%p22) target = $region8
    $region5: #{lenet_forward.1} parent=1 // loop_body
      %s26 = ssub.s32 %s21, 1
      %s27 = ssub.s32 %s21, 2
      %s28 = sadd.s32 %s21, 1
      %s29 = ssub.s32 %s21, %s28
      %p30 = scmp.eq.s32.totalorder %s29, 0
      %s32 = sadd.s32 %s31, 1
      %s33 = scalar_select %p30, %s31, %s32
      %p36 = pneg %p30
      %p37 = scmp.eq.s32.totalorder %s21, 1
      %p38 = por %p36, %p37
      %p39 = scmp.ne.s32.totalorder %s31, %s34
      %p40 = scmp.eq.s32.totalorder %s21, 0
      %p41 = por %p39, %p40
      %p42 = scmp.ne.s32.totalorder %s31, %s34
      %p43 = scmp.eq.s32.totalorder %s26, 1
      %p44 = por %p42, %p43
      %p45 = scmp.ne.s32.totalorder %s34, %s35
      %p46 = scmp.eq.s32.totalorder %s26, 0
      %p47 = por %p45, %p46
      %p48 = scmp.ne.s32.totalorder %s34, %s35
      %p49 = scmp.eq.s32.totalorder %s27, 1
      %p50 = por %p48, %p49
      %p52 = scmp.ne.s32.totalorder %s35, %s51
      %p53 = scmp.eq.s32.totalorder %s27, 0
      %p54 = por %p52, %p53
      %s56 = sadd.s32 %s55, 1
      %p59 = scmp.eq.s32.totalorder %s21, 1
      %p60 = scmp.ne.s32.totalorder %s55, %s57
      %p61 = scmp.eq.s32.totalorder %s21, 0
      %p62 = por %p60, %p61
      %p63 = scmp.ne.s32.totalorder %s55, %s57
      %p64 = scmp.eq.s32.totalorder %s26, 1
      %p65 = por %p63, %p64
      %p66 = scmp.ne.s32.totalorder %s57, %s58
      %p67 = scmp.eq.s32.totalorder %s26, 0
      %p68 = por %p66, %p67
      %p69 = scmp.ne.s32.totalorder %s57, %s58
      %p70 = scmp.eq.s32.totalorder %s27, 1
      %p71 = por %p69, %p70
      %p73 = scmp.ne.s32.totalorder %s58, %s72
      %p74 = scmp.eq.s32.totalorder %s27, 0
      %p75 = por %p73, %p74
      %s77 = sadd.s32 %s76, 1
      %p80 = scmp.eq.s32.totalorder %s21, 1
      %p81 = scmp.ne.s32.totalorder %s76, %s78
      %p82 = scmp.eq.s32.totalorder %s21, 0
      %p83 = por %p81, %p82
      %p84 = scmp.ne.s32.totalorder %s76, %s78
      %p85 = scmp.eq.s32.totalorder %s26, 1
      %p86 = por %p84, %p85
      %p87 = scmp.ne.s32.totalorder %s78, %s79
      %p88 = scmp.eq.s32.totalorder %s26, 0
      %p89 = por %p87, %p88
      %p90 = scmp.ne.s32.totalorder %s78, %s79
      %p91 = scmp.eq.s32.totalorder %s27, 1
      %p92 = por %p90, %p91
      %p94 = scmp.ne.s32.totalorder %s79, %s93
      %p95 = scmp.eq.s32.totalorder %s27, 0
      %p96 = por %p94, %p95
      %s98 = sadd.s32 %s97, 1
      %p101 = scmp.eq.s32.totalorder %s21, 1
      %p102 = scmp.ne.s32.totalorder %s97, %s99
      %p103 = scmp.eq.s32.totalorder %s21, 0
      %p104 = por %p102, %p103
      %p105 = scmp.ne.s32.totalorder %s97, %s99
      %p106 = scmp.eq.s32.totalorder %s26, 1
      %p107 = por %p105, %p106
      %p108 = scmp.ne.s32.totalorder %s99, %s100
      %p109 = scmp.eq.s32.totalorder %s26, 0
      %p110 = por %p108, %p109
      %p111 = scmp.ne.s32.totalorder %s99, %s100
      %p112 = scmp.eq.s32.totalorder %s27, 1
      %p113 = por %p111, %p112
      %p115 = scmp.ne.s32.totalorder %s100, %s114
      %p116 = scmp.eq.s32.totalorder %s27, 0
      %p117 = por %p115, %p116
      %s119 = sadd.s32 %s118, 1
      %p122 = scmp.eq.s32.totalorder %s21, 1
      %p123 = scmp.ne.s32.totalorder %s118, %s120
      %p124 = scmp.eq.s32.totalorder %s21, 0
      %p125 = por %p123, %p124
      %p126 = scmp.ne.s32.totalorder %s118, %s120
      %p127 = scmp.eq.s32.totalorder %s26, 1
      %p128 = por %p126, %p127
      %p129 = scmp.ne.s32.totalorder %s120, %s121
      %p130 = scmp.eq.s32.totalorder %s26, 0
      %p131 = por %p129, %p130
      %p132 = scmp.ne.s32.totalorder %s120, %s121
      %p133 = scmp.eq.s32.totalorder %s27, 1
      %p134 = por %p132, %p133
      %p136 = scmp.ne.s32.totalorder %s121, %s135
      %p137 = scmp.eq.s32.totalorder %s27, 0
      %p138 = por %p136, %p137
      %s140 = sadd.s32 %s139, 1
      %p143 = scmp.eq.s32.totalorder %s21, 1
      %p144 = scmp.ne.s32.totalorder %s139, %s141
      %p145 = scmp.eq.s32.totalorder %s21, 0
      %p146 = por %p144, %p145
      %p147 = scmp.ne.s32.totalorder %s139, %s141
      %p148 = scmp.eq.s32.totalorder %s26, 1
      %p149 = por %p147, %p148
      %p150 = scmp.ne.s32.totalorder %s141, %s142
      %p151 = scmp.eq.s32.totalorder %s26, 0
      %p152 = por %p150, %p151
      %p153 = scmp.ne.s32.totalorder %s141, %s142
      %p154 = scmp.eq.s32.totalorder %s27, 1
      %p155 = por %p153, %p154
      %p157 = scmp.ne.s32.totalorder %s142, %s156
      %p158 = scmp.eq.s32.totalorder %s27, 0
      %p159 = por %p157, %p158
      %s161 = sadd.s32 %s160, 1
      %p164 = scmp.eq.s32.totalorder %s21, 1
      %p165 = scmp.ne.s32.totalorder %s160, %s162
      %p166 = scmp.eq.s32.totalorder %s21, 0
      %p167 = por %p165, %p166
      %p168 = scmp.ne.s32.totalorder %s160, %s162
      %p169 = scmp.eq.s32.totalorder %s26, 1
      %p170 = por %p168, %p169
      %p171 = scmp.ne.s32.totalorder %s162, %s163
      %p172 = scmp.eq.s32.totalorder %s26, 0
      %p173 = por %p171, %p172
      %p174 = scmp.ne.s32.totalorder %s162, %s163
      %p175 = scmp.eq.s32.totalorder %s27, 1
      %p176 = por %p174, %p175
      %p178 = scmp.ne.s32.totalorder %s163, %s177
      %p179 = scmp.eq.s32.totalorder %s27, 0
      %p180 = por %p178, %p179
      %s182 = sadd.s32 %s181, 1
      %p185 = scmp.eq.s32.totalorder %s21, 1
      %p186 = scmp.ne.s32.totalorder %s181, %s183
      %p187 = scmp.eq.s32.totalorder %s21, 0
      %p188 = por %p186, %p187
      %p189 = scmp.ne.s32.totalorder %s181, %s183
      %p190 = scmp.eq.s32.totalorder %s26, 1
      %p191 = por %p189, %p190
      %p192 = scmp.ne.s32.totalorder %s183, %s184
      %p193 = scmp.eq.s32.totalorder %s26, 0
      %p194 = por %p192, %p193
      %p195 = scmp.ne.s32.totalorder %s183, %s184
      %p196 = scmp.eq.s32.totalorder %s27, 1
      %p197 = por %p195, %p196
      %p199 = scmp.ne.s32.totalorder %s184, %s198
      %p200 = scmp.eq.s32.totalorder %s27, 0
      %p201 = por %p199, %p200
      %s203 = sadd.s32 %s202, 1
      %p206 = scmp.eq.s32.totalorder %s21, 1
      %p207 = scmp.ne.s32.totalorder %s202, %s204
      %p208 = scmp.eq.s32.totalorder %s21, 0
      %p209 = por %p207, %p208
      %p210 = scmp.ne.s32.totalorder %s202, %s204
      %p211 = scmp.eq.s32.totalorder %s26, 1
      %p212 = por %p210, %p211
      %p213 = scmp.ne.s32.totalorder %s204, %s205
      %p214 = scmp.eq.s32.totalorder %s26, 0
      %p215 = por %p213, %p214
      %p216 = scmp.ne.s32.totalorder %s204, %s205
      %p217 = scmp.eq.s32.totalorder %s27, 1
      %p218 = por %p216, %p217
      %p220 = scmp.ne.s32.totalorder %s205, %s219
      %p221 = scmp.eq.s32.totalorder %s27, 0
      %p222 = por %p220, %p221
      %s224 = sadd.s32 %s223, 1
      %p227 = scmp.eq.s32.totalorder %s21, 1
      %p228 = scmp.ne.s32.totalorder %s223, %s225
      %p229 = scmp.eq.s32.totalorder %s21, 0
      %p230 = por %p228, %p229
      %p231 = scmp.ne.s32.totalorder %s223, %s225
      %p232 = scmp.eq.s32.totalorder %s26, 1
      %p233 = por %p231, %p232
      %p234 = scmp.ne.s32.totalorder %s225, %s226
      %p235 = scmp.eq.s32.totalorder %s26, 0
      %p236 = por %p234, %p235
      %p237 = scmp.ne.s32.totalorder %s225, %s226
      %p238 = scmp.eq.s32.totalorder %s27, 1
      %p239 = por %p237, %p238
      %p241 = scmp.ne.s32.totalorder %s226, %s240
      %p242 = scmp.eq.s32.totalorder %s27, 0
      %p243 = por %p241, %p242
      %s245 = sadd.s32 %s244, 1
      %p248 = scmp.eq.s32.totalorder %s21, 1
      %p249 = scmp.ne.s32.totalorder %s244, %s246
      %p250 = scmp.eq.s32.totalorder %s21, 0
      %p251 = por %p249, %p250
      %p252 = scmp.ne.s32.totalorder %s244, %s246
      %p253 = scmp.eq.s32.totalorder %s26, 1
      %p254 = por %p252, %p253
      %p255 = scmp.ne.s32.totalorder %s246, %s247
      %p256 = scmp.eq.s32.totalorder %s26, 0
      %p257 = por %p255, %p256
      %p258 = scmp.ne.s32.totalorder %s246, %s247
      %p259 = scmp.eq.s32.totalorder %s27, 1
      %p260 = por %p258, %p259
      %p262 = scmp.ne.s32.totalorder %s247, %s261
      %p263 = scmp.eq.s32.totalorder %s27, 0
      %p264 = por %p262, %p263
      %s266 = sadd.s32 %s265, 1
      %p269 = scmp.eq.s32.totalorder %s21, 1
      %p270 = scmp.ne.s32.totalorder %s265, %s267
      %p271 = scmp.eq.s32.totalorder %s21, 0
      %p272 = por %p270, %p271
      %p273 = scmp.ne.s32.totalorder %s265, %s267
      %p274 = scmp.eq.s32.totalorder %s26, 1
      %p275 = por %p273, %p274
      %p276 = scmp.ne.s32.totalorder %s267, %s268
      %p277 = scmp.eq.s32.totalorder %s26, 0
      %p278 = por %p276, %p277
      %p279 = scmp.ne.s32.totalorder %s267, %s268
      %p280 = scmp.eq.s32.totalorder %s27, 1
      %p281 = por %p279, %p280
      %p283 = scmp.ne.s32.totalorder %s268, %s282
      %p284 = scmp.eq.s32.totalorder %s27, 0
      %p285 = por %p283, %p284
      %s286 = ssub.s32 %s21, %s28
      %p287 = scmp.eq.s32.totalorder %s286, 0
      %s289 = sadd.s32 %s288, 1
      %s290 = scalar_select %p287, %s288, %s289
      %p293 = pneg %p287
      %p294 = scmp.eq.s32.totalorder %s21, 1
      %p295 = por %p293, %p294
      %p296 = scmp.ne.s32.totalorder %s288, %s291
      %p297 = scmp.eq.s32.totalorder %s21, 0
      %p298 = por %p296, %p297
      %p299 = scmp.ne.s32.totalorder %s288, %s291
      %p300 = scmp.eq.s32.totalorder %s26, 1
      %p301 = por %p299, %p300
      %p302 = scmp.ne.s32.totalorder %s291, %s292
      %p303 = scmp.eq.s32.totalorder %s26, 0
      %p304 = por %p302, %p303
      %p305 = scmp.ne.s32.totalorder %s291, %s292
      %p306 = scmp.eq.s32.totalorder %s27, 1
      %p307 = por %p305, %p306
      %p309 = scmp.ne.s32.totalorder %s292, %s308
      %p310 = scmp.eq.s32.totalorder %s27, 0
      %p311 = por %p309, %p310
      %p312 = scmp.le.s32.totalorder 1, %s21
      %p313 = scmp.lt.s32.totalorder %s21, 3
      %p314 = pnand %p312, %p313
      %p315 = pneg %p314
      // Predicated region
      $region9: #{lenet_forward.1} parent=5 // pred_check
        _
      $region10: #{lenet_forward.1} parent=5 // pred_check_branch
        %317 = sbr.rel (%p314) target = $region12
      $region11: #{lenet_forward.1} parent=5 // pred_region
        %s318 = ssub.s32 %s21, 1
        // Predicated region
        $region13: #{lenet_forward.1} parent=11 // pred_check
          %p319 = pneg %p68
        $region14: #{lenet_forward.1} parent=11 // pred_check_branch
          %321 = sbr.rel (%p319) target = $region16
        $region15: #{lenet_forward.1} parent=11 // pred_region
          _
        $region16: #{lenet_forward.1} parent=11 // pred_fallthru
          _
        // Predicated region
        $region17: #{lenet_forward.1} parent=11 // pred_check
          %p322 = pneg %p89
        $region18: #{lenet_forward.1} parent=11 // pred_check_branch
          %324 = sbr.rel (%p322) target = $region20
        $region19: #{lenet_forward.1} parent=11 // pred_region
          _
        $region20: #{lenet_forward.1} parent=11 // pred_fallthru
          _
        // Predicated region
        $region21: #{lenet_forward.1} parent=11 // pred_check
          %p325 = pneg %p110
        $region22: #{lenet_forward.1} parent=11 // pred_check_branch
          %327 = sbr.rel (%p325) target = $region24
        $region23: #{lenet_forward.1} parent=11 // pred_region
          _
        $region24: #{lenet_forward.1} parent=11 // pred_fallthru
          _
        // Predicated region
        $region25: #{lenet_forward.1} parent=11 // pred_check
          %p328 = pneg %p131
        $region26: #{lenet_forward.1} parent=11 // pred_check_branch
          %330 = sbr.rel (%p328) target = $region28
        $region27: #{lenet_forward.1} parent=11 // pred_region
          _
        $region28: #{lenet_forward.1} parent=11 // pred_fallthru
          _
        // Predicated region
        $region29: #{lenet_forward.1} parent=11 // pred_check
          %p331 = pneg %p152
        $region30: #{lenet_forward.1} parent=11 // pred_check_branch
          %333 = sbr.rel (%p331) target = $region32
        $region31: #{lenet_forward.1} parent=11 // pred_region
          _
        $region32: #{lenet_forward.1} parent=11 // pred_fallthru
          _
        // Predicated region
        $region33: #{lenet_forward.1} parent=11 // pred_check
          %p334 = pneg %p173
        $region34: #{lenet_forward.1} parent=11 // pred_check_branch
          %336 = sbr.rel (%p334) target = $region36
        $region35: #{lenet_forward.1} parent=11 // pred_region
          _
        $region36: #{lenet_forward.1} parent=11 // pred_fallthru
          _
        // Predicated region
        $region37: #{lenet_forward.1} parent=11 // pred_check
          %p337 = pneg %p194
        $region38: #{lenet_forward.1} parent=11 // pred_check_branch
          %339 = sbr.rel (%p337) target = $region40
        $region39: #{lenet_forward.1} parent=11 // pred_region
          _
        $region40: #{lenet_forward.1} parent=11 // pred_fallthru
          _
        // Predicated region
        $region41: #{lenet_forward.1} parent=11 // pred_check
          %p340 = pneg %p215
        $region42: #{lenet_forward.1} parent=11 // pred_check_branch
          %342 = sbr.rel (%p340) target = $region44
        $region43: #{lenet_forward.1} parent=11 // pred_region
          _
        $region44: #{lenet_forward.1} parent=11 // pred_fallthru
          _
        // Predicated region
        $region45: #{lenet_forward.1} parent=11 // pred_check
          %p343 = pneg %p236
        $region46: #{lenet_forward.1} parent=11 // pred_check_branch
          %345 = sbr.rel (%p343) target = $region48
        $region47: #{lenet_forward.1} parent=11 // pred_region
          _
        $region48: #{lenet_forward.1} parent=11 // pred_fallthru
          _
        // Predicated region
        $region49: #{lenet_forward.1} parent=11 // pred_check
          %p346 = pneg %p257
        $region50: #{lenet_forward.1} parent=11 // pred_check_branch
          %348 = sbr.rel (%p346) target = $region52
        $region51: #{lenet_forward.1} parent=11 // pred_region
          _
        $region52: #{lenet_forward.1} parent=11 // pred_fallthru
          _
        // Predicated region
        $region53: #{lenet_forward.1} parent=11 // pred_check
          %p349 = pneg %p278
        $region54: #{lenet_forward.1} parent=11 // pred_check_branch
          %351 = sbr.rel (%p349) target = $region56
        $region55: #{lenet_forward.1} parent=11 // pred_region
          _
        $region56: #{lenet_forward.1} parent=11 // pred_fallthru
          _
      $region12: #{lenet_forward.1} parent=5 // pred_fallthru
        _
      %p352 = scmp.lt.s32.totalorder %s21, 2
      // Predicated region
      $region57: #{lenet_forward.1} parent=5 // pred_check
        %p353 = pneg %p352
      $region58: #{lenet_forward.1} parent=5 // pred_check_branch
        %355 = sbr.rel (%p353) target = $region60
      $region59: #{lenet_forward.1} parent=5 // pred_region
        // Predicated region
        $region61: #{lenet_forward.1} parent=59 // pred_check
          %p356 = pneg %p41
        $region62: #{lenet_forward.1} parent=59 // pred_check_branch
          %358 = sbr.rel (%p356) target = $region64
        $region63: #{lenet_forward.1} parent=59 // pred_region
          %s359 = sand.u32 %s31, 1
          %s360 = sand.u32 %s31, 1
          %s361 = smul.addr %s360, 640
          %s362 = scalar_lea.vmem [#allocation3], %s361
          %s363 = smul.u32 8, %s21
          %s364 = smul.addr %s363, 8
          %s365 = scalar_lea.vmem %s0, %s364
          // Predicated region
          $region65: #{lenet_forward.1} parent=63 // pred_check
            _
          $region66: #{lenet_forward.1} parent=63 // pred_check_branch
            %367 = sbr.rel (0) target = $region68
          $region67: #{lenet_forward.1} parent=63 // pred_region
            // Predicated region
            $region69: #{lenet_forward.1} parent=67 // pred_check
              _
            $region70: #{lenet_forward.1} parent=67 // pred_check_branch
              %369 = sbr.rel (0) target = $region72
            $region71: #{lenet_forward.1} parent=67 // pred_region
              // Predicated region
              $region84: #{lenet_forward.1} parent=71 // pred_check
                _
              $region85: #{lenet_forward.1} parent=71 // pred_check_branch
                %542 = sbr.rel (0) target = $region87
              $region86: #{lenet_forward.1} parent=71 // pred_region
                loop: start=0, step=1, limit=1
                $region88: #{lenet_forward.1} parent=86 // loop_pre_header
                  _
                $region89: #{lenet_forward.1} parent=86 // loop_header
                  %s544 = sphi 0, %s548
                  %p545 = scmp.ge.s32.totalorder %s544, 1
                  %s549 = sphi %s365, %s365
                  %s550 = sphi %s362, %s362
                $region90: #{lenet_forward.1} parent=86 // loop_header_branch
                  %547 = sbr.rel (%p545) target = $region94
                $region91: #{lenet_forward.1} parent=86 // loop_body
                  %v551 = vld [vmem:[%s549] sm:$0xff]
                  %552 = vst [vmem:[%s550] sm:$0xff] %v551
                  %v553 = vld [vmem:[%s549 + $0x8] sm:$0xff]
                  %554 = vst [vmem:[%s550 + $0x8] sm:$0xff] %v553
                  %v555 = vld [vmem:[%s549 + $0x10] sm:$0xff]
                  %556 = vst [vmem:[%s550 + $0x10] sm:$0xff] %v555
                  %v557 = vld [vmem:[%s549 + $0x18] sm:$0xff]
                  %558 = vst [vmem:[%s550 + $0x18] sm:$0xff] %v557
                  %v559 = vld [vmem:[%s549 + $0x20] sm:$0xff]
                  %560 = vst [vmem:[%s550 + $0x20] sm:$0xff] %v559
                  %v561 = vld [vmem:[%s549 + $0x28] sm:$0xff]
                  %562 = vst [vmem:[%s550 + $0x28] sm:$0xff] %v561
                  %v563 = vld [vmem:[%s549 + $0x30] sm:$0xff]
                  %564 = vst [vmem:[%s550 + $0x30] sm:$0xff] %v563
                  %v565 = vld [vmem:[%s549 + $0x38] sm:$0xff]
                  %566 = vst [vmem:[%s550 + $0x38] sm:$0xff] %v565
                  %v567 = vld [vmem:[%s549 + $0x80] sm:$0xff]
                  %568 = vst [vmem:[%s550 + $0x40] sm:$0xff] %v567
                  %v569 = vld [vmem:[%s549 + $0x88] sm:$0xff]
                  %570 = vst [vmem:[%s550 + $0x48] sm:$0xff] %v569
                  %v571 = vld [vmem:[%s549 + $0x90] sm:$0xff]
                  %572 = vst [vmem:[%s550 + $0x50] sm:$0xff] %v571
                  %v573 = vld [vmem:[%s549 + $0x98] sm:$0xff]
                  %574 = vst [vmem:[%s550 + $0x58] sm:$0xff] %v573
                  %v575 = vld [vmem:[%s549 + $0xa0] sm:$0xff]
                  %576 = vst [vmem:[%s550 + $0x60] sm:$0xff] %v575
                  %v577 = vld [vmem:[%s549 + $0xa8] sm:$0xff]
                  %578 = vst [vmem:[%s550 + $0x68] sm:$0xff] %v577
                  %v579 = vld [vmem:[%s549 + $0xb0] sm:$0xff]
                  %580 = vst [vmem:[%s550 + $0x70] sm:$0xff] %v579
                  %v581 = vld [vmem:[%s549 + $0xb8] sm:$0xff]
                  %582 = vst [vmem:[%s550 + $0x78] sm:$0xff] %v581
                  %v583 = vld [vmem:[%s549 + $0x100] sm:$0xff]
                  %584 = vst [vmem:[%s550 + $0x80] sm:$0xff] %v583
                  %v585 = vld [vmem:[%s549 + $0x108] sm:$0xff]
                  %586 = vst [vmem:[%s550 + $0x88] sm:$0xff] %v585
                  %v587 = vld [vmem:[%s549 + $0x110] sm:$0xff]
                  %588 = vst [vmem:[%s550 + $0x90] sm:$0xff] %v587
                  %v589 = vld [vmem:[%s549 + $0x118] sm:$0xff]
                  %590 = vst [vmem:[%s550 + $0x98] sm:$0xff] %v589
                  %v591 = vld [vmem:[%s549 + $0x120] sm:$0xff]
                  %592 = vst [vmem:[%s550 + $0xa0] sm:$0xff] %v591
                  %v593 = vld [vmem:[%s549 + $0x128] sm:$0xff]
                  %594 = vst [vmem:[%s550 + $0xa8] sm:$0xff] %v593
                  %v595 = vld [vmem:[%s549 + $0x130] sm:$0xff]
                  %596 = vst [vmem:[%s550 + $0xb0] sm:$0xff] %v595
                  %v597 = vld [vmem:[%s549 + $0x138] sm:$0xff]
                  %598 = vst [vmem:[%s550 + $0xb8] sm:$0xff] %v597
                  %v599 = vld [vmem:[%s549 + $0x180] sm:$0xff]
                  %600 = vst [vmem:[%s550 + $0xc0] sm:$0xff] %v599
                  %v601 = vld [vmem:[%s549 + $0x188] sm:$0xff]
                  %602 = vst [vmem:[%s550 + $0xc8] sm:$0xff] %v601
                  %v603 = vld [vmem:[%s549 + $0x190] sm:$0xff]
                  %604 = vst [vmem:[%s550 + $0xd0] sm:$0xff] %v603
                  %v605 = vld [vmem:[%s549 + $0x198] sm:$0xff]
                  %606 = vst [vmem:[%s550 + $0xd8] sm:$0xff] %v605
                  %v607 = vld [vmem:[%s549 + $0x1a0] sm:$0xff]
                  %608 = vst [vmem:[%s550 + $0xe0] sm:$0xff] %v607
                  %v609 = vld [vmem:[%s549 + $0x1a8] sm:$0xff]
                  %610 = vst [vmem:[%s550 + $0xe8] sm:$0xff] %v609
                  %v611 = vld [vmem:[%s549 + $0x1b0] sm:$0xff]
                  %612 = vst [vmem:[%s550 + $0xf0] sm:$0xff] %v611
                  %v613 = vld [vmem:[%s549 + $0x1b8] sm:$0xff]
                  %614 = vst [vmem:[%s550 + $0xf8] sm:$0xff] %v613
                  %v615 = vld [vmem:[%s549 + $0x200] sm:$0xff]
                  %616 = vst [vmem:[%s550 + $0x100] sm:$0xff] %v615
                  %v617 = vld [vmem:[%s549 + $0x208] sm:$0xff]
                  %618 = vst [vmem:[%s550 + $0x108] sm:$0xff] %v617
                  %v619 = vld [vmem:[%s549 + $0x210] sm:$0xff]
                  %620 = vst [vmem:[%s550 + $0x110] sm:$0xff] %v619
                  %v621 = vld [vmem:[%s549 + $0x218] sm:$0xff]
                  %622 = vst [vmem:[%s550 + $0x118] sm:$0xff] %v621
                  %v623 = vld [vmem:[%s549 + $0x220] sm:$0xff]
                  %624 = vst [vmem:[%s550 + $0x120] sm:$0xff] %v623
                  %v625 = vld [vmem:[%s549 + $0x228] sm:$0xff]
                  %626 = vst [vmem:[%s550 + $0x128] sm:$0xff] %v625
                  %v627 = vld [vmem:[%s549 + $0x230] sm:$0xff]
                  %628 = vst [vmem:[%s550 + $0x130] sm:$0xff] %v627
                  %v629 = vld [vmem:[%s549 + $0x238] sm:$0xff]
                  %630 = vst [vmem:[%s550 + $0x138] sm:$0xff] %v629
                  %v631 = vld [vmem:[%s549 + $0x280] sm:$0xff]
                  %632 = vst [vmem:[%s550 + $0x140] sm:$0xff] %v631
                  %v633 = vld [vmem:[%s549 + $0x288] sm:$0xff]
                  %634 = vst [vmem:[%s550 + $0x148] sm:$0xff] %v633
                  %v635 = vld [vmem:[%s549 + $0x290] sm:$0xff]
                  %636 = vst [vmem:[%s550 + $0x150] sm:$0xff] %v635
                  %v637 = vld [vmem:[%s549 + $0x298] sm:$0xff]
                  %638 = vst [vmem:[%s550 + $0x158] sm:$0xff] %v637
                  %v639 = vld [vmem:[%s549 + $0x2a0] sm:$0xff]
                  %640 = vst [vmem:[%s550 + $0x160] sm:$0xff] %v639
                  %v641 = vld [vmem:[%s549 + $0x2a8] sm:$0xff]
                  %642 = vst [vmem:[%s550 + $0x168] sm:$0xff] %v641
                  %v643 = vld [vmem:[%s549 + $0x2b0] sm:$0xff]
                  %644 = vst [vmem:[%s550 + $0x170] sm:$0xff] %v643
                  %v645 = vld [vmem:[%s549 + $0x2b8] sm:$0xff]
                  %646 = vst [vmem:[%s550 + $0x178] sm:$0xff] %v645
                  %v647 = vld [vmem:[%s549 + $0x300] sm:$0xff]
                  %648 = vst [vmem:[%s550 + $0x180] sm:$0xff] %v647
                  %v649 = vld [vmem:[%s549 + $0x308] sm:$0xff]
                  %650 = vst [vmem:[%s550 + $0x188] sm:$0xff] %v649
                  %v651 = vld [vmem:[%s549 + $0x310] sm:$0xff]
                  %652 = vst [vmem:[%s550 + $0x190] sm:$0xff] %v651
                  %v653 = vld [vmem:[%s549 + $0x318] sm:$0xff]
                  %654 = vst [vmem:[%s550 + $0x198] sm:$0xff] %v653
                  %v655 = vld [vmem:[%s549 + $0x320] sm:$0xff]
                  %656 = vst [vmem:[%s550 + $0x1a0] sm:$0xff] %v655
                  %v657 = vld [vmem:[%s549 + $0x328] sm:$0xff]
                  %658 = vst [vmem:[%s550 + $0x1a8] sm:$0xff] %v657
                  %v659 = vld [vmem:[%s549 + $0x330] sm:$0xff]
                  %660 = vst [vmem:[%s550 + $0x1b0] sm:$0xff] %v659
                  %v661 = vld [vmem:[%s549 + $0x338] sm:$0xff]
                  %662 = vst [vmem:[%s550 + $0x1b8] sm:$0xff] %v661
                  %v663 = vld [vmem:[%s549 + $0x380] sm:$0xff]
                  %664 = vst [vmem:[%s550 + $0x1c0] sm:$0xff] %v663
                  %v665 = vld [vmem:[%s549 + $0x388] sm:$0xff]
                  %666 = vst [vmem:[%s550 + $0x1c8] sm:$0xff] %v665
                  %v667 = vld [vmem:[%s549 + $0x390] sm:$0xff]
                  %668 = vst [vmem:[%s550 + $0x1d0] sm:$0xff] %v667
                  %v669 = vld [vmem:[%s549 + $0x398] sm:$0xff]
                  %670 = vst [vmem:[%s550 + $0x1d8] sm:$0xff] %v669
                  %v671 = vld [vmem:[%s549 + $0x3a0] sm:$0xff]
                  %672 = vst [vmem:[%s550 + $0x1e0] sm:$0xff] %v671
                  %v673 = vld [vmem:[%s549 + $0x3a8] sm:$0xff]
                  %674 = vst [vmem:[%s550 + $0x1e8] sm:$0xff] %v673
                  %v675 = vld [vmem:[%s549 + $0x3b0] sm:$0xff]
                  %676 = vst [vmem:[%s550 + $0x1f0] sm:$0xff] %v675
                  %v677 = vld [vmem:[%s549 + $0x3b8] sm:$0xff]
                  %678 = vst [vmem:[%s550 + $0x1f8] sm:$0xff] %v677
                  %v679 = vld [vmem:[%s549 + $0x400] sm:$0xff]
                  %680 = vst [vmem:[%s550 + $0x200] sm:$0xff] %v679
                  %v681 = vld [vmem:[%s549 + $0x408] sm:$0xff]
                  %682 = vst [vmem:[%s550 + $0x208] sm:$0xff] %v681
                  %v683 = vld [vmem:[%s549 + $0x410] sm:$0xff]
                  %684 = vst [vmem:[%s550 + $0x210] sm:$0xff] %v683
                  %v685 = vld [vmem:[%s549 + $0x418] sm:$0xff]
                  %686 = vst [vmem:[%s550 + $0x218] sm:$0xff] %v685
                  %v687 = vld [vmem:[%s549 + $0x420] sm:$0xff]
                  %688 = vst [vmem:[%s550 + $0x220] sm:$0xff] %v687
                  %v689 = vld [vmem:[%s549 + $0x428] sm:$0xff]
                  %690 = vst [vmem:[%s550 + $0x228] sm:$0xff] %v689
                  %v691 = vld [vmem:[%s549 + $0x430] sm:$0xff]
                  %692 = vst [vmem:[%s550 + $0x230] sm:$0xff] %v691
                  %v693 = vld [vmem:[%s549 + $0x438] sm:$0xff]
                  %694 = vst [vmem:[%s550 + $0x238] sm:$0xff] %v693
                  %v695 = vld [vmem:[%s549 + $0x480] sm:$0xff]
                  %696 = vst [vmem:[%s550 + $0x240] sm:$0xff] %v695
                  %v697 = vld [vmem:[%s549 + $0x488] sm:$0xff]
                  %698 = vst [vmem:[%s550 + $0x248] sm:$0xff] %v697
                  %v699 = vld [vmem:[%s549 + $0x490] sm:$0xff]
                  %700 = vst [vmem:[%s550 + $0x250] sm:$0xff] %v699
                  %v701 = vld [vmem:[%s549 + $0x498] sm:$0xff]
                  %702 = vst [vmem:[%s550 + $0x258] sm:$0xff] %v701
                  %v703 = vld [vmem:[%s549 + $0x4a0] sm:$0xff]
                  %704 = vst [vmem:[%s550 + $0x260] sm:$0xff] %v703
                  %v705 = vld [vmem:[%s549 + $0x4a8] sm:$0xff]
                  %706 = vst [vmem:[%s550 + $0x268] sm:$0xff] %v705
                  %v707 = vld [vmem:[%s549 + $0x4b0] sm:$0xff]
                  %708 = vst [vmem:[%s550 + $0x270] sm:$0xff] %v707
                  %v709 = vld [vmem:[%s549 + $0x4b8] sm:$0xff]
                  %710 = vst [vmem:[%s550 + $0x278] sm:$0xff] %v709
                $region92: #{lenet_forward.1} parent=86 // loop_footer
                  %s548 = sadd.s32 1, %s544
                $region93: #{lenet_forward.1} parent=86 // loop_footer_branch
                  %543 = sbr.rel target = $region89
                $region94: #{lenet_forward.1} parent=86 // loop_exit
                  _
              $region87: #{lenet_forward.1} parent=71 // pred_fallthru
                _
              // Predicated region
              $region95: #{lenet_forward.1} parent=71 // pred_check
                _
              $region96: #{lenet_forward.1} parent=71 // pred_check_branch
                %712 = sbr.rel target = $region98
              $region97: #{lenet_forward.1} parent=71 // pred_region
                _
              $region98: #{lenet_forward.1} parent=71 // pred_fallthru
                _
            $region72: #{lenet_forward.1} parent=67 // pred_fallthru
              _
            // Predicated region
            $region73: #{lenet_forward.1} parent=67 // pred_check
              _
            $region74: #{lenet_forward.1} parent=67 // pred_check_branch
              %371 = sbr.rel target = $region76
            $region75: #{lenet_forward.1} parent=67 // pred_region
              loop: start=0, step=1, limit=1
              $region77: #{lenet_forward.1} parent=75 // loop_pre_header
                _
              $region78: #{lenet_forward.1} parent=75 // loop_header
                %s374 = sphi 0, %s378
                %p375 = scmp.ge.s32.totalorder %s374, 1
                %s379 = sphi %s365, %s365
                %s380 = sphi %s362, %s362
              $region79: #{lenet_forward.1} parent=75 // loop_header_branch
                %377 = sbr.rel (%p375) target = $region83
              $region80: #{lenet_forward.1} parent=75 // loop_body
                %v381 = vld [vmem:[%s379] sm:$0xff]
                %382 = vst [vmem:[%s380] sm:$0xff] %v381
                %v383 = vld [vmem:[%s379 + $0x8] sm:$0xff]
                %384 = vst [vmem:[%s380 + $0x8] sm:$0xff] %v383
                %v385 = vld [vmem:[%s379 + $0x10] sm:$0xff]
                %386 = vst [vmem:[%s380 + $0x10] sm:$0xff] %v385
                %v387 = vld [vmem:[%s379 + $0x18] sm:$0xff]
                %388 = vst [vmem:[%s380 + $0x18] sm:$0xff] %v387
                %v389 = vld [vmem:[%s379 + $0x20] sm:$0xff]
                %390 = vst [vmem:[%s380 + $0x20] sm:$0xff] %v389
                %v391 = vld [vmem:[%s379 + $0x28] sm:$0xff]
                %392 = vst [vmem:[%s380 + $0x28] sm:$0xff] %v391
                %v393 = vld [vmem:[%s379 + $0x30] sm:$0xff]
                %394 = vst [vmem:[%s380 + $0x30] sm:$0xff] %v393
                %v395 = vld [vmem:[%s379 + $0x38] sm:$0xff]
                %396 = vst [vmem:[%s380 + $0x38] sm:$0xff] %v395
                %v397 = vld [vmem:[%s379 + $0x80] sm:$0xff]
                %398 = vst [vmem:[%s380 + $0x40] sm:$0xff] %v397
                %v399 = vld [vmem:[%s379 + $0x88] sm:$0xff]
                %400 = vst [vmem:[%s380 + $0x48] sm:$0xff] %v399
                %v401 = vld [vmem:[%s379 + $0x90] sm:$0xff]
                %402 = vst [vmem:[%s380 + $0x50] sm:$0xff] %v401
                %v403 = vld [vmem:[%s379 + $0x98] sm:$0xff]
                %404 = vst [vmem:[%s380 + $0x58] sm:$0xff] %v403
                %v405 = vld [vmem:[%s379 + $0xa0] sm:$0xff]
                %406 = vst [vmem:[%s380 + $0x60] sm:$0xff] %v405
                %v407 = vld [vmem:[%s379 + $0xa8] sm:$0xff]
                %408 = vst [vmem:[%s380 + $0x68] sm:$0xff] %v407
                %v409 = vld [vmem:[%s379 + $0xb0] sm:$0xff]
                %410 = vst [vmem:[%s380 + $0x70] sm:$0xff] %v409
                %v411 = vld [vmem:[%s379 + $0xb8] sm:$0xff]
                %412 = vst [vmem:[%s380 + $0x78] sm:$0xff] %v411
                %v413 = vld [vmem:[%s379 + $0x100] sm:$0xff]
                %414 = vst [vmem:[%s380 + $0x80] sm:$0xff] %v413
                %v415 = vld [vmem:[%s379 + $0x108] sm:$0xff]
                %416 = vst [vmem:[%s380 + $0x88] sm:$0xff] %v415
                %v417 = vld [vmem:[%s379 + $0x110] sm:$0xff]
                %418 = vst [vmem:[%s380 + $0x90] sm:$0xff] %v417
                %v419 = vld [vmem:[%s379 + $0x118] sm:$0xff]
                %420 = vst [vmem:[%s380 + $0x98] sm:$0xff] %v419
                %v421 = vld [vmem:[%s379 + $0x120] sm:$0xff]
                %422 = vst [vmem:[%s380 + $0xa0] sm:$0xff] %v421
                %v423 = vld [vmem:[%s379 + $0x128] sm:$0xff]
                %424 = vst [vmem:[%s380 + $0xa8] sm:$0xff] %v423
                %v425 = vld [vmem:[%s379 + $0x130] sm:$0xff]
                %426 = vst [vmem:[%s380 + $0xb0] sm:$0xff] %v425
                %v427 = vld [vmem:[%s379 + $0x138] sm:$0xff]
                %428 = vst [vmem:[%s380 + $0xb8] sm:$0xff] %v427
                %v429 = vld [vmem:[%s379 + $0x180] sm:$0xff]
                %430 = vst [vmem:[%s380 + $0xc0] sm:$0xff] %v429
                %v431 = vld [vmem:[%s379 + $0x188] sm:$0xff]
                %432 = vst [vmem:[%s380 + $0xc8] sm:$0xff] %v431
                %v433 = vld [vmem:[%s379 + $0x190] sm:$0xff]
                %434 = vst [vmem:[%s380 + $0xd0] sm:$0xff] %v433
                %v435 = vld [vmem:[%s379 + $0x198] sm:$0xff]
                %436 = vst [vmem:[%s380 + $0xd8] sm:$0xff] %v435
                %v437 = vld [vmem:[%s379 + $0x1a0] sm:$0xff]
                %438 = vst [vmem:[%s380 + $0xe0] sm:$0xff] %v437
                %v439 = vld [vmem:[%s379 + $0x1a8] sm:$0xff]
                %440 = vst [vmem:[%s380 + $0xe8] sm:$0xff] %v439
                %v441 = vld [vmem:[%s379 + $0x1b0] sm:$0xff]
                %442 = vst [vmem:[%s380 + $0xf0] sm:$0xff] %v441
                %v443 = vld [vmem:[%s379 + $0x1b8] sm:$0xff]
                %444 = vst [vmem:[%s380 + $0xf8] sm:$0xff] %v443
                %v445 = vld [vmem:[%s379 + $0x200] sm:$0xff]
                %446 = vst [vmem:[%s380 + $0x100] sm:$0xff] %v445
                %v447 = vld [vmem:[%s379 + $0x208] sm:$0xff]
                %448 = vst [vmem:[%s380 + $0x108] sm:$0xff] %v447
                %v449 = vld [vmem:[%s379 + $0x210] sm:$0xff]
                %450 = vst [vmem:[%s380 + $0x110] sm:$0xff] %v449
                %v451 = vld [vmem:[%s379 + $0x218] sm:$0xff]
                %452 = vst [vmem:[%s380 + $0x118] sm:$0xff] %v451
                %v453 = vld [vmem:[%s379 + $0x220] sm:$0xff]
                %454 = vst [vmem:[%s380 + $0x120] sm:$0xff] %v453
                %v455 = vld [vmem:[%s379 + $0x228] sm:$0xff]
                %456 = vst [vmem:[%s380 + $0x128] sm:$0xff] %v455
                %v457 = vld [vmem:[%s379 + $0x230] sm:$0xff]
                %458 = vst [vmem:[%s380 + $0x130] sm:$0xff] %v457
                %v459 = vld [vmem:[%s379 + $0x238] sm:$0xff]
                %460 = vst [vmem:[%s380 + $0x138] sm:$0xff] %v459
                %v461 = vld [vmem:[%s379 + $0x280] sm:$0xff]
                %462 = vst [vmem:[%s380 + $0x140] sm:$0xff] %v461
                %v463 = vld [vmem:[%s379 + $0x288] sm:$0xff]
                %464 = vst [vmem:[%s380 + $0x148] sm:$0xff] %v463
                %v465 = vld [vmem:[%s379 + $0x290] sm:$0xff]
                %466 = vst [vmem:[%s380 + $0x150] sm:$0xff] %v465
                %v467 = vld [vmem:[%s379 + $0x298] sm:$0xff]
                %468 = vst [vmem:[%s380 + $0x158] sm:$0xff] %v467
                %v469 = vld [vmem:[%s379 + $0x2a0] sm:$0xff]
                %470 = vst [vmem:[%s380 + $0x160] sm:$0xff] %v469
                %v471 = vld [vmem:[%s379 + $0x2a8] sm:$0xff]
                %472 = vst [vmem:[%s380 + $0x168] sm:$0xff] %v471
                %v473 = vld [vmem:[%s379 + $0x2b0] sm:$0xff]
                %474 = vst [vmem:[%s380 + $0x170] sm:$0xff] %v473
                %v475 = vld [vmem:[%s379 + $0x2b8] sm:$0xff]
                %476 = vst [vmem:[%s380 + $0x178] sm:$0xff] %v475
                %v477 = vld [vmem:[%s379 + $0x300] sm:$0xff]
                %478 = vst [vmem:[%s380 + $0x180] sm:$0xff] %v477
                %v479 = vld [vmem:[%s379 + $0x308] sm:$0xff]
                %480 = vst [vmem:[%s380 + $0x188] sm:$0xff] %v479
                %v481 = vld [vmem:[%s379 + $0x310] sm:$0xff]
                %482 = vst [vmem:[%s380 + $0x190] sm:$0xff] %v481
                %v483 = vld [vmem:[%s379 + $0x318] sm:$0xff]
                %484 = vst [vmem:[%s380 + $0x198] sm:$0xff] %v483
                %v485 = vld [vmem:[%s379 + $0x320] sm:$0xff]
                %486 = vst [vmem:[%s380 + $0x1a0] sm:$0xff] %v485
                %v487 = vld [vmem:[%s379 + $0x328] sm:$0xff]
                %488 = vst [vmem:[%s380 + $0x1a8] sm:$0xff] %v487
                %v489 = vld [vmem:[%s379 + $0x330] sm:$0xff]
                %490 = vst [vmem:[%s380 + $0x1b0] sm:$0xff] %v489
                %v491 = vld [vmem:[%s379 + $0x338] sm:$0xff]
                %492 = vst [vmem:[%s380 + $0x1b8] sm:$0xff] %v491
                %v493 = vld [vmem:[%s379 + $0x380] sm:$0xff]
                %494 = vst [vmem:[%s380 + $0x1c0] sm:$0xff] %v493
                %v495 = vld [vmem:[%s379 + $0x388] sm:$0xff]
                %496 = vst [vmem:[%s380 + $0x1c8] sm:$0xff] %v495
                %v497 = vld [vmem:[%s379 + $0x390] sm:$0xff]
                %498 = vst [vmem:[%s380 + $0x1d0] sm:$0xff] %v497
                %v499 = vld [vmem:[%s379 + $0x398] sm:$0xff]
                %500 = vst [vmem:[%s380 + $0x1d8] sm:$0xff] %v499
                %v501 = vld [vmem:[%s379 + $0x3a0] sm:$0xff]
                %502 = vst [vmem:[%s380 + $0x1e0] sm:$0xff] %v501
                %v503 = vld [vmem:[%s379 + $0x3a8] sm:$0xff]
                %504 = vst [vmem:[%s380 + $0x1e8] sm:$0xff] %v503
                %v505 = vld [vmem:[%s379 + $0x3b0] sm:$0xff]
                %506 = vst [vmem:[%s380 + $0x1f0] sm:$0xff] %v505
                %v507 = vld [vmem:[%s379 + $0x3b8] sm:$0xff]
                %508 = vst [vmem:[%s380 + $0x1f8] sm:$0xff] %v507
                %v509 = vld [vmem:[%s379 + $0x400] sm:$0xff]
                %510 = vst [vmem:[%s380 + $0x200] sm:$0xff] %v509
                %v511 = vld [vmem:[%s379 + $0x408] sm:$0xff]
                %512 = vst [vmem:[%s380 + $0x208] sm:$0xff] %v511
                %v513 = vld [vmem:[%s379 + $0x410] sm:$0xff]
                %514 = vst [vmem:[%s380 + $0x210] sm:$0xff] %v513
                %v515 = vld [vmem:[%s379 + $0x418] sm:$0xff]
                %516 = vst [vmem:[%s380 + $0x218] sm:$0xff] %v515
                %v517 = vld [vmem:[%s379 + $0x420] sm:$0xff]
                %518 = vst [vmem:[%s380 + $0x220] sm:$0xff] %v517
                %v519 = vld [vmem:[%s379 + $0x428] sm:$0xff]
                %520 = vst [vmem:[%s380 + $0x228] sm:$0xff] %v519
                %v521 = vld [vmem:[%s379 + $0x430] sm:$0xff]
                %522 = vst [vmem:[%s380 + $0x230] sm:$0xff] %v521
                %v523 = vld [vmem:[%s379 + $0x438] sm:$0xff]
                %524 = vst [vmem:[%s380 + $0x238] sm:$0xff] %v523
                %v525 = vld [vmem:[%s379 + $0x480] sm:$0xff]
                %526 = vst [vmem:[%s380 + $0x240] sm:$0xff] %v525
                %v527 = vld [vmem:[%s379 + $0x488] sm:$0xff]
                %528 = vst [vmem:[%s380 + $0x248] sm:$0xff] %v527
                %v529 = vld [vmem:[%s379 + $0x490] sm:$0xff]
                %530 = vst [vmem:[%s380 + $0x250] sm:$0xff] %v529
                %v531 = vld [vmem:[%s379 + $0x498] sm:$0xff]
                %532 = vst [vmem:[%s380 + $0x258] sm:$0xff] %v531
                %v533 = vld [vmem:[%s379 + $0x4a0] sm:$0xff]
                %534 = vst [vmem:[%s380 + $0x260] sm:$0xff] %v533
                %v535 = vld [vmem:[%s379 + $0x4a8] sm:$0xff]
                %536 = vst [vmem:[%s380 + $0x268] sm:$0xff] %v535
                %v537 = vld [vmem:[%s379 + $0x4b0] sm:$0xff]
                %538 = vst [vmem:[%s380 + $0x270] sm:$0xff] %v537
                %v539 = vld [vmem:[%s379 + $0x4b8] sm:$0xff]
                %540 = vst [vmem:[%s380 + $0x278] sm:$0xff] %v539
              $region81: #{lenet_forward.1} parent=75 // loop_footer
                %s378 = sadd.s32 1, %s374
              $region82: #{lenet_forward.1} parent=75 // loop_footer_branch
                %373 = sbr.rel target = $region78
              $region83: #{lenet_forward.1} parent=75 // loop_exit
                _
            $region76: #{lenet_forward.1} parent=67 // pred_fallthru
              _
          $region68: #{lenet_forward.1} parent=63 // pred_fallthru
            _
          %713 = vnop
        $region64: #{lenet_forward.1} parent=59 // pred_fallthru
          _
      $region60: #{lenet_forward.1} parent=5 // pred_fallthru
        _
      %p714 = scmp.le.s32.totalorder 1, %s21
      %p715 = scmp.lt.s32.totalorder %s21, 3
      %p716 = pnand %p714, %p715
      %p717 = pneg %p716
      // Predicated region
      $region99: #{lenet_forward.1} parent=5 // pred_check
        _
      $region100: #{lenet_forward.1} parent=5 // pred_check_branch
        %719 = sbr.rel (%p716) target = $region102
      $region101: #{lenet_forward.1} parent=5 // pred_region
        %s720 = ssub.s32 %s21, 1
        %s721 = sand.u32 %s34, 1
        %s722 = sand.u32 %s34, 1
        %s723 = smul.addr %s722, 640
        %s724 = scalar_lea.vmem [#allocation3], %s723
        // Predicated region
        $region103: #{lenet_forward.1} parent=101 // pred_check
          %p725 = pneg %p47
        $region104: #{lenet_forward.1} parent=101 // pred_check_branch
          %727 = sbr.rel (%p725) target = $region106
        $region105: #{lenet_forward.1} parent=101 // pred_region
          _
        $region106: #{lenet_forward.1} parent=101 // pred_fallthru
          _
        %s728 = sand.u32 %s34, 1
        %s729 = sand.u32 %s34, 1
        %s730 = smul.addr %s729, 640
        %s731 = scalar_lea.vmem [#allocation3], %s730
        %p732 = pneg %p47
        %p733 = pneg %p44
        %p734 = pneg %p68
        %p735 = pneg %p65
        %p736 = pneg %p89
        %p737 = pneg %p86
        %p738 = pneg %p110
        %p739 = pneg %p107
        %p740 = pneg %p131
        %p741 = pneg %p128
        %p742 = pneg %p152
        %p743 = pneg %p149
        %p744 = pneg %p173
        %p745 = pneg %p170
        %p746 = pneg %p194
        %p747 = pneg %p191
        %p748 = pneg %p215
        %p749 = pneg %p212
        %p750 = pneg %p236
        %p751 = pneg %p233
        %p752 = pneg %p257
        %p753 = pneg %p254
        %p754 = pneg %p278
        %p755 = pneg %p275
        %p756 = pneg %p304
        %p757 = pneg %p301
        %s758 = sand.u32 %s291, 1
        %s759 = scalar_lea.sflag [#allocation5], %s758
        %s760 = sand.u32 %s291, 1
        %s761 = smul.addr %s760, 4
        %s762 = scalar_lea.vmem [#allocation4], %s761
        %s763 = smul.u32 8, %s26
        %v764 = vld [vmem:[%s724] sm:$0xff]
        %v765 = vld [vmem:[%s724 + $0x8] sm:$0xff]
        %v766 = vld [vmem:[%s724 + $0x10] sm:$0xff]
        %v767 = vld [vmem:[%s724 + $0x18] sm:$0xff]
        %v768 = vld [vmem:[%s724 + $0x20] sm:$0xff]
        %v769 = vld [vmem:[%s724 + $0x28] sm:$0xff]
        %v770 = vld [vmem:[%s724 + $0x30] sm:$0xff]
        %v771 = vld [vmem:[%s724 + $0x38] sm:$0xff]
        %v772 = vld [vmem:[%s1] sm:$0xff]
        %v773 = vld [vmem:[%s1 + $0x8] sm:$0xff]
        %v774 = vld [vmem:[%s1 + $0x10] sm:$0xff]
        %v775 = vld [vmem:[%s1 + $0x18] sm:$0xff]
        %v776 = vld [vmem:[%s1 + $0x20] sm:$0xff]
        %v777 = vld [vmem:[%s1 + $0x28] sm:$0xff]
        %v778 = vld [vmem:[%s1 + $0x30] sm:$0xff]
        %v779 = vld [vmem:[%s1 + $0x38] sm:$0xff]
        %v780 = vld [vmem:[%s1 + $0x40] sm:$0xff]
        %v781 = vld [vmem:[%s1 + $0x48] sm:$0xff]
        %v782 = vld [vmem:[%s1 + $0x50] sm:$0xff]
        %v783 = vld [vmem:[%s1 + $0x58] sm:$0xff]
        %v784 = vld [vmem:[%s1 + $0x60] sm:$0xff]
        %v785 = vld [vmem:[%s1 + $0x68] sm:$0xff]
        %v786 = vld [vmem:[%s1 + $0x70] sm:$0xff]
        %v787 = vld [vmem:[%s1 + $0x78] sm:$0xff]
        %v788 = vld [vmem:[%s1 + $0x80] sm:$0xff]
        %v789 = vld [vmem:[%s1 + $0x88] sm:$0xff]
        %v790 = vld [vmem:[%s1 + $0x90] sm:$0xff]
        %v791 = vld [vmem:[%s1 + $0x98] sm:$0xff]
        %v792 = vld [vmem:[%s1 + $0xa0] sm:$0xff]
        %v793 = vld [vmem:[%s1 + $0xa8] sm:$0xff]
        %v794 = vld [vmem:[%s1 + $0xb0] sm:$0xff]
        %v795 = vld [vmem:[%s1 + $0xb8] sm:$0xff]
        %s796 = scalar_lea.vmem %s724, 64 [#allocation3]
        %v797 = vld [vmem:[%s796] sm:$0xff]
        %v798 = vld [vmem:[%s796 + $0x8] sm:$0xff]
        %v799 = vld [vmem:[%s796 + $0x10] sm:$0xff]
        %v800 = vld [vmem:[%s796 + $0x18] sm:$0xff]
        %v801 = vld [vmem:[%s796 + $0x20] sm:$0xff]
        %v802 = vld [vmem:[%s796 + $0x28] sm:$0xff]
        %v803 = vld [vmem:[%s796 + $0x30] sm:$0xff]
        %v804 = vld [vmem:[%s796 + $0x38] sm:$0xff]
        %s805 = scalar_lea.vmem %s724, 128 [#allocation3]
        %v806 = vld [vmem:[%s805] sm:$0xff]
        %v807 = vld [vmem:[%s805 + $0x8] sm:$0xff]
        %v808 = vld [vmem:[%s805 + $0x10] sm:$0xff]
        %v809 = vld [vmem:[%s805 + $0x18] sm:$0xff]
        %v810 = vld [vmem:[%s805 + $0x20] sm:$0xff]
        %v811 = vld [vmem:[%s805 + $0x28] sm:$0xff]
        %v812 = vld [vmem:[%s805 + $0x30] sm:$0xff]
        %v813 = vld [vmem:[%s805 + $0x38] sm:$0xff]
        %s814 = scalar_lea.vmem %s1, 192
        %v815 = vld [vmem:[%s814] sm:$0xff]
        %v816 = vld [vmem:[%s814 + $0x8] sm:$0xff]
        %v817 = vld [vmem:[%s814 + $0x10] sm:$0xff]
        %v818 = vld [vmem:[%s814 + $0x18] sm:$0xff]
        %v819 = vld [vmem:[%s814 + $0x20] sm:$0xff]
        %v820 = vld [vmem:[%s814 + $0x28] sm:$0xff]
        %v821 = vld [vmem:[%s814 + $0x30] sm:$0xff]
        %v822 = vld [vmem:[%s814 + $0x38] sm:$0xff]
        %v823 = vld [vmem:[%s814 + $0x40] sm:$0xff]
        %v824 = vld [vmem:[%s814 + $0x48] sm:$0xff]
        %v825 = vld [vmem:[%s814 + $0x50] sm:$0xff]
        %v826 = vld [vmem:[%s814 + $0x58] sm:$0xff]
        %v827 = vld [vmem:[%s814 + $0x60] sm:$0xff]
        %v828 = vld [vmem:[%s814 + $0x68] sm:$0xff]
        %v829 = vld [vmem:[%s814 + $0x70] sm:$0xff]
        %v830 = vld [vmem:[%s814 + $0x78] sm:$0xff]
        %v831 = vld [vmem:[%s814 + $0x80] sm:$0xff]
        %v832 = vld [vmem:[%s814 + $0x88] sm:$0xff]
        %v833 = vld [vmem:[%s814 + $0x90] sm:$0xff]
        %v834 = vld [vmem:[%s814 + $0x98] sm:$0xff]
        %v835 = vld [vmem:[%s814 + $0xa0] sm:$0xff]
        %v836 = vld [vmem:[%s814 + $0xa8] sm:$0xff]
        %v837 = vld [vmem:[%s814 + $0xb0] sm:$0xff]
        %v838 = vld [vmem:[%s814 + $0xb8] sm:$0xff]
        %vm839 = vcmask 785408
        %v841 = vsel %vm839, %v806, 0
        %v844 = vsel %vm839, %v807, 0
        %v847 = vsel %vm839, %v808, 0
        %v850 = vsel %vm839, %v809, 0
        %v853 = vsel %vm839, %v810, 0
        %v856 = vsel %vm839, %v811, 0
        %v859 = vsel %vm839, %v812, 0
        %v862 = vsel %vm839, %v813, 0
        %864 = vmatprep.subr.mxu0 %v816
        %865 = vmatpush1.msra.mxu0 %v815
        %866 = vmatprep.subr.mxu0 %v818
        %867 = vmatpush1.msra.mxu0 %v817
        %868 = vmatprep.subr.mxu0 %v820
        %869 = vmatpush1.msra.mxu0 %v819
        %870 = vmatprep.subr.mxu0 %v822
        %871 = vmatpush1.msra.mxu0 %v821
        %872 = vmatprep.subr.mxu0 %v824
        %873 = vmatpush1.msra.mxu0 %v823
        %874 = vmatprep.subr.mxu0 %v826
        %875 = vmatpush1.msra.mxu0 %v825
        %876 = vmatprep.subr.mxu0 %v828
        %877 = vmatpush1.msra.mxu0 %v827
        %878 = vmatprep.subr.mxu0 %v830
        %879 = vmatpush1.msra.mxu0 %v829
        %880 = vmatprep.subr.mxu0 %v832
        %881 = vmatpush1.msra.mxu0 %v831
        %882 = vmatprep.subr.mxu0 %v834
        %883 = vmatpush1.msra.mxu0 %v833
        %884 = vmatprep.subr.mxu0 %v836
        %885 = vmatpush1.msra.mxu0 %v835
        %886 = vmatprep.subr.mxu0 %v838
        %887 = vmatpush1.msra.mxu0 %v837
        %888 = vmatprep.subr.mxu0 0.0
        %889 = vmatpush1.msra.mxu0 0.0
        %890 = vmatprep.subr.mxu0 0.0
        %891 = vmatpush1.msra.mxu0 0.0
        %892 = vmatprep.subr.mxu0 0.0
        %893 = vmatpush1.msra.mxu0 0.0
        %894 = vmatprep.subr.mxu0 0.0
        %895 = vmatpush1.msra.mxu0 0.0
        %896 = vmatprep.subr.mxu0 0.0
        %897 = vmatpush1.msra.mxu0 0.0
        %898 = vmatprep.subr.mxu0 0.0
        %899 = vmatpush1.msra.mxu0 0.0
        %900 = vmatprep.subr.mxu0 0.0
        %901 = vmatpush1.msra.mxu0 0.0
        %902 = vmatprep.subr.mxu0 0.0
        %903 = vmatpush1.msra.mxu0 0.0
        %904 = vmatprep.subr.mxu0 0.0
        %905 = vmatpush1.msra.mxu0 0.0
        %906 = vmatprep.subr.mxu0 0.0
        %907 = vmatpush1.msra.mxu0 0.0
        %908 = vmatprep.subr.mxu0 0.0
        %909 = vmatpush1.msra.mxu0 0.0
        %910 = vmatprep.subr.mxu0 0.0
        %911 = vmatpush1.msra.mxu0 0.0
        %912 = vmatprep.subr.mxu0 0.0
        %913 = vmatpush1.msra.mxu0 0.0
        %914 = vmatprep.subr.mxu0 0.0
        %915 = vmatpush1.msra.mxu0 0.0
        %916 = vmatprep.subr.mxu0 0.0
        %917 = vmatpush1.msra.mxu0 0.0
        %918 = vmatprep.subr.mxu0 0.0
        %919 = vmatpush1.msra.mxu0 0.0
        %920 = vmatprep.subr.mxu0 0.0
        %921 = vmatpush1.msra.mxu0 0.0
        %922 = vmatprep.subr.mxu0 0.0
        %923 = vmatpush1.msra.mxu0 0.0
        %924 = vmatprep.subr.mxu0 0.0
        %925 = vmatpush1.msra.mxu0 0.0
        %926 = vmatprep.subr.mxu0 0.0
        %927 = vmatpush1.msra.mxu0 0.0
        %928 = vmatprep.mubr.f32.mxu0 0.0
        %929 = vmatmul.mubr.f32.gmra.mrb[0].mxu0 %v841
        %v930 = vpop.f32.mrb[0].mxu0
        %v931 = vadd.f32 0.0, %v930
        %v932 = vpop.f32.mrb[0].mxu0
        %v933 = vadd.f32 0.0, %v932
        %934 = vmatprep.mubr.f32.mxu0 0.0
        %935 = vmatmul.mubr.f32.gmra.mrb[0].mxu0 %v844
        %v936 = vpop.f32.mrb[0].mxu0
        %v937 = vadd.f32 0.0, %v936
        %v938 = vpop.f32.mrb[0].mxu0
        %v939 = vadd.f32 0.0, %v938
        %940 = vmatprep.mubr.f32.mxu0 0.0
        %941 = vmatmul.mubr.f32.gmra.mrb[0].mxu0 %v847
        %v942 = vpop.f32.mrb[0].mxu0
        %v943 = vadd.f32 0.0, %v942
        %v944 = vpop.f32.mrb[0].mxu0
        %v945 = vadd.f32 0.0, %v944
        %946 = vmatprep.mubr.f32.mxu0 0.0
        %947 = vmatmul.mubr.f32.gmra.mrb[0].mxu0 %v850
        %v948 = vpop.f32.mrb[0].mxu0
        %v949 = vadd.f32 0.0, %v948
        %v950 = vpop.f32.mrb[0].mxu0
        %v951 = vadd.f32 0.0, %v950
        %952 = vmatprep.mubr.f32.mxu0 0.0
        %953 = vmatmul.mubr.f32.gmra.mrb[0].mxu0 %v853
        %v954 = vpop.f32.mrb[0].mxu0
        %v955 = vadd.f32 0.0, %v954
        %v956 = vpop.f32.mrb[0].mxu0
        %v957 = vadd.f32 0.0, %v956
        %958 = vmatprep.mubr.f32.mxu0 0.0
        %959 = vmatmul.mubr.f32.gmra.mrb[0].mxu0 %v856
        %v960 = vpop.f32.mrb[0].mxu0
        %v961 = vadd.f32 0.0, %v960
        %v962 = vpop.f32.mrb[0].mxu0
        %v963 = vadd.f32 0.0, %v962
        %964 = vmatprep.mubr.f32.mxu0 0.0
        %965 = vmatmul.mubr.f32.gmra.mrb[0].mxu0 %v859
        %v966 = vpop.f32.mrb[0].mxu0
        %v967 = vadd.f32 0.0, %v966
        %v968 = vpop.f32.mrb[0].mxu0
        %v969 = vadd.f32 0.0, %v968
        %970 = vmatprep.mubr.f32.mxu0 0.0
        %971 = vmatmul.mubr.f32.gmra.mrb[0].mxu0 %v862
        %v972 = vpop.f32.mrb[0].mxu0
        %v973 = vadd.f32 0.0, %v972
        %v974 = vpop.f32.mrb[0].mxu0
        %v975 = vadd.f32 0.0, %v974
        %976 = vdwg.mxu0
        %v978 = vsel %vm839, %v764, 0
        %v981 = vsel %vm839, %v765, 0
        %v984 = vsel %vm839, %v766, 0
        %v987 = vsel %vm839, %v767, 0
        %v990 = vsel %vm839, %v768, 0
        %v993 = vsel %vm839, %v769, 0
        %v996 = vsel %vm839, %v770, 0
        %v999 = vsel %vm839, %v771, 0
        %1001 = vmatprep.subr.mxu0 %v773
        %1002 = vmatpush1.msra.mxu0 %v772
        %1003 = vmatprep.subr.mxu0 %v775
        %1004 = vmatpush1.msra.mxu0 %v774
        %1005 = vmatprep.subr.mxu0 %v777
        %1006 = vmatpush1.msra.mxu0 %v776
        %1007 = vmatprep.subr.mxu0 %v779
        %1008 = vmatpush1.msra.mxu0 %v778
        %1009 = vmatprep.subr.mxu0 %v781
        %1010 = vmatpush1.msra.mxu0 %v780
        %1011 = vmatprep.subr.mxu0 %v783
        %1012 = vmatpush1.msra.mxu0 %v782
        %1013 = vmatprep.subr.mxu0 %v785
        %1014 = vmatpush1.msra.mxu0 %v784
        %1015 = vmatprep.subr.mxu0 %v787
        %1016 = vmatpush1.msra.mxu0 %v786
        %1017 = vmatprep.subr.mxu0 %v789
        %1018 = vmatpush1.msra.mxu0 %v788
        %1019 = vmatprep.subr.mxu0 %v791
        %1020 = vmatpush1.msra.mxu0 %v790
        %1021 = vmatprep.subr.mxu0 %v793
        %1022 = vmatpush1.msra.mxu0 %v792
        %1023 = vmatprep.subr.mxu0 %v795
        %1024 = vmatpush1.msra.mxu0 %v794
        %1025 = vmatprep.subr.mxu0 0.0
        %1026 = vmatpush1.msra.mxu0 0.0
        %1027 = vmatprep.subr.mxu0 0.0
        %1028 = vmatpush1.msra.mxu0 0.0
        %1029 = vmatprep.subr.mxu0 0.0
        %1030 = vmatpush1.msra.mxu0 0.0
        %1031 = vmatprep.subr.mxu0 0.0
        %1032 = vmatpush1.msra.mxu0 0.0
        %1033 = vmatprep.subr.mxu0 0.0
        %1034 = vmatpush1.msra.mxu0 0.0
        %1035 = vmatprep.subr.mxu0 0.0
        %1036 = vmatpush1.msra.mxu0 0.0
        %1037 = vmatprep.subr.mxu0 0.0
        %1038 = vmatpush1.msra.mxu0 0.0
        %1039 = vmatprep.subr.mxu0 0.0
        %1040 = vmatpush1.msra.mxu0 0.0
        %1041 = vmatprep.subr.mxu0 0.0
        %1042 = vmatpush1.msra.mxu0 0.0
        %1043 = vmatprep.subr.mxu0 0.0
        %1044 = vmatpush1.msra.mxu0 0.0
        %1045 = vmatprep.subr.mxu0 0.0
        %1046 = vmatpush1.msra.mxu0 0.0
        %1047 = vmatprep.subr.mxu0 0.0
        %1048 = vmatpush1.msra.mxu0 0.0
        %1049 = vmatprep.subr.mxu0 0.0
        %1050 = vmatpush1.msra.mxu0 0.0
        %1051 = vmatprep.subr.mxu0 0.0
        %1052 = vmatpush1.msra.mxu0 0.0
        %1053 = vmatprep.subr.mxu0 0.0
        %1054 = vmatpush1.msra.mxu0 0.0
        %1055 = vmatprep.subr.mxu0 0.0
        %1056 = vmatpush1.msra.mxu0 0.0
        %1057 = vmatprep.subr.mxu0 0.0
        %1058 = vmatpush1.msra.mxu0 0.0
        %1059 = vmatprep.subr.mxu0 0.0
        %1060 = vmatpush1.msra.mxu0 0.0
        %1061 = vmatprep.subr.mxu0 0.0
        %1062 = vmatpush1.msra.mxu0 0.0
        %1063 = vmatprep.subr.mxu0 0.0
        %1064 = vmatpush1.msra.mxu0 0.0
        %1065 = vmatprep.mubr.f32.mxu0 0.0
        %1066 = vmatmul.mubr.f32.gmra.mrb[0].mxu0 %v978
        %v1067 = vpop.f32.mrb[0].mxu0
        %v1068 = vadd.f32 %v931, %v1067
        %v1069 = vpop.f32.mrb[0].mxu0
        %v1070 = vadd.f32 %v933, %v1069
        %1071 = vmatprep.mubr.f32.mxu0 0.0
        %1072 = vmatmul.mubr.f32.gmra.mrb[0].mxu0 %v981
        %v1073 = vpop.f32.mrb[0].mxu0
        %v1074 = vadd.f32 %v937, %v1073
        %v1075 = vpop.f32.mrb[0].mxu0
        %v1076 = vadd.f32 %v939, %v1075
        %1077 = vmatprep.mubr.f32.mxu0 0.0
        %1078 = vmatmul.mubr.f32.gmra.mrb[0].mxu0 %v984
        %v1079 = vpop.f32.mrb[0].mxu0
        %v1080 = vadd.f32 %v943, %v1079
        %v1081 = vpop.f32.mrb[0].mxu0
        %v1082 = vadd.f32 %v945, %v1081
        %1083 = vmatprep.mubr.f32.mxu0 0.0
        %1084 = vmatmul.mubr.f32.gmra.mrb[0].mxu0 %v987
        %v1085 = vpop.f32.mrb[0].mxu0
        %v1086 = vadd.f32 %v949, %v1085
        %v1087 = vpop.f32.mrb[0].mxu0
        %v1088 = vadd.f32 %v951, %v1087
        %1089 = vmatprep.mubr.f32.mxu0 0.0
        %1090 = vmatmul.mubr.f32.gmra.mrb[0].mxu0 %v990
        %v1091 = vpop.f32.mrb[0].mxu0
        %v1092 = vadd.f32 %v955, %v1091
        %v1093 = vpop.f32.mrb[0].mxu0
        %v1094 = vadd.f32 %v957, %v1093
        %1095 = vmatprep.mubr.f32.mxu0 0.0
        %1096 = vmatmul.mubr.f32.gmra.mrb[0].mxu0 %v993
        %v1097 = vpop.f32.mrb[0].mxu0
        %v1098 = vadd.f32 %v961, %v1097
        %v1099 = vpop.f32.mrb[0].mxu0
        %v1100 = vadd.f32 %v963, %v1099
        %1101 = vmatprep.mubr.f32.mxu0 0.0
        %1102 = vmatmul.mubr.f32.gmra.mrb[0].mxu0 %v996
        %v1103 = vpop.f32.mrb[0].mxu0
        %v1104 = vadd.f32 %v967, %v1103
        %v1105 = vpop.f32.mrb[0].mxu0
        %v1106 = vadd.f32 %v969, %v1105
        %1107 = vmatprep.mubr.f32.mxu0 0.0
        %1108 = vmatmul.mubr.f32.gmra.mrb[0].mxu0 %v999
        %v1109 = vpop.f32.mrb[0].mxu0
        %v1110 = vadd.f32 %v973, %v1109
        %v1111 = vpop.f32.mrb[0].mxu0
        %v1112 = vadd.f32 %v975, %v1111
        %1113 = vdwg.mxu0
        %s1114 = scalar_lea.vmem %s724, 192 [#allocation3]
        %v1115 = vld [vmem:[%s1114] sm:$0xff]
        %v1116 = vld [vmem:[%s1114 + $0x8] sm:$0xff]
        %v1117 = vld [vmem:[%s1114 + $0x10] sm:$0xff]
        %v1118 = vld [vmem:[%s1114 + $0x18] sm:$0xff]
        %v1119 = vld [vmem:[%s1114 + $0x20] sm:$0xff]
        %v1120 = vld [vmem:[%s1114 + $0x28] sm:$0xff]
        %v1121 = vld [vmem:[%s1114 + $0x30] sm:$0xff]
        %v1122 = vld [vmem:[%s1114 + $0x38] sm:$0xff]
        %v1124 = vsel %vm839, %v1115, 0
        %v1127 = vsel %vm839, %v1116, 0
        %v1130 = vsel %vm839, %v1117, 0
        %v1133 = vsel %vm839, %v1118, 0
        %v1136 = vsel %vm839, %v1119, 0
        %v1139 = vsel %vm839, %v1120, 0
        %v1142 = vsel %vm839, %v1121, 0
        %v1145 = vsel %vm839, %v1122, 0
        %1147 = vmatprep.subr.mxu0 %v816
        %1148 = vmatpush1.msra.mxu0 %v815
        %1149 = vmatprep.subr.mxu0 %v818
        %1150 = vmatpush1.msra.mxu0 %v817
        %1151 = vmatprep.subr.mxu0 %v820
        %1152 = vmatpush1.msra.mxu0 %v819
        %1153 = vmatprep.subr.mxu0 %v822
        %1154 = vmatpush1.msra.mxu0 %v821
        %1155 = vmatprep.subr.mxu0 %v824
        %1156 = vmatpush1.msra.mxu0 %v823
        %1157 = vmatprep.subr.mxu0 %v826
        %1158 = vmatpush1.msra.mxu0 %v825
        %1159 = vmatprep.subr.mxu0 %v828
        %1160 = vmatpush1.msra.mxu0 %v827
        %1161 = vmatprep.subr.mxu0 %v830
        %1162 = vmatpush1.msra.mxu0 %v829
        %1163 = vmatprep.subr.mxu0 %v832
        %1164 = vmatpush1.msra.mxu0 %v831
        %1165 = vmatprep.subr.mxu0 %v834
        %1166 = vmatpush1.msra.mxu0 %v833
        %1167 = vmatprep.subr.mxu0 %v836
        %1168 = vmatpush1.msra.mxu0 %v835
        %1169 = vmatprep.subr.mxu0 %v838
        %1170 = vmatpush1.msra.mxu0 %v837
        %1171 = vmatprep.subr.mxu0 0.0
        %1172 = vmatpush1.msra.mxu0 0.0
        %1173 = vmatprep.subr.mxu0 0.0
        %1174 = vmatpush1.msra.mxu0 0.0
        %1175 = vmatprep.subr.mxu0 0.0
        %1176 = vmatpush1.msra.mxu0 0.0
        %1177 = vmatprep.subr.mxu0 0.0
        %1178 = vmatpush1.msra.mxu0 0.0
        %1179 = vmatprep.subr.mxu0 0.0
        %1180 = vmatpush1.msra.mxu0 0.0
        %1181 = vmatprep.subr.mxu0 0.0
        %1182 = vmatpush1.msra.mxu0 0.0
        %1183 = vmatprep.subr.mxu0 0.0
        %1184 = vmatpush1.msra.mxu0 0.0
        %1185 = vmatprep.subr.mxu0 0.0
        %1186 = vmatpush1.msra.mxu0 0.0
        %1187 = vmatprep.subr.mxu0 0.0
        %1188 = vmatpush1.msra.mxu0 0.0
        %1189 = vmatprep.subr.mxu0 0.0
        %1190 = vmatpush1.msra.mxu0 0.0
        %1191 = vmatprep.subr.mxu0 0.0
        %1192 = vmatpush1.msra.mxu0 0.0
        %1193 = vmatprep.subr.mxu0 0.0
        %1194 = vmatpush1.msra.mxu0 0.0
        %1195 = vmatprep.subr.mxu0 0.0
        %1196 = vmatpush1.msra.mxu0 0.0
        %1197 = vmatprep.subr.mxu0 0.0
        %1198 = vmatpush1.msra.mxu0 0.0
        %1199 = vmatprep.subr.mxu0 0.0
        %1200 = vmatpush1.msra.mxu0 0.0
        %1201 = vmatprep.subr.mxu0 0.0
        %1202 = vmatpush1.msra.mxu0 0.0
        %1203 = vmatprep.subr.mxu0 0.0
        %1204 = vmatpush1.msra.mxu0 0.0
        %1205 = vmatprep.subr.mxu0 0.0
        %1206 = vmatpush1.msra.mxu0 0.0
        %1207 = vmatprep.subr.mxu0 0.0
        %1208 = vmatpush1.msra.mxu0 0.0
        %1209 = vmatprep.subr.mxu0 0.0
        %1210 = vmatpush1.msra.mxu0 0.0
        %1211 = vmatprep.mubr.f32.mxu0 0.0
        %1212 = vmatmul.mubr.f32.gmra.mrb[0].mxu0 %v1124
        %v1213 = vpop.f32.mrb[0].mxu0
        %v1214 = vadd.f32 0.0, %v1213
        %v1215 = vpop.f32.mrb[0].mxu0
        %v1216 = vadd.f32 0.0, %v1215
        %1217 = vmatprep.mubr.f32.mxu0 0.0
        %1218 = vmatmul.mubr.f32.gmra.mrb[0].mxu0 %v1127
        %v1219 = vpop.f32.mrb[0].mxu0
        %v1220 = vadd.f32 0.0, %v1219
        %v1221 = vpop.f32.mrb[0].mxu0
        %v1222 = vadd.f32 0.0, %v1221
        %1223 = vmatprep.mubr.f32.mxu0 0.0
        %1224 = vmatmul.mubr.f32.gmra.mrb[0].mxu0 %v1130
        %v1225 = vpop.f32.mrb[0].mxu0
        %v1226 = vadd.f32 0.0, %v1225
        %v1227 = vpop.f32.mrb[0].mxu0
        %v1228 = vadd.f32 0.0, %v1227
        %1229 = vmatprep.mubr.f32.mxu0 0.0
        %1230 = vmatmul.mubr.f32.gmra.mrb[0].mxu0 %v1133
        %v1231 = vpop.f32.mrb[0].mxu0
        %v1232 = vadd.f32 0.0, %v1231
        %v1233 = vpop.f32.mrb[0].mxu0
        %v1234 = vadd.f32 0.0, %v1233
        %1235 = vmatprep.mubr.f32.mxu0 0.0
        %1236 = vmatmul.mubr.f32.gmra.mrb[0].mxu0 %v1136
        %v1237 = vpop.f32.mrb[0].mxu0
        %v1238 = vadd.f32 0.0, %v1237
        %v1239 = vpop.f32.mrb[0].mxu0
        %v1240 = vadd.f32 0.0, %v1239
        %1241 = vmatprep.mubr.f32.mxu0 0.0
        %1242 = vmatmul.mubr.f32.gmra.mrb[0].mxu0 %v1139
        %v1243 = vpop.f32.mrb[0].mxu0
        %v1244 = vadd.f32 0.0, %v1243
        %v1245 = vpop.f32.mrb[0].mxu0
        %v1246 = vadd.f32 0.0, %v1245
        %1247 = vmatprep.mubr.f32.mxu0 0.0
        %1248 = vmatmul.mubr.f32.gmra.mrb[0].mxu0 %v1142
        %v1249 = vpop.f32.mrb[0].mxu0
        %v1250 = vadd.f32 0.0, %v1249
        %v1251 = vpop.f32.mrb[0].mxu0
        %v1252 = vadd.f32 0.0, %v1251
        %1253 = vmatprep.mubr.f32.mxu0 0.0
        %1254 = vmatmul.mubr.f32.gmra.mrb[0].mxu0 %v1145
        %v1255 = vpop.f32.mrb[0].mxu0
        %v1256 = vadd.f32 0.0, %v1255
        %v1257 = vpop.f32.mrb[0].mxu0
        %v1258 = vadd.f32 0.0, %v1257
        %1259 = vdwg.mxu0
        %v1261 = vsel %vm839, %v797, 0
        %v1264 = vsel %vm839, %v798, 0
        %v1267 = vsel %vm839, %v799, 0
        %v1270 = vsel %vm839, %v800, 0
        %v1273 = vsel %vm839, %v801, 0
        %v1276 = vsel %vm839, %v802, 0
        %v1279 = vsel %vm839, %v803, 0
        %v1282 = vsel %vm839, %v804, 0
        %1284 = vmatprep.subr.mxu0 %v773
        %1285 = vmatpush1.msra.mxu0 %v772
        %1286 = vmatprep.subr.mxu0 %v775
        %1287 = vmatpush1.msra.mxu0 %v774
        %1288 = vmatprep.subr.mxu0 %v777
        %1289 = vmatpush1.msra.mxu0 %v776
        %1290 = vmatprep.subr.mxu0 %v779
        %1291 = vmatpush1.msra.mxu0 %v778
        %1292 = vmatprep.subr.mxu0 %v781
        %1293 = vmatpush1.msra.mxu0 %v780
        %1294 = vmatprep.subr.mxu0 %v783
        %1295 = vmatpush1.msra.mxu0 %v782
        %1296 = vmatprep.subr.mxu0 %v785
        %1297 = vmatpush1.msra.mxu0 %v784
        %1298 = vmatprep.subr.mxu0 %v787
        %1299 = vmatpush1.msra.mxu0 %v786
        %1300 = vmatprep.subr.mxu0 %v789
        %1301 = vmatpush1.msra.mxu0 %v788
        %1302 = vmatprep.subr.mxu0 %v791
        %1303 = vmatpush1.msra.mxu0 %v790
        %1304 = vmatprep.subr.mxu0 %v793
        %1305 = vmatpush1.msra.mxu0 %v792
        %1306 = vmatprep.subr.mxu0 %v795
        %1307 = vmatpush1.msra.mxu0 %v794
        %1308 = vmatprep.subr.mxu0 0.0
        %1309 = vmatpush1.msra.mxu0 0.0
        %1310 = vmatprep.subr.mxu0 0.0
        %1311 = vmatpush1.msra.mxu0 0.0
        %1312 = vmatprep.subr.mxu0 0.0
        %1313 = vmatpush1.msra.mxu0 0.0
        %1314 = vmatprep.subr.mxu0 0.0
        %1315 = vmatpush1.msra.mxu0 0.0
        %1316 = vmatprep.subr.mxu0 0.0
        %1317 = vmatpush1.msra.mxu0 0.0
        %1318 = vmatprep.subr.mxu0 0.0
        %1319 = vmatpush1.msra.mxu0 0.0
        %1320 = vmatprep.subr.mxu0 0.0
        %1321 = vmatpush1.msra.mxu0 0.0
        %1322 = vmatprep.subr.mxu0 0.0
        %1323 = vmatpush1.msra.mxu0 0.0
        %1324 = vmatprep.subr.mxu0 0.0
        %1325 = vmatpush1.msra.mxu0 0.0
        %1326 = vmatprep.subr.mxu0 0.0
        %1327 = vmatpush1.msra.mxu0 0.0
        %1328 = vmatprep.subr.mxu0 0.0
        %1329 = vmatpush1.msra.mxu0 0.0
        %1330 = vmatprep.subr.mxu0 0.0
        %1331 = vmatpush1.msra.mxu0 0.0
        %1332 = vmatprep.subr.mxu0 0.0
        %1333 = vmatpush1.msra.mxu0 0.0
        %1334 = vmatprep.subr.mxu0 0.0
        %1335 = vmatpush1.msra.mxu0 0.0
        %1336 = vmatprep.subr.mxu0 0.0
        %1337 = vmatpush1.msra.mxu0 0.0
        %1338 = vmatprep.subr.mxu0 0.0
        %1339 = vmatpush1.msra.mxu0 0.0
        %1340 = vmatprep.subr.mxu0 0.0
        %1341 = vmatpush1.msra.mxu0 0.0
        %1342 = vmatprep.subr.mxu0 0.0
        %1343 = vmatpush1.msra.mxu0 0.0
        %1344 = vmatprep.subr.mxu0 0.0
        %1345 = vmatpush1.msra.mxu0 0.0
        %1346 = vmatprep.subr.mxu0 0.0
        %1347 = vmatpush1.msra.mxu0 0.0
        %1348 = vmatprep.mubr.f32.mxu0 0.0
        %1349 = vmatmul.mubr.f32.gmra.mrb[0].mxu0 %v1261
        %v1350 = vpop.f32.mrb[0].mxu0
        %v1351 = vadd.f32 %v1214, %v1350
        %v1352 = vpop.f32.mrb[0].mxu0
        %v1353 = vadd.f32 %v1216, %v1352
        %1354 = vmatprep.mubr.f32.mxu0 0.0
        %1355 = vmatmul.mubr.f32.gmra.mrb[0].mxu0 %v1264
        %v1356 = vpop.f32.mrb[0].mxu0
        %v1357 = vadd.f32 %v1220, %v1356
        %v1358 = vpop.f32.mrb[0].mxu0
        %v1359 = vadd.f32 %v1222, %v1358
        %1360 = vmatprep.mubr.f32.mxu0 0.0
        %1361 = vmatmul.mubr.f32.gmra.mrb[0].mxu0 %v1267
        %v1362 = vpop.f32.mrb[0].mxu0
        %v1363 = vadd.f32 %v1226, %v1362
        %v1364 = vpop.f32.mrb[0].mxu0
        %v1365 = vadd.f32 %v1228, %v1364
        %1366 = vmatprep.mubr.f32.mxu0 0.0
        %1367 = vmatmul.mubr.f32.gmra.mrb[0].mxu0 %v1270
        %v1368 = vpop.f32.mrb[0].mxu0
        %v1369 = vadd.f32 %v1232, %v1368
        %v1370 = vpop.f32.mrb[0].mxu0
        %v1371 = vadd.f32 %v1234, %v1370
        %1372 = vmatprep.mubr.f32.mxu0 0.0
        %1373 = vmatmul.mubr.f32.gmra.mrb[0].mxu0 %v1273
        %v1374 = vpop.f32.mrb[0].mxu0
        %v1375 = vadd.f32 %v1238, %v1374
        %v1376 = vpop.f32.mrb[0].mxu0
        %v1377 = vadd.f32 %v1240, %v1376
        %1378 = vmatprep.mubr.f32.mxu0 0.0
        %1379 = vmatmul.mubr.f32.gmra.mrb[0].mxu0 %v1276
        %v1380 = vpop.f32.mrb[0].mxu0
        %v1381 = vadd.f32 %v1244, %v1380
        %v1382 = vpop.f32.mrb[0].mxu0
        %v1383 = vadd.f32 %v1246, %v1382
        %1384 = vmatprep.mubr.f32.mxu0 0.0
        %1385 = vmatmul.mubr.f32.gmra.mrb[0].mxu0 %v1279
        %v1386 = vpop.f32.mrb[0].mxu0
        %v1387 = vadd.f32 %v1250, %v1386
        %v1388 = vpop.f32.mrb[0].mxu0
        %v1389 = vadd.f32 %v1252, %v1388
        %1390 = vmatprep.mubr.f32.mxu0 0.0
        %1391 = vmatmul.mubr.f32.gmra.mrb[0].mxu0 %v1282
        %v1392 = vpop.f32.mrb[0].mxu0
        %v1393 = vadd.f32 %v1256, %v1392
        %v1394 = vpop.f32.mrb[0].mxu0
        %v1395 = vadd.f32 %v1258, %v1394
        %1396 = vdwg.mxu0
        %s1397 = scalar_lea.vmem %s724, 256 [#allocation3]
        %v1398 = vld [vmem:[%s1397] sm:$0xff]
        %v1399 = vld [vmem:[%s1397 + $0x8] sm:$0xff]
        %v1400 = vld [vmem:[%s1397 + $0x10] sm:$0xff]
        %v1401 = vld [vmem:[%s1397 + $0x18] sm:$0xff]
        %v1402 = vld [vmem:[%s1397 + $0x20] sm:$0xff]
        %v1403 = vld [vmem:[%s1397 + $0x28] sm:$0xff]
        %v1404 = vld [vmem:[%s1397 + $0x30] sm:$0xff]
        %v1405 = vld [vmem:[%s1397 + $0x38] sm:$0xff]
        %s1406 = scalar_lea.vmem %s1, 384
        %v1407 = vld [vmem:[%s1406] sm:$0xff]
        %v1408 = vld [vmem:[%s1406 + $0x8] sm:$0xff]
        %v1409 = vld [vmem:[%s1406 + $0x10] sm:$0xff]
        %v1410 = vld [vmem:[%s1406 + $0x18] sm:$0xff]
        %v1411 = vld [vmem:[%s1406 + $0x20] sm:$0xff]
        %v1412 = vld [vmem:[%s1406 + $0x28] sm:$0xff]
        %v1413 = vld [vmem:[%s1406 + $0x30] sm:$0xff]
        %v1414 = vld [vmem:[%s1406 + $0x38] sm:$0xff]
        %v1415 = vld [vmem:[%s1406 + $0x40] sm:$0xff]
        %v1416 = vld [vmem:[%s1406 + $0x48] sm:$0xff]
        %v1417 = vld [vmem:[%s1406 + $0x50] sm:$0xff]
        %v1418 = vld [vmem:[%s1406 + $0x58] sm:$0xff]
        %v1419 = vld [vmem:[%s1406 + $0x60] sm:$0xff]
        %v1420 = vld [vmem:[%s1406 + $0x68] sm:$0xff]
        %v1421 = vld [vmem:[%s1406 + $0x70] sm:$0xff]
        %v1422 = vld [vmem:[%s1406 + $0x78] sm:$0xff]
        %v1423 = vld [vmem:[%s1406 + $0x80] sm:$0xff]
        %v1424 = vld [vmem:[%s1406 + $0x88] sm:$0xff]
        %v1425 = vld [vmem:[%s1406 + $0x90] sm:$0xff]
        %v1426 = vld [vmem:[%s1406 + $0x98] sm:$0xff]
        %v1427 = vld [vmem:[%s1406 + $0xa0] sm:$0xff]
        %v1428 = vld [vmem:[%s1406 + $0xa8] sm:$0xff]
        %v1429 = vld [vmem:[%s1406 + $0xb0] sm:$0xff]
        %v1430 = vld [vmem:[%s1406 + $0xb8] sm:$0xff]
        %v1432 = vsel %vm839, %v1398, 0
        %v1435 = vsel %vm839, %v1399, 0
        %v1438 = vsel %vm839, %v1400, 0
        %v1441 = vsel %vm839, %v1401, 0
        %v1444 = vsel %vm839, %v1402, 0
        %v1447 = vsel %vm839, %v1403, 0
        %v1450 = vsel %vm839, %v1404, 0
        %v1453 = vsel %vm839, %v1405, 0
        %1455 = vmatprep.subr.mxu0 %v1408
        %1456 = vmatpush1.msra.mxu0 %v1407
        %1457 = vmatprep.subr.mxu0 %v1410
        %1458 = vmatpush1.msra.mxu0 %v1409
        %1459 = vmatprep.subr.mxu0 %v1412
        %1460 = vmatpush1.msra.mxu0 %v1411
        %1461 = vmatprep.subr.mxu0 %v1414
        %1462 = vmatpush1.msra.mxu0 %v1413
        %1463 = vmatprep.subr.mxu0 %v1416
        %1464 = vmatpush1.msra.mxu0 %v1415
        %1465 = vmatprep.subr.mxu0 %v1418
        %1466 = vmatpush1.msra.mxu0 %v1417
        %1467 = vmatprep.subr.mxu0 %v1420
        %1468 = vmatpush1.msra.mxu0 %v1419
        %1469 = vmatprep.subr.mxu0 %v1422
        %1470 = vmatpush1.msra.mxu0 %v1421
        %1471 = vmatprep.subr.mxu0 %v1424
        %1472 = vmatpush1.msra.mxu0 %v1423
        %1473 = vmatprep.subr.mxu0 %v1426
        %1474 = vmatpush1.msra.mxu0 %v1425
        %1475 = vmatprep.subr.mxu0 %v1428
        %1476 = vmatpush1.msra.mxu0 %v1427
        %1477 = vmatprep.subr.mxu0 %v1430
        %1478 = vmatpush1.msra.mxu0 %v1429
        %1479 = vmatprep.subr.mxu0 0.0
        %1480 = vmatpush1.msra.mxu0 0.0
        %1481 = vmatprep.subr.mxu0 0.0
        %1482 = vmatpush1.msra.mxu0 0.0
        %1483 = vmatprep.subr.mxu0 0.0
        %1484 = vmatpush1.msra.mxu0 0.0
        %1485 = vmatprep.subr.mxu0 0.0
        %1486 = vmatpush1.msra.mxu0 0.0
        %1487 = vmatprep.subr.mxu0 0.0
        %1488 = vmatpush1.msra.mxu0 0.0
        %1489 = vmatprep.subr.mxu0 0.0
        %1490 = vmatpush1.msra.mxu0 0.0
        %1491 = vmatprep.subr.mxu0 0.0
        %1492 = vmatpush1.msra.mxu0 0.0
        %1493 = vmatprep.subr.mxu0 0.0
        %1494 = vmatpush1.msra.mxu0 0.0
        %1495 = vmatprep.subr.mxu0 0.0
        %1496 = vmatpush1.msra.mxu0 0.0
        %1497 = vmatprep.subr.mxu0 0.0
        %1498 = vmatpush1.msra.mxu0 0.0
        %1499 = vmatprep.subr.mxu0 0.0
        %1500 = vmatpush1.msra.mxu0 0.0
        %1501 = vmatprep.subr.mxu0 0.0
        %1502 = vmatpush1.msra.mxu0 0.0
        %1503 = vmatprep.subr.mxu0 0.0
        %1504 = vmatpush1.msra.mxu0 0.0
        %1505 = vmatprep.subr.mxu0 0.0
        %1506 = vmatpush1.msra.mxu0 0.0
        %1507 = vmatprep.subr.mxu0 0.0
        %1508 = vmatpush1.msra.mxu0 0.0
        %1509 = vmatprep.subr.mxu0 0.0
        %1510 = vmatpush1.msra.mxu0 0.0
        %1511 = vmatprep.subr.mxu0 0.0
        %1512 = vmatpush1.msra.mxu0 0.0
        %1513 = vmatprep.subr.mxu0 0.0
        %1514 = vmatpush1.msra.mxu0 0.0
        %1515 = vmatprep.subr.mxu0 0.0
        %1516 = vmatpush1.msra.mxu0 0.0
        %1517 = vmatprep.subr.mxu0 0.0
        %1518 = vmatpush1.msra.mxu0 0.0
        %1519 = vmatprep.mubr.f32.mxu0 0.0
        %1520 = vmatmul.mubr.f32.gmra.mrb[0].mxu0 %v1432
        %v1521 = vpop.f32.mrb[0].mxu0
        %v1522 = vadd.f32 0.0, %v1521
        %v1523 = vpop.f32.mrb[0].mxu0
        %v1524 = vadd.f32 0.0, %v1523
        %1525 = vmatprep.mubr.f32.mxu0 0.0
        %1526 = vmatmul.mubr.f32.gmra.mrb[0].mxu0 %v1435
        %v1527 = vpop.f32.mrb[0].mxu0
        %v1528 = vadd.f32 0.0, %v1527
        %v1529 = vpop.f32.mrb[0].mxu0
        %v1530 = vadd.f32 0.0, %v1529
        %1531 = vmatprep.mubr.f32.mxu0 0.0
        %1532 = vmatmul.mubr.f32.gmra.mrb[0].mxu0 %v1438
        %v1533 = vpop.f32.mrb[0].mxu0
        %v1534 = vadd.f32 0.0, %v1533
        %v1535 = vpop.f32.mrb[0].mxu0
        %v1536 = vadd.f32 0.0, %v1535
        %1537 = vmatprep.mubr.f32.mxu0 0.0
        %1538 = vmatmul.mubr.f32.gmra.mrb[0].mxu0 %v1441
        %v1539 = vpop.f32.mrb[0].mxu0
        %v1540 = vadd.f32 0.0, %v1539
        %v1541 = vpop.f32.mrb[0].mxu0
        %v1542 = vadd.f32 0.0, %v1541
        %1543 = vmatprep.mubr.f32.mxu0 0.0
        %1544 = vmatmul.mubr.f32.gmra.mrb[0].mxu0 %v1444
        %v1545 = vpop.f32.mrb[0].mxu0
        %v1546 = vadd.f32 0.0, %v1545
        %v1547 = vpop.f32.mrb[0].mxu0
        %v1548 = vadd.f32 0.0, %v1547
        %1549 = vmatprep.mubr.f32.mxu0 0.0
        %1550 = vmatmul.mubr.f32.gmra.mrb[0].mxu0 %v1447
        %v1551 = vpop.f32.mrb[0].mxu0
        %v1552 = vadd.f32 0.0, %v1551
        %v1553 = vpop.f32.mrb[0].mxu0
        %v1554 = vadd.f32 0.0, %v1553
        %1555 = vmatprep.mubr.f32.mxu0 0.0
        %1556 = vmatmul.mubr.f32.gmra.mrb[0].mxu0 %v1450
        %v1557 = vpop.f32.mrb[0].mxu0
        %v1558 = vadd.f32 0.0, %v1557
        %v1559 = vpop.f32.mrb[0].mxu0
        %v1560 = vadd.f32 0.0, %v1559
        %1561 = vmatprep.mubr.f32.mxu0 0.0
        %1562 = vmatmul.mubr.f32.gmra.mrb[0].mxu0 %v1453
        %v1563 = vpop.f32.mrb[0].mxu0
        %v1564 = vadd.f32 0.0, %v1563
        %v1565 = vpop.f32.mrb[0].mxu0
        %v1566 = vadd.f32 0.0, %v1565
        %1567 = vdwg.mxu0
        %v1568 = vadd.f32 %v1068, %v1522
        %v1569 = vadd.f32 %v1070, %v1524
        %v1570 = vadd.f32 %v1074, %v1528
        %v1571 = vadd.f32 %v1076, %v1530
        %v1572 = vadd.f32 %v1080, %v1534
        %v1573 = vadd.f32 %v1082, %v1536
        %v1574 = vadd.f32 %v1086, %v1540
        %v1575 = vadd.f32 %v1088, %v1542
        %v1576 = vadd.f32 %v1092, %v1546
        %v1577 = vadd.f32 %v1094, %v1548
        %v1578 = vadd.f32 %v1098, %v1552
        %v1579 = vadd.f32 %v1100, %v1554
        %v1580 = vadd.f32 %v1104, %v1558
        %v1581 = vadd.f32 %v1106, %v1560
        %v1582 = vadd.f32 %v1110, %v1564
        %v1583 = vadd.f32 %v1112, %v1566
        %s1584 = scalar_lea.vmem %s724, 320 [#allocation3]
        %v1585 = vld [vmem:[%s1584] sm:$0xff]
        %v1586 = vld [vmem:[%s1584 + $0x8] sm:$0xff]
        %v1587 = vld [vmem:[%s1584 + $0x10] sm:$0xff]
        %v1588 = vld [vmem:[%s1584 + $0x18] sm:$0xff]
        %v1589 = vld [vmem:[%s1584 + $0x20] sm:$0xff]
        %v1590 = vld [vmem:[%s1584 + $0x28] sm:$0xff]
        %v1591 = vld [vmem:[%s1584 + $0x30] sm:$0xff]
        %v1592 = vld [vmem:[%s1584 + $0x38] sm:$0xff]
        %v1594 = vsel %vm839, %v1585, 0
        %v1597 = vsel %vm839, %v1586, 0
        %v1600 = vsel %vm839, %v1587, 0
        %v1603 = vsel %vm839, %v1588, 0
        %v1606 = vsel %vm839, %v1589, 0
        %v1609 = vsel %vm839, %v1590, 0
        %v1612 = vsel %vm839, %v1591, 0
        %v1615 = vsel %vm839, %v1592, 0
        %1617 = vmatprep.subr.mxu0 %v1408
        %1618 = vmatpush1.msra.mxu0 %v1407
        %1619 = vmatprep.subr.mxu0 %v1410
        %1620 = vmatpush1.msra.mxu0 %v1409
        %1621 = vmatprep.subr.mxu0 %v1412
        %1622 = vmatpush1.msra.mxu0 %v1411
        %1623 = vmatprep.subr.mxu0 %v1414
        %1624 = vmatpush1.msra.mxu0 %v1413
        %1625 = vmatprep.subr.mxu0 %v1416
        %1626 = vmatpush1.msra.mxu0 %v1415
        %1627 = vmatprep.subr.mxu0 %v1418
        %1628 = vmatpush1.msra.mxu0 %v1417
        %1629 = vmatprep.subr.mxu0 %v1420
        %1630 = vmatpush1.msra.mxu0 %v1419
        %1631 = vmatprep.subr.mxu0 %v1422
        %1632 = vmatpush1.msra.mxu0 %v1421
        %1633 = vmatprep.subr.mxu0 %v1424
        %1634 = vmatpush1.msra.mxu0 %v1423
        %1635 = vmatprep.subr.mxu0 %v1426
        %1636 = vmatpush1.msra.mxu0 %v1425
        %1637 = vmatprep.subr.mxu0 %v1428
        %1638 = vmatpush1.msra.mxu0 %v1427
        %1639 = vmatprep.subr.mxu0 %v1430
        %1640 = vmatpush1.msra.mxu0 %v1429
        %1641 = vmatprep.subr.mxu0 0.0
        %1642 = vmatpush1.msra.mxu0 0.0
        %1643 = vmatprep.subr.mxu0 0.0
        %1644 = vmatpush1.msra.mxu0 0.0
        %1645 = vmatprep.subr.mxu0 0.0
        %1646 = vmatpush1.msra.mxu0 0.0
        %1647 = vmatprep.subr.mxu0 0.0
        %1648 = vmatpush1.msra.mxu0 0.0
        %1649 = vmatprep.subr.mxu0 0.0
        %1650 = vmatpush1.msra.mxu0 0.0
        %1651 = vmatprep.subr.mxu0 0.0
        %1652 = vmatpush1.msra.mxu0 0.0
        %1653 = vmatprep.subr.mxu0 0.0
        %1654 = vmatpush1.msra.mxu0 0.0
        %1655 = vmatprep.subr.mxu0 0.0
        %1656 = vmatpush1.msra.mxu0 0.0
        %1657 = vmatprep.subr.mxu0 0.0
        %1658 = vmatpush1.msra.mxu0 0.0
        %1659 = vmatprep.subr.mxu0 0.0
        %1660 = vmatpush1.msra.mxu0 0.0
        %1661 = vmatprep.subr.mxu0 0.0
        %1662 = vmatpush1.msra.mxu0 0.0
        %1663 = vmatprep.subr.mxu0 0.0
        %1664 = vmatpush1.msra.mxu0 0.0
        %1665 = vmatprep.subr.mxu0 0.0
        %1666 = vmatpush1.msra.mxu0 0.0
        %1667 = vmatprep.subr.mxu0 0.0
        %1668 = vmatpush1.msra.mxu0 0.0
        %1669 = vmatprep.subr.mxu0 0.0
        %1670 = vmatpush1.msra.mxu0 0.0
        %1671 = vmatprep.subr.mxu0 0.0
        %1672 = vmatpush1.msra.mxu0 0.0
        %1673 = vmatprep.subr.mxu0 0.0
        %1674 = vmatpush1.msra.mxu0 0.0
        %1675 = vmatprep.subr.mxu0 0.0
        %1676 = vmatpush1.msra.mxu0 0.0
        %1677 = vmatprep.subr.mxu0 0.0
        %1678 = vmatpush1.msra.mxu0 0.0
        %1679 = vmatprep.subr.mxu0 0.0
        %1680 = vmatpush1.msra.mxu0 0.0
        %1681 = vmatprep.mubr.f32.mxu0 0.0
        %1682 = vmatmul.mubr.f32.gmra.mrb[0].mxu0 %v1594
        %v1683 = vpop.f32.mrb[0].mxu0
        %v1684 = vadd.f32 0.0, %v1683
        %v1685 = vpop.f32.mrb[0].mxu0
        %v1686 = vadd.f32 0.0, %v1685
        %1687 = vmatprep.mubr.f32.mxu0 0.0
        %1688 = vmatmul.mubr.f32.gmra.mrb[0].mxu0 %v1597
        %v1689 = vpop.f32.mrb[0].mxu0
        %v1690 = vadd.f32 0.0, %v1689
        %v1691 = vpop.f32.mrb[0].mxu0
        %v1692 = vadd.f32 0.0, %v1691
        %1693 = vmatprep.mubr.f32.mxu0 0.0
        %1694 = vmatmul.mubr.f32.gmra.mrb[0].mxu0 %v1600
        %v1695 = vpop.f32.mrb[0].mxu0
        %v1696 = vadd.f32 0.0, %v1695
        %v1697 = vpop.f32.mrb[0].mxu0
        %v1698 = vadd.f32 0.0, %v1697
        %1699 = vmatprep.mubr.f32.mxu0 0.0
        %1700 = vmatmul.mubr.f32.gmra.mrb[0].mxu0 %v1603
        %v1701 = vpop.f32.mrb[0].mxu0
        %v1702 = vadd.f32 0.0, %v1701
        %v1703 = vpop.f32.mrb[0].mxu0
        %v1704 = vadd.f32 0.0, %v1703
        %1705 = vmatprep.mubr.f32.mxu0 0.0
        %1706 = vmatmul.mubr.f32.gmra.mrb[0].mxu0 %v1606
        %v1707 = vpop.f32.mrb[0].mxu0
        %v1708 = vadd.f32 0.0, %v1707
        %v1709 = vpop.f32.mrb[0].mxu0
        %v1710 = vadd.f32 0.0, %v1709
        %1711 = vmatprep.mubr.f32.mxu0 0.0
        %1712 = vmatmul.mubr.f32.gmra.mrb[0].mxu0 %v1609
        %v1713 = vpop.f32.mrb[0].mxu0
        %v1714 = vadd.f32 0.0, %v1713
        %v1715 = vpop.f32.mrb[0].mxu0
        %v1716 = vadd.f32 0.0, %v1715
        %1717 = vmatprep.mubr.f32.mxu0 0.0
        %1718 = vmatmul.mubr.f32.gmra.mrb[0].mxu0 %v1612
        %v1719 = vpop.f32.mrb[0].mxu0
        %v1720 = vadd.f32 0.0, %v1719
        %v1721 = vpop.f32.mrb[0].mxu0
        %v1722 = vadd.f32 0.0, %v1721
        %1723 = vmatprep.mubr.f32.mxu0 0.0
        %1724 = vmatmul.mubr.f32.gmra.mrb[0].mxu0 %v1615
        %v1725 = vpop.f32.mrb[0].mxu0
        %v1726 = vadd.f32 0.0, %v1725
        %v1727 = vpop.f32.mrb[0].mxu0
        %v1728 = vadd.f32 0.0, %v1727
        %1729 = vdwg.mxu0
        %v1730 = vadd.f32 %v1351, %v1684
        %v1731 = vadd.f32 %v1353, %v1686
        %v1732 = vadd.f32 %v1357, %v1690
        %v1733 = vadd.f32 %v1359, %v1692
        %v1734 = vadd.f32 %v1363, %v1696
        %v1735 = vadd.f32 %v1365, %v1698
        %v1736 = vadd.f32 %v1369, %v1702
        %v1737 = vadd.f32 %v1371, %v1704
        %v1738 = vadd.f32 %v1375, %v1708
        %v1739 = vadd.f32 %v1377, %v1710
        %v1740 = vadd.f32 %v1381, %v1714
        %v1741 = vadd.f32 %v1383, %v1716
        %v1742 = vadd.f32 %v1387, %v1720
        %v1743 = vadd.f32 %v1389, %v1722
        %v1744 = vadd.f32 %v1393, %v1726
        %v1745 = vadd.f32 %v1395, %v1728
        %s1746 = scalar_lea.vmem %s724, 384 [#allocation3]
        %v1747 = vld [vmem:[%s1746] sm:$0xff]
        %v1748 = vld [vmem:[%s1746 + $0x8] sm:$0xff]
        %v1749 = vld [vmem:[%s1746 + $0x10] sm:$0xff]
        %v1750 = vld [vmem:[%s1746 + $0x18] sm:$0xff]
        %v1751 = vld [vmem:[%s1746 + $0x20] sm:$0xff]
        %v1752 = vld [vmem:[%s1746 + $0x28] sm:$0xff]
        %v1753 = vld [vmem:[%s1746 + $0x30] sm:$0xff]
        %v1754 = vld [vmem:[%s1746 + $0x38] sm:$0xff]
        %s1755 = scalar_lea.vmem %s1, 576
        %v1756 = vld [vmem:[%s1755] sm:$0xff]
        %v1757 = vld [vmem:[%s1755 + $0x8] sm:$0xff]
        %v1758 = vld [vmem:[%s1755 + $0x10] sm:$0xff]
        %v1759 = vld [vmem:[%s1755 + $0x18] sm:$0xff]
        %v1760 = vld [vmem:[%s1755 + $0x20] sm:$0xff]
        %v1761 = vld [vmem:[%s1755 + $0x28] sm:$0xff]
        %v1762 = vld [vmem:[%s1755 + $0x30] sm:$0xff]
        %v1763 = vld [vmem:[%s1755 + $0x38] sm:$0xff]
        %v1764 = vld [vmem:[%s1755 + $0x40] sm:$0xff]
        %v1765 = vld [vmem:[%s1755 + $0x48] sm:$0xff]
        %v1766 = vld [vmem:[%s1755 + $0x50] sm:$0xff]
        %v1767 = vld [vmem:[%s1755 + $0x58] sm:$0xff]
        %v1768 = vld [vmem:[%s1755 + $0x60] sm:$0xff]
        %v1769 = vld [vmem:[%s1755 + $0x68] sm:$0xff]
        %v1770 = vld [vmem:[%s1755 + $0x70] sm:$0xff]
        %v1771 = vld [vmem:[%s1755 + $0x78] sm:$0xff]
        %v1772 = vld [vmem:[%s1755 + $0x80] sm:$0xff]
        %v1773 = vld [vmem:[%s1755 + $0x88] sm:$0xff]
        %v1774 = vld [vmem:[%s1755 + $0x90] sm:$0xff]
        %v1775 = vld [vmem:[%s1755 + $0x98] sm:$0xff]
        %v1776 = vld [vmem:[%s1755 + $0xa0] sm:$0xff]
        %v1777 = vld [vmem:[%s1755 + $0xa8] sm:$0xff]
        %v1778 = vld [vmem:[%s1755 + $0xb0] sm:$0xff]
        %v1779 = vld [vmem:[%s1755 + $0xb8] sm:$0xff]
        %v1781 = vsel %vm839, %v1747, 0
        %v1784 = vsel %vm839, %v1748, 0
        %v1787 = vsel %vm839, %v1749, 0
        %v1790 = vsel %vm839, %v1750, 0
        %v1793 = vsel %vm839, %v1751, 0
        %v1796 = vsel %vm839, %v1752, 0
        %v1799 = vsel %vm839, %v1753, 0
        %v1802 = vsel %vm839, %v1754, 0
        %1804 = vmatprep.subr.mxu0 %v1757
        %1805 = vmatpush1.msra.mxu0 %v1756
        %1806 = vmatprep.subr.mxu0 %v1759
        %1807 = vmatpush1.msra.mxu0 %v1758
        %1808 = vmatprep.subr.mxu0 %v1761
        %1809 = vmatpush1.msra.mxu0 %v1760
        %1810 = vmatprep.subr.mxu0 %v1763
        %1811 = vmatpush1.msra.mxu0 %v1762
        %1812 = vmatprep.subr.mxu0 %v1765
        %1813 = vmatpush1.msra.mxu0 %v1764
        %1814 = vmatprep.subr.mxu0 %v1767
        %1815 = vmatpush1.msra.mxu0 %v1766
        %1816 = vmatprep.subr.mxu0 %v1769
        %1817 = vmatpush1.msra.mxu0 %v1768
        %1818 = vmatprep.subr.mxu0 %v1771
        %1819 = vmatpush1.msra.mxu0 %v1770
        %1820 = vmatprep.subr.mxu0 %v1773
        %1821 = vmatpush1.msra.mxu0 %v1772
        %1822 = vmatprep.subr.mxu0 %v1775
        %1823 = vmatpush1.msra.mxu0 %v1774
        %1824 = vmatprep.subr.mxu0 %v1777
        %1825 = vmatpush1.msra.mxu0 %v1776
        %1826 = vmatprep.subr.mxu0 %v1779
        %1827 = vmatpush1.msra.mxu0 %v1778
        %1828 = vmatprep.subr.mxu0 0.0
        %1829 = vmatpush1.msra.mxu0 0.0
        %1830 = vmatprep.subr.mxu0 0.0
        %1831 = vmatpush1.msra.mxu0 0.0
        %1832 = vmatprep.subr.mxu0 0.0
        %1833 = vmatpush1.msra.mxu0 0.0
        %1834 = vmatprep.subr.mxu0 0.0
        %1835 = vmatpush1.msra.mxu0 0.0
        %1836 = vmatprep.subr.mxu0 0.0
        %1837 = vmatpush1.msra.mxu0 0.0
        %1838 = vmatprep.subr.mxu0 0.0
        %1839 = vmatpush1.msra.mxu0 0.0
        %1840 = vmatprep.subr.mxu0 0.0
        %1841 = vmatpush1.msra.mxu0 0.0
        %1842 = vmatprep.subr.mxu0 0.0
        %1843 = vmatpush1.msra.mxu0 0.0
        %1844 = vmatprep.subr.mxu0 0.0
        %1845 = vmatpush1.msra.mxu0 0.0
        %1846 = vmatprep.subr.mxu0 0.0
        %1847 = vmatpush1.msra.mxu0 0.0
        %1848 = vmatprep.subr.mxu0 0.0
        %1849 = vmatpush1.msra.mxu0 0.0
        %1850 = vmatprep.subr.mxu0 0.0
        %1851 = vmatpush1.msra.mxu0 0.0
        %1852 = vmatprep.subr.mxu0 0.0
        %1853 = vmatpush1.msra.mxu0 0.0
        %1854 = vmatprep.subr.mxu0 0.0
        %1855 = vmatpush1.msra.mxu0 0.0
        %1856 = vmatprep.subr.mxu0 0.0
        %1857 = vmatpush1.msra.mxu0 0.0
        %1858 = vmatprep.subr.mxu0 0.0
        %1859 = vmatpush1.msra.mxu0 0.0
        %1860 = vmatprep.subr.mxu0 0.0
        %1861 = vmatpush1.msra.mxu0 0.0
        %1862 = vmatprep.subr.mxu0 0.0
        %1863 = vmatpush1.msra.mxu0 0.0
        %1864 = vmatprep.subr.mxu0 0.0
        %1865 = vmatpush1.msra.mxu0 0.0
        %1866 = vmatprep.subr.mxu0 0.0
        %1867 = vmatpush1.msra.mxu0 0.0
        %1868 = vmatprep.mubr.f32.mxu0 0.0
        %1869 = vmatmul.mubr.f32.gmra.mrb[0].mxu0 %v1781
        %v1870 = vpop.f32.mrb[0].mxu0
        %v1871 = vadd.f32 0.0, %v1870
        %v1872 = vpop.f32.mrb[0].mxu0
        %v1873 = vadd.f32 0.0, %v1872
        %1874 = vmatprep.mubr.f32.mxu0 0.0
        %1875 = vmatmul.mubr.f32.gmra.mrb[0].mxu0 %v1784
        %v1876 = vpop.f32.mrb[0].mxu0
        %v1877 = vadd.f32 0.0, %v1876
        %v1878 = vpop.f32.mrb[0].mxu0
        %v1879 = vadd.f32 0.0, %v1878
        %1880 = vmatprep.mubr.f32.mxu0 0.0
        %1881 = vmatmul.mubr.f32.gmra.mrb[0].mxu0 %v1787
        %v1882 = vpop.f32.mrb[0].mxu0
        %v1883 = vadd.f32 0.0, %v1882
        %v1884 = vpop.f32.mrb[0].mxu0
        %v1885 = vadd.f32 0.0, %v1884
        %1886 = vmatprep.mubr.f32.mxu0 0.0
        %1887 = vmatmul.mubr.f32.gmra.mrb[0].mxu0 %v1790
        %v1888 = vpop.f32.mrb[0].mxu0
        %v1889 = vadd.f32 0.0, %v1888
        %v1890 = vpop.f32.mrb[0].mxu0
        %v1891 = vadd.f32 0.0, %v1890
        %1892 = vmatprep.mubr.f32.mxu0 0.0
        %1893 = vmatmul.mubr.f32.gmra.mrb[0].mxu0 %v1793
        %v1894 = vpop.f32.mrb[0].mxu0
        %v1895 = vadd.f32 0.0, %v1894
        %v1896 = vpop.f32.mrb[0].mxu0
        %v1897 = vadd.f32 0.0, %v1896
        %1898 = vmatprep.mubr.f32.mxu0 0.0
        %1899 = vmatmul.mubr.f32.gmra.mrb[0].mxu0 %v1796
        %v1900 = vpop.f32.mrb[0].mxu0
        %v1901 = vadd.f32 0.0, %v1900
        %v1902 = vpop.f32.mrb[0].mxu0
        %v1903 = vadd.f32 0.0, %v1902
        %1904 = vmatprep.mubr.f32.mxu0 0.0
        %1905 = vmatmul.mubr.f32.gmra.mrb[0].mxu0 %v1799
        %v1906 = vpop.f32.mrb[0].mxu0
        %v1907 = vadd.f32 0.0, %v1906
        %v1908 = vpop.f32.mrb[0].mxu0
        %v1909 = vadd.f32 0.0, %v1908
        %1910 = vmatprep.mubr.f32.mxu0 0.0
        %1911 = vmatmul.mubr.f32.gmra.mrb[0].mxu0 %v1802
        %v1912 = vpop.f32.mrb[0].mxu0
        %v1913 = vadd.f32 0.0, %v1912
        %v1914 = vpop.f32.mrb[0].mxu0
        %v1915 = vadd.f32 0.0, %v1914
        %1916 = vdwg.mxu0
        %v1917 = vadd.f32 %v1568, %v1871
        %v1918 = vadd.f32 %v1569, %v1873
        %v1919 = vadd.f32 %v1570, %v1877
        %v1920 = vadd.f32 %v1571, %v1879
        %v1921 = vadd.f32 %v1572, %v1883
        %v1922 = vadd.f32 %v1573, %v1885
        %v1923 = vadd.f32 %v1574, %v1889
        %v1924 = vadd.f32 %v1575, %v1891
        %v1925 = vadd.f32 %v1576, %v1895
        %v1926 = vadd.f32 %v1577, %v1897
        %v1927 = vadd.f32 %v1578, %v1901
        %v1928 = vadd.f32 %v1579, %v1903
        %v1929 = vadd.f32 %v1580, %v1907
        %v1930 = vadd.f32 %v1581, %v1909
        %v1931 = vadd.f32 %v1582, %v1913
        %v1932 = vadd.f32 %v1583, %v1915
        %s1933 = scalar_lea.vmem %s724, 448 [#allocation3]
        %v1934 = vld [vmem:[%s1933] sm:$0xff]
        %v1935 = vld [vmem:[%s1933 + $0x8] sm:$0xff]
        %v1936 = vld [vmem:[%s1933 + $0x10] sm:$0xff]
        %v1937 = vld [vmem:[%s1933 + $0x18] sm:$0xff]
        %v1938 = vld [vmem:[%s1933 + $0x20] sm:$0xff]
        %v1939 = vld [vmem:[%s1933 + $0x28] sm:$0xff]
        %v1940 = vld [vmem:[%s1933 + $0x30] sm:$0xff]
        %v1941 = vld [vmem:[%s1933 + $0x38] sm:$0xff]
        %v1943 = vsel %vm839, %v1934, 0
        %v1946 = vsel %vm839, %v1935, 0
        %v1949 = vsel %vm839, %v1936, 0
        %v1952 = vsel %vm839, %v1937, 0
        %v1955 = vsel %vm839, %v1938, 0
        %v1958 = vsel %vm839, %v1939, 0
        %v1961 = vsel %vm839, %v1940, 0
        %v1964 = vsel %vm839, %v1941, 0
        %1966 = vmatprep.subr.mxu0 %v1757
        %1967 = vmatpush1.msra.mxu0 %v1756
        %1968 = vmatprep.subr.mxu0 %v1759
        %1969 = vmatpush1.msra.mxu0 %v1758
        %1970 = vmatprep.subr.mxu0 %v1761
        %1971 = vmatpush1.msra.mxu0 %v1760
        %1972 = vmatprep.subr.mxu0 %v1763
        %1973 = vmatpush1.msra.mxu0 %v1762
        %1974 = vmatprep.subr.mxu0 %v1765
        %1975 = vmatpush1.msra.mxu0 %v1764
        %1976 = vmatprep.subr.mxu0 %v1767
        %1977 = vmatpush1.msra.mxu0 %v1766
        %1978 = vmatprep.subr.mxu0 %v1769
        %1979 = vmatpush1.msra.mxu0 %v1768
        %1980 = vmatprep.subr.mxu0 %v1771
        %1981 = vmatpush1.msra.mxu0 %v1770
        %1982 = vmatprep.subr.mxu0 %v1773
        %1983 = vmatpush1.msra.mxu0 %v1772
        %1984 = vmatprep.subr.mxu0 %v1775
        %1985 = vmatpush1.msra.mxu0 %v1774
        %1986 = vmatprep.subr.mxu0 %v1777
        %1987 = vmatpush1.msra.mxu0 %v1776
        %1988 = vmatprep.subr.mxu0 %v1779
        %1989 = vmatpush1.msra.mxu0 %v1778
        %1990 = vmatprep.subr.mxu0 0.0
        %1991 = vmatpush1.msra.mxu0 0.0
        %1992 = vmatprep.subr.mxu0 0.0
        %1993 = vmatpush1.msra.mxu0 0.0
        %1994 = vmatprep.subr.mxu0 0.0
        %1995 = vmatpush1.msra.mxu0 0.0
        %1996 = vmatprep.subr.mxu0 0.0
        %1997 = vmatpush1.msra.mxu0 0.0
        %1998 = vmatprep.subr.mxu0 0.0
        %1999 = vmatpush1.msra.mxu0 0.0
        %2000 = vmatprep.subr.mxu0 0.0
        %2001 = vmatpush1.msra.mxu0 0.0
        %2002 = vmatprep.subr.mxu0 0.0
        %2003 = vmatpush1.msra.mxu0 0.0
        %2004 = vmatprep.subr.mxu0 0.0
        %2005 = vmatpush1.msra.mxu0 0.0
        %2006 = vmatprep.subr.mxu0 0.0
        %2007 = vmatpush1.msra.mxu0 0.0
        %2008 = vmatprep.subr.mxu0 0.0
        %2009 = vmatpush1.msra.mxu0 0.0
        %2010 = vmatprep.subr.mxu0 0.0
        %2011 = vmatpush1.msra.mxu0 0.0
        %2012 = vmatprep.subr.mxu0 0.0
        %2013 = vmatpush1.msra.mxu0 0.0
        %2014 = vmatprep.subr.mxu0 0.0
        %2015 = vmatpush1.msra.mxu0 0.0
        %2016 = vmatprep.subr.mxu0 0.0
        %2017 = vmatpush1.msra.mxu0 0.0
        %2018 = vmatprep.subr.mxu0 0.0
        %2019 = vmatpush1.msra.mxu0 0.0
        %2020 = vmatprep.subr.mxu0 0.0
        %2021 = vmatpush1.msra.mxu0 0.0
        %2022 = vmatprep.subr.mxu0 0.0
        %2023 = vmatpush1.msra.mxu0 0.0
        %2024 = vmatprep.subr.mxu0 0.0
        %2025 = vmatpush1.msra.mxu0 0.0
        %2026 = vmatprep.subr.mxu0 0.0
        %2027 = vmatpush1.msra.mxu0 0.0
        %2028 = vmatprep.subr.mxu0 0.0
        %2029 = vmatpush1.msra.mxu0 0.0
        %2030 = vmatprep.mubr.f32.mxu0 0.0
        %2031 = vmatmul.mubr.f32.gmra.mrb[0].mxu0 %v1943
        %v2032 = vpop.f32.mrb[0].mxu0
        %v2033 = vadd.f32 0.0, %v2032
        %v2034 = vpop.f32.mrb[0].mxu0
        %v2035 = vadd.f32 0.0, %v2034
        %2036 = vmatprep.mubr.f32.mxu0 0.0
        %2037 = vmatmul.mubr.f32.gmra.mrb[0].mxu0 %v1946
        %v2038 = vpop.f32.mrb[0].mxu0
        %v2039 = vadd.f32 0.0, %v2038
        %v2040 = vpop.f32.mrb[0].mxu0
        %v2041 = vadd.f32 0.0, %v2040
        %2042 = vmatprep.mubr.f32.mxu0 0.0
        %2043 = vmatmul.mubr.f32.gmra.mrb[0].mxu0 %v1949
        %v2044 = vpop.f32.mrb[0].mxu0
        %v2045 = vadd.f32 0.0, %v2044
        %v2046 = vpop.f32.mrb[0].mxu0
        %v2047 = vadd.f32 0.0, %v2046
        %2048 = vmatprep.mubr.f32.mxu0 0.0
        %2049 = vmatmul.mubr.f32.gmra.mrb[0].mxu0 %v1952
        %v2050 = vpop.f32.mrb[0].mxu0
        %v2051 = vadd.f32 0.0, %v2050
        %v2052 = vpop.f32.mrb[0].mxu0
        %v2053 = vadd.f32 0.0, %v2052
        %2054 = vmatprep.mubr.f32.mxu0 0.0
        %2055 = vmatmul.mubr.f32.gmra.mrb[0].mxu0 %v1955
        %v2056 = vpop.f32.mrb[0].mxu0
        %v2057 = vadd.f32 0.0, %v2056
        %v2058 = vpop.f32.mrb[0].mxu0
        %v2059 = vadd.f32 0.0, %v2058
        %2060 = vmatprep.mubr.f32.mxu0 0.0
        %2061 = vmatmul.mubr.f32.gmra.mrb[0].mxu0 %v1958
        %v2062 = vpop.f32.mrb[0].mxu0
        %v2063 = vadd.f32 0.0, %v2062
        %v2064 = vpop.f32.mrb[0].mxu0
        %v2065 = vadd.f32 0.0, %v2064
        %2066 = vmatprep.mubr.f32.mxu0 0.0
        %2067 = vmatmul.mubr.f32.gmra.mrb[0].mxu0 %v1961
        %v2068 = vpop.f32.mrb[0].mxu0
        %v2069 = vadd.f32 0.0, %v2068
        %v2070 = vpop.f32.mrb[0].mxu0
        %v2071 = vadd.f32 0.0, %v2070
        %2072 = vmatprep.mubr.f32.mxu0 0.0
        %2073 = vmatmul.mubr.f32.gmra.mrb[0].mxu0 %v1964
        %v2074 = vpop.f32.mrb[0].mxu0
        %v2075 = vadd.f32 0.0, %v2074
        %v2076 = vpop.f32.mrb[0].mxu0
        %v2077 = vadd.f32 0.0, %v2076
        %2078 = vdwg.mxu0
        %v2079 = vadd.f32 %v1730, %v2033
        %v2080 = vadd.f32 %v1731, %v2035
        %v2081 = vadd.f32 %v1732, %v2039
        %v2082 = vadd.f32 %v1733, %v2041
        %v2083 = vadd.f32 %v1734, %v2045
        %v2084 = vadd.f32 %v1735, %v2047
        %v2085 = vadd.f32 %v1736, %v2051
        %v2086 = vadd.f32 %v1737, %v2053
        %v2087 = vadd.f32 %v1738, %v2057
        %v2088 = vadd.f32 %v1739, %v2059
        %v2089 = vadd.f32 %v1740, %v2063
        %v2090 = vadd.f32 %v1741, %v2065
        %v2091 = vadd.f32 %v1742, %v2069
        %v2092 = vadd.f32 %v1743, %v2071
        %v2093 = vadd.f32 %v1744, %v2075
        %v2094 = vadd.f32 %v1745, %v2077
        %s2095 = scalar_lea.vmem %s724, 512 [#allocation3]
        %v2096 = vld [vmem:[%s2095] sm:$0xff]
        %v2097 = vld [vmem:[%s2095 + $0x8] sm:$0xff]
        %v2098 = vld [vmem:[%s2095 + $0x10] sm:$0xff]
        %v2099 = vld [vmem:[%s2095 + $0x18] sm:$0xff]
        %v2100 = vld [vmem:[%s2095 + $0x20] sm:$0xff]
        %v2101 = vld [vmem:[%s2095 + $0x28] sm:$0xff]
        %v2102 = vld [vmem:[%s2095 + $0x30] sm:$0xff]
        %v2103 = vld [vmem:[%s2095 + $0x38] sm:$0xff]
        %s2104 = scalar_lea.vmem %s1, 768
        %v2105 = vld [vmem:[%s2104] sm:$0xff]
        %v2106 = vld [vmem:[%s2104 + $0x8] sm:$0xff]
        %v2107 = vld [vmem:[%s2104 + $0x10] sm:$0xff]
        %v2108 = vld [vmem:[%s2104 + $0x18] sm:$0xff]
        %v2109 = vld [vmem:[%s2104 + $0x20] sm:$0xff]
        %v2110 = vld [vmem:[%s2104 + $0x28] sm:$0xff]
        %v2111 = vld [vmem:[%s2104 + $0x30] sm:$0xff]
        %v2112 = vld [vmem:[%s2104 + $0x38] sm:$0xff]
        %v2113 = vld [vmem:[%s2104 + $0x40] sm:$0xff]
        %v2114 = vld [vmem:[%s2104 + $0x48] sm:$0xff]
        %v2115 = vld [vmem:[%s2104 + $0x50] sm:$0xff]
        %v2116 = vld [vmem:[%s2104 + $0x58] sm:$0xff]
        %v2117 = vld [vmem:[%s2104 + $0x60] sm:$0xff]
        %v2118 = vld [vmem:[%s2104 + $0x68] sm:$0xff]
        %v2119 = vld [vmem:[%s2104 + $0x70] sm:$0xff]
        %v2120 = vld [vmem:[%s2104 + $0x78] sm:$0xff]
        %v2121 = vld [vmem:[%s2104 + $0x80] sm:$0xff]
        %v2122 = vld [vmem:[%s2104 + $0x88] sm:$0xff]
        %v2123 = vld [vmem:[%s2104 + $0x90] sm:$0xff]
        %v2124 = vld [vmem:[%s2104 + $0x98] sm:$0xff]
        %v2125 = vld [vmem:[%s2104 + $0xa0] sm:$0xff]
        %v2126 = vld [vmem:[%s2104 + $0xa8] sm:$0xff]
        %v2127 = vld [vmem:[%s2104 + $0xb0] sm:$0xff]
        %v2128 = vld [vmem:[%s2104 + $0xb8] sm:$0xff]
        %v2130 = vsel %vm839, %v2096, 0
        %v2133 = vsel %vm839, %v2097, 0
        %v2136 = vsel %vm839, %v2098, 0
        %v2139 = vsel %vm839, %v2099, 0
        %v2142 = vsel %vm839, %v2100, 0
        %v2145 = vsel %vm839, %v2101, 0
        %v2148 = vsel %vm839, %v2102, 0
        %v2151 = vsel %vm839, %v2103, 0
        %2153 = vmatprep.subr.mxu0 %v2106
        %2154 = vmatpush1.msra.mxu0 %v2105
        %2155 = vmatprep.subr.mxu0 %v2108
        %2156 = vmatpush1.msra.mxu0 %v2107
        %2157 = vmatprep.subr.mxu0 %v2110
        %2158 = vmatpush1.msra.mxu0 %v2109
        %2159 = vmatprep.subr.mxu0 %v2112
        %2160 = vmatpush1.msra.mxu0 %v2111
        %2161 = vmatprep.subr.mxu0 %v2114
        %2162 = vmatpush1.msra.mxu0 %v2113
        %2163 = vmatprep.subr.mxu0 %v2116
        %2164 = vmatpush1.msra.mxu0 %v2115
        %2165 = vmatprep.subr.mxu0 %v2118
        %2166 = vmatpush1.msra.mxu0 %v2117
        %2167 = vmatprep.subr.mxu0 %v2120
        %2168 = vmatpush1.msra.mxu0 %v2119
        %2169 = vmatprep.subr.mxu0 %v2122
        %2170 = vmatpush1.msra.mxu0 %v2121
        %2171 = vmatprep.subr.mxu0 %v2124
        %2172 = vmatpush1.msra.mxu0 %v2123
        %2173 = vmatprep.subr.mxu0 %v2126
        %2174 = vmatpush1.msra.mxu0 %v2125
        %2175 = vmatprep.subr.mxu0 %v2128
        %2176 = vmatpush1.msra.mxu0 %v2127
        %2177 = vmatprep.subr.mxu0 0.0
        %2178 = vmatpush1.msra.mxu0 0.0
        %2179 = vmatprep.subr.mxu0 0.0
        %2180 = vmatpush1.msra.mxu0 0.0
        %2181 = vmatprep.subr.mxu0 0.0
        %2182 = vmatpush1.msra.mxu0 0.0
        %2183 = vmatprep.subr.mxu0 0.0
        %2184 = vmatpush1.msra.mxu0 0.0
        %2185 = vmatprep.subr.mxu0 0.0
        %2186 = vmatpush1.msra.mxu0 0.0
        %2187 = vmatprep.subr.mxu0 0.0
        %2188 = vmatpush1.msra.mxu0 0.0
        %2189 = vmatprep.subr.mxu0 0.0
        %2190 = vmatpush1.msra.mxu0 0.0
        %2191 = vmatprep.subr.mxu0 0.0
        %2192 = vmatpush1.msra.mxu0 0.0
        %2193 = vmatprep.subr.mxu0 0.0
        %2194 = vmatpush1.msra.mxu0 0.0
        %2195 = vmatprep.subr.mxu0 0.0
        %2196 = vmatpush1.msra.mxu0 0.0
        %2197 = vmatprep.subr.mxu0 0.0
        %2198 = vmatpush1.msra.mxu0 0.0
        %2199 = vmatprep.subr.mxu0 0.0
        %2200 = vmatpush1.msra.mxu0 0.0
        %2201 = vmatprep.subr.mxu0 0.0
        %2202 = vmatpush1.msra.mxu0 0.0
        %2203 = vmatprep.subr.mxu0 0.0
        %2204 = vmatpush1.msra.mxu0 0.0
        %2205 = vmatprep.subr.mxu0 0.0
        %2206 = vmatpush1.msra.mxu0 0.0
        %2207 = vmatprep.subr.mxu0 0.0
        %2208 = vmatpush1.msra.mxu0 0.0
        %2209 = vmatprep.subr.mxu0 0.0
        %2210 = vmatpush1.msra.mxu0 0.0
        %2211 = vmatprep.subr.mxu0 0.0
        %2212 = vmatpush1.msra.mxu0 0.0
        %2213 = vmatprep.subr.mxu0 0.0
        %2214 = vmatpush1.msra.mxu0 0.0
        %2215 = vmatprep.subr.mxu0 0.0
        %2216 = vmatpush1.msra.mxu0 0.0
        %2217 = vmatprep.mubr.f32.mxu0 0.0
        %2218 = vmatmul.mubr.f32.gmra.mrb[0].mxu0 %v2130
        %v2219 = vpop.f32.mrb[0].mxu0
        %v2220 = vadd.f32 0.0, %v2219
        %v2221 = vpop.f32.mrb[0].mxu0
        %v2222 = vadd.f32 0.0, %v2221
        %2223 = vmatprep.mubr.f32.mxu0 0.0
        %2224 = vmatmul.mubr.f32.gmra.mrb[0].mxu0 %v2133
        %v2225 = vpop.f32.mrb[0].mxu0
        %v2226 = vadd.f32 0.0, %v2225
        %v2227 = vpop.f32.mrb[0].mxu0
        %v2228 = vadd.f32 0.0, %v2227
        %2229 = vmatprep.mubr.f32.mxu0 0.0
        %2230 = vmatmul.mubr.f32.gmra.mrb[0].mxu0 %v2136
        %v2231 = vpop.f32.mrb[0].mxu0
        %v2232 = vadd.f32 0.0, %v2231
        %v2233 = vpop.f32.mrb[0].mxu0
        %v2234 = vadd.f32 0.0, %v2233
        %2235 = vmatprep.mubr.f32.mxu0 0.0
        %2236 = vmatmul.mubr.f32.gmra.mrb[0].mxu0 %v2139
        %v2237 = vpop.f32.mrb[0].mxu0
        %v2238 = vadd.f32 0.0, %v2237
        %v2239 = vpop.f32.mrb[0].mxu0
        %v2240 = vadd.f32 0.0, %v2239
        %2241 = vmatprep.mubr.f32.mxu0 0.0
        %2242 = vmatmul.mubr.f32.gmra.mrb[0].mxu0 %v2142
        %v2243 = vpop.f32.mrb[0].mxu0
        %v2244 = vadd.f32 0.0, %v2243
        %v2245 = vpop.f32.mrb[0].mxu0
        %v2246 = vadd.f32 0.0, %v2245
        %2247 = vmatprep.mubr.f32.mxu0 0.0
        %2248 = vmatmul.mubr.f32.gmra.mrb[0].mxu0 %v2145
        %v2249 = vpop.f32.mrb[0].mxu0
        %v2250 = vadd.f32 0.0, %v2249
        %v2251 = vpop.f32.mrb[0].mxu0
        %v2252 = vadd.f32 0.0, %v2251
        %2253 = vmatprep.mubr.f32.mxu0 0.0
        %2254 = vmatmul.mubr.f32.gmra.mrb[0].mxu0 %v2148
        %v2255 = vpop.f32.mrb[0].mxu0
        %v2256 = vadd.f32 0.0, %v2255
        %v2257 = vpop.f32.mrb[0].mxu0
        %v2258 = vadd.f32 0.0, %v2257
        %2259 = vmatprep.mubr.f32.mxu0 0.0
        %2260 = vmatmul.mubr.f32.gmra.mrb[0].mxu0 %v2151
        %v2261 = vpop.f32.mrb[0].mxu0
        %v2262 = vadd.f32 0.0, %v2261
        %v2263 = vpop.f32.mrb[0].mxu0
        %v2264 = vadd.f32 0.0, %v2263
        %2265 = vdwg.mxu0
        %v2266 = vadd.f32 %v1917, %v2220
        %v2267 = vadd.f32 %v1918, %v2222
        %v2268 = vadd.f32 %v1919, %v2226
        %v2269 = vadd.f32 %v1920, %v2228
        %v2270 = vadd.f32 %v1921, %v2232
        %v2271 = vadd.f32 %v1922, %v2234
        %v2272 = vadd.f32 %v1923, %v2238
        %v2273 = vadd.f32 %v1924, %v2240
        %v2274 = vadd.f32 %v1925, %v2244
        %v2275 = vadd.f32 %v1926, %v2246
        %v2276 = vadd.f32 %v1927, %v2250
        %v2277 = vadd.f32 %v1928, %v2252
        %v2278 = vadd.f32 %v1929, %v2256
        %v2279 = vadd.f32 %v1930, %v2258
        %v2280 = vadd.f32 %v1931, %v2262
        %v2281 = vadd.f32 %v1932, %v2264
        %s2282 = scalar_lea.vmem %s724, 576 [#allocation3]
        %v2283 = vld [vmem:[%s2282] sm:$0xff]
        %v2284 = vld [vmem:[%s2282 + $0x8] sm:$0xff]
        %v2285 = vld [vmem:[%s2282 + $0x10] sm:$0xff]
        %v2286 = vld [vmem:[%s2282 + $0x18] sm:$0xff]
        %v2287 = vld [vmem:[%s2282 + $0x20] sm:$0xff]
        %v2288 = vld [vmem:[%s2282 + $0x28] sm:$0xff]
        %v2289 = vld [vmem:[%s2282 + $0x30] sm:$0xff]
        %v2290 = vld [vmem:[%s2282 + $0x38] sm:$0xff]
        %v2292 = vsel %vm839, %v2283, 0
        %v2295 = vsel %vm839, %v2284, 0
        %v2298 = vsel %vm839, %v2285, 0
        %v2301 = vsel %vm839, %v2286, 0
        %v2304 = vsel %vm839, %v2287, 0
        %v2307 = vsel %vm839, %v2288, 0
        %v2310 = vsel %vm839, %v2289, 0
        %v2313 = vsel %vm839, %v2290, 0
        %2315 = vmatprep.subr.mxu0 %v2106
        %2316 = vmatpush1.msra.mxu0 %v2105
        %2317 = vmatprep.subr.mxu0 %v2108
        %2318 = vmatpush1.msra.mxu0 %v2107
        %2319 = vmatprep.subr.mxu0 %v2110
        %2320 = vmatpush1.msra.mxu0 %v2109
        %2321 = vmatprep.subr.mxu0 %v2112
        %2322 = vmatpush1.msra.mxu0 %v2111
        %2323 = vmatprep.subr.mxu0 %v2114
        %2324 = vmatpush1.msra.mxu0 %v2113
        %2325 = vmatprep.subr.mxu0 %v2116
        %2326 = vmatpush1.msra.mxu0 %v2115
        %2327 = vmatprep.subr.mxu0 %v2118
        %2328 = vmatpush1.msra.mxu0 %v2117
        %2329 = vmatprep.subr.mxu0 %v2120
        %2330 = vmatpush1.msra.mxu0 %v2119
        %2331 = vmatprep.subr.mxu0 %v2122
        %2332 = vmatpush1.msra.mxu0 %v2121
        %2333 = vmatprep.subr.mxu0 %v2124
        %2334 = vmatpush1.msra.mxu0 %v2123
        %2335 = vmatprep.subr.mxu0 %v2126
        %2336 = vmatpush1.msra.mxu0 %v2125
        %2337 = vmatprep.subr.mxu0 %v2128
        %2338 = vmatpush1.msra.mxu0 %v2127
        %2339 = vmatprep.subr.mxu0 0.0
        %2340 = vmatpush1.msra.mxu0 0.0
        %2341 = vmatprep.subr.mxu0 0.0
        %2342 = vmatpush1.msra.mxu0 0.0
        %2343 = vmatprep.subr.mxu0 0.0
        %2344 = vmatpush1.msra.mxu0 0.0
        %2345 = vmatprep.subr.mxu0 0.0
        %2346 = vmatpush1.msra.mxu0 0.0
        %2347 = vmatprep.subr.mxu0 0.0
        %2348 = vmatpush1.msra.mxu0 0.0
        %2349 = vmatprep.subr.mxu0 0.0
        %2350 = vmatpush1.msra.mxu0 0.0
        %2351 = vmatprep.subr.mxu0 0.0
        %2352 = vmatpush1.msra.mxu0 0.0
        %2353 = vmatprep.subr.mxu0 0.0
        %2354 = vmatpush1.msra.mxu0 0.0
        %2355 = vmatprep.subr.mxu0 0.0
        %2356 = vmatpush1.msra.mxu0 0.0
        %2357 = vmatprep.subr.mxu0 0.0
        %2358 = vmatpush1.msra.mxu0 0.0
        %2359 = vmatprep.subr.mxu0 0.0
        %2360 = vmatpush1.msra.mxu0 0.0
        %2361 = vmatprep.subr.mxu0 0.0
        %2362 = vmatpush1.msra.mxu0 0.0
        %2363 = vmatprep.subr.mxu0 0.0
        %2364 = vmatpush1.msra.mxu0 0.0
        %2365 = vmatprep.subr.mxu0 0.0
        %2366 = vmatpush1.msra.mxu0 0.0
        %2367 = vmatprep.subr.mxu0 0.0
        %2368 = vmatpush1.msra.mxu0 0.0
        %2369 = vmatprep.subr.mxu0 0.0
        %2370 = vmatpush1.msra.mxu0 0.0
        %2371 = vmatprep.subr.mxu0 0.0
        %2372 = vmatpush1.msra.mxu0 0.0
        %2373 = vmatprep.subr.mxu0 0.0
        %2374 = vmatpush1.msra.mxu0 0.0
        %2375 = vmatprep.subr.mxu0 0.0
        %2376 = vmatpush1.msra.mxu0 0.0
        %2377 = vmatprep.subr.mxu0 0.0
        %2378 = vmatpush1.msra.mxu0 0.0
        %2379 = vmatprep.mubr.f32.mxu0 0.0
        %2380 = vmatmul.mubr.f32.gmra.mrb[0].mxu0 %v2292
        %v2381 = vpop.f32.mrb[0].mxu0
        %v2382 = vadd.f32 0.0, %v2381
        %v2383 = vpop.f32.mrb[0].mxu0
        %v2384 = vadd.f32 0.0, %v2383
        %2385 = vmatprep.mubr.f32.mxu0 0.0
        %2386 = vmatmul.mubr.f32.gmra.mrb[0].mxu0 %v2295
        %v2387 = vpop.f32.mrb[0].mxu0
        %v2388 = vadd.f32 0.0, %v2387
        %v2389 = vpop.f32.mrb[0].mxu0
        %v2390 = vadd.f32 0.0, %v2389
        %2391 = vmatprep.mubr.f32.mxu0 0.0
        %2392 = vmatmul.mubr.f32.gmra.mrb[0].mxu0 %v2298
        %v2393 = vpop.f32.mrb[0].mxu0
        %v2394 = vadd.f32 0.0, %v2393
        %v2395 = vpop.f32.mrb[0].mxu0
        %v2396 = vadd.f32 0.0, %v2395
        %2397 = vmatprep.mubr.f32.mxu0 0.0
        %2398 = vmatmul.mubr.f32.gmra.mrb[0].mxu0 %v2301
        %v2399 = vpop.f32.mrb[0].mxu0
        %v2400 = vadd.f32 0.0, %v2399
        %v2401 = vpop.f32.mrb[0].mxu0
        %v2402 = vadd.f32 0.0, %v2401
        %2403 = vmatprep.mubr.f32.mxu0 0.0
        %2404 = vmatmul.mubr.f32.gmra.mrb[0].mxu0 %v2304
        %v2405 = vpop.f32.mrb[0].mxu0
        %v2406 = vadd.f32 0.0, %v2405
        %v2407 = vpop.f32.mrb[0].mxu0
        %v2408 = vadd.f32 0.0, %v2407
        %2409 = vmatprep.mubr.f32.mxu0 0.0
        %2410 = vmatmul.mubr.f32.gmra.mrb[0].mxu0 %v2307
        %v2411 = vpop.f32.mrb[0].mxu0
        %v2412 = vadd.f32 0.0, %v2411
        %v2413 = vpop.f32.mrb[0].mxu0
        %v2414 = vadd.f32 0.0, %v2413
        %2415 = vmatprep.mubr.f32.mxu0 0.0
        %2416 = vmatmul.mubr.f32.gmra.mrb[0].mxu0 %v2310
        %v2417 = vpop.f32.mrb[0].mxu0
        %v2418 = vadd.f32 0.0, %v2417
        %v2419 = vpop.f32.mrb[0].mxu0
        %v2420 = vadd.f32 0.0, %v2419
        %2421 = vmatprep.mubr.f32.mxu0 0.0
        %2422 = vmatmul.mubr.f32.gmra.mrb[0].mxu0 %v2313
        %v2423 = vpop.f32.mrb[0].mxu0
        %v2424 = vadd.f32 0.0, %v2423
        %v2425 = vpop.f32.mrb[0].mxu0
        %v2426 = vadd.f32 0.0, %v2425
        %2427 = vdwg.mxu0
        %v2428 = vadd.f32 %v2079, %v2382
        %v2429 = vadd.f32 %v2080, %v2384
        %v2430 = vadd.f32 %v2081, %v2388
        %v2431 = vadd.f32 %v2082, %v2390
        %v2432 = vadd.f32 %v2083, %v2394
        %v2433 = vadd.f32 %v2084, %v2396
        %v2434 = vadd.f32 %v2085, %v2400
        %v2435 = vadd.f32 %v2086, %v2402
        %v2436 = vadd.f32 %v2087, %v2406
        %v2437 = vadd.f32 %v2088, %v2408
        %v2438 = vadd.f32 %v2089, %v2412
        %v2439 = vadd.f32 %v2090, %v2414
        %v2440 = vadd.f32 %v2091, %v2418
        %v2441 = vadd.f32 %v2092, %v2420
        %v2442 = vadd.f32 %v2093, %v2424
        %v2443 = vadd.f32 %v2094, %v2426
        %v2444 = vld [vmem:[%s2] sm:$0x3]
        %v2446 = vlaneseq
        %v2447 = vshrl.u32 %v2446, 7
        %v2448 = vsub.s32 0, %v2447
        %v2449 = vrot.slane %v2444, %v2448
        %v2450 = vlaneseq
        %v2451 = vshrl.u32 %v2450, 7
        %v2452 = vsub.s32 1, %v2451
        %v2453 = vrot.slane %v2444, %v2452
        %v2456 = vadd.f32 %v2266, %v2449
        %v2457 = vadd.f32 %v2267, %v2453
        %v2458 = vadd.f32 %v2268, %v2449
        %v2459 = vadd.f32 %v2269, %v2453
        %v2460 = vadd.f32 %v2270, %v2449
        %v2461 = vadd.f32 %v2271, %v2453
        %v2462 = vadd.f32 %v2272, %v2449
        %v2463 = vadd.f32 %v2273, %v2453
        %v2464 = vadd.f32 %v2274, %v2449
        %v2465 = vadd.f32 %v2275, %v2453
        %v2466 = vadd.f32 %v2276, %v2449
        %v2467 = vadd.f32 %v2277, %v2453
        %v2468 = vadd.f32 %v2278, %v2449
        %v2469 = vadd.f32 %v2279, %v2453
        %v2470 = vadd.f32 %v2280, %v2449
        %v2471 = vadd.f32 %v2281, %v2453
        %v2472 = vmax.f32 %v2456, 0.0
        %v2473 = vmax.f32 %v2457, 0.0
        %v2474 = vmax.f32 %v2458, 0.0
        %v2475 = vmax.f32 %v2459, 0.0
        %v2476 = vmax.f32 %v2460, 0.0
        %v2477 = vmax.f32 %v2461, 0.0
        %v2478 = vmax.f32 %v2462, 0.0
        %v2479 = vmax.f32 %v2463, 0.0
        %v2480 = vmax.f32 %v2464, 0.0
        %v2481 = vmax.f32 %v2465, 0.0
        %v2482 = vmax.f32 %v2466, 0.0
        %v2483 = vmax.f32 %v2467, 0.0
        %v2484 = vmax.f32 %v2468, 0.0
        %v2485 = vmax.f32 %v2469, 0.0
        %v2486 = vmax.f32 %v2470, 0.0
        %v2487 = vmax.f32 %v2471, 0.0
        %v2488 = vadd.f32 %v2428, %v2449
        %v2489 = vadd.f32 %v2429, %v2453
        %v2490 = vadd.f32 %v2430, %v2449
        %v2491 = vadd.f32 %v2431, %v2453
        %v2492 = vadd.f32 %v2432, %v2449
        %v2493 = vadd.f32 %v2433, %v2453
        %v2494 = vadd.f32 %v2434, %v2449
        %v2495 = vadd.f32 %v2435, %v2453
        %v2496 = vadd.f32 %v2436, %v2449
        %v2497 = vadd.f32 %v2437, %v2453
        %v2498 = vadd.f32 %v2438, %v2449
        %v2499 = vadd.f32 %v2439, %v2453
        %v2500 = vadd.f32 %v2440, %v2449
        %v2501 = vadd.f32 %v2441, %v2453
        %v2502 = vadd.f32 %v2442, %v2449
        %v2503 = vadd.f32 %v2443, %v2453
        %v2504 = vmax.f32 %v2488, 0.0
        %v2505 = vmax.f32 %v2489, 0.0
        %v2506 = vmax.f32 %v2490, 0.0
        %v2507 = vmax.f32 %v2491, 0.0
        %v2508 = vmax.f32 %v2492, 0.0
        %v2509 = vmax.f32 %v2493, 0.0
        %v2510 = vmax.f32 %v2494, 0.0
        %v2511 = vmax.f32 %v2495, 0.0
        %v2512 = vmax.f32 %v2496, 0.0
        %v2513 = vmax.f32 %v2497, 0.0
        %v2514 = vmax.f32 %v2498, 0.0
        %v2515 = vmax.f32 %v2499, 0.0
        %v2516 = vmax.f32 %v2500, 0.0
        %v2517 = vmax.f32 %v2501, 0.0
        %v2518 = vmax.f32 %v2502, 0.0
        %v2519 = vmax.f32 %v2503, 0.0
        %v2520 = vmax.f32 %v2472, %v2504
        %v2521 = vmax.f32 %v2473, %v2505
        %v2522 = vmax.f32 %v2474, %v2506
        %v2523 = vmax.f32 %v2475, %v2507
        %v2524 = vmax.f32 %v2476, %v2508
        %v2525 = vmax.f32 %v2477, %v2509
        %v2526 = vmax.f32 %v2478, %v2510
        %v2527 = vmax.f32 %v2479, %v2511
        %v2528 = vmax.f32 %v2480, %v2512
        %v2529 = vmax.f32 %v2481, %v2513
        %v2530 = vmax.f32 %v2482, %v2514
        %v2531 = vmax.f32 %v2483, %v2515
        %v2532 = vmax.f32 %v2484, %v2516
        %v2533 = vmax.f32 %v2485, %v2517
        %v2534 = vmax.f32 %v2486, %v2518
        %v2535 = vmax.f32 %v2487, %v2519
        %v2536 = vmax.f32 %v2520, %v2521
        %v2537 = vmax.f32 %v2522, %v2523
        %v2538 = vmax.f32 %v2524, %v2525
        %v2539 = vmax.f32 %v2526, %v2527
        %v2540 = vmax.f32 %v2528, %v2529
        %v2541 = vmax.f32 %v2530, %v2531
        %v2542 = vmax.f32 %v2532, %v2533
        %v2543 = vmax.f32 %v2534, %v2535
        %2544 = vst [vmem:[#allocation2] sm:$0xff] %v2536
        %2545 = vst [vmem:[#allocation2 + $0x8] sm:$0xff] %v2537
        %2546 = vst [vmem:[#allocation2 + $0x10] sm:$0xff] %v2538
        %2547 = vst [vmem:[#allocation2 + $0x18] sm:$0xff] %v2539
        %2548 = vst [vmem:[#allocation2 + $0x20] sm:$0xff] %v2540
        %2549 = vst [vmem:[#allocation2 + $0x28] sm:$0xff] %v2541
        %2550 = vst [vmem:[#allocation2 + $0x30] sm:$0xff] %v2542
        %2551 = vst [vmem:[#allocation2 + $0x38] sm:$0xff] %v2543
        %2552 = vst [vmem:[#allocation2 + $0x40] sm:$0xff] 0.0
        %v2553 = vld [vmem:[#allocation2] sm:$0xff]
        %v2554 = vld [vmem:[#allocation2 + $0x8] sm:$0xff]
        %v2555 = vld [vmem:[#allocation2 + $0x10] sm:$0xff]
        %v2556 = vld [vmem:[#allocation2 + $0x18] sm:$0xff]
        %v2557 = vld [vmem:[#allocation2 + $0x20] sm:$0xff]
        %v2558 = vld [vmem:[#allocation2 + $0x28] sm:$0xff]
        %v2559 = vld [vmem:[#allocation2 + $0x30] sm:$0xff]
        %v2560 = vld [vmem:[#allocation2 + $0x38] sm:$0xff]
        %v2561 = vld [vmem:[%s3] sm:$0xff]
        %v2562 = vld [vmem:[%s3 + $0x8] sm:$0xff]
        %v2563 = vld [vmem:[%s3 + $0x10] sm:$0xff]
        %v2564 = vld [vmem:[%s3 + $0x18] sm:$0xff]
        %v2565 = vld [vmem:[%s3 + $0x20] sm:$0xff]
        %v2566 = vld [vmem:[%s3 + $0x28] sm:$0xff]
        %v2567 = vld [vmem:[%s3 + $0x30] sm:$0xff]
        %v2568 = vld [vmem:[%s3 + $0x38] sm:$0xff]
        %v2569 = vld [vmem:[%s3 + $0x40] sm:$0xff]
        %v2570 = vld [vmem:[%s3 + $0x48] sm:$0xff]
        %v2571 = vld [vmem:[%s3 + $0x50] sm:$0xff]
        %v2572 = vld [vmem:[%s3 + $0x58] sm:$0xff]
        %v2573 = vld [vmem:[%s3 + $0x60] sm:$0xff]
        %v2574 = vld [vmem:[%s3 + $0x68] sm:$0xff]
        %v2575 = vld [vmem:[%s3 + $0x70] sm:$0xff]
        %v2576 = vld [vmem:[%s3 + $0x78] sm:$0xff]
        %v2577 = vld [vmem:[%s3 + $0x80] sm:$0xff]
        %v2578 = vld [vmem:[%s3 + $0x88] sm:$0xff]
        %v2579 = vld [vmem:[%s3 + $0x90] sm:$0xff]
        %v2580 = vld [vmem:[%s3 + $0x98] sm:$0xff]
        %v2581 = vld [vmem:[%s3 + $0xa0] sm:$0xff]
        %v2582 = vld [vmem:[%s3 + $0xa8] sm:$0xff]
        %v2583 = vld [vmem:[%s3 + $0xb0] sm:$0xff]
        %v2584 = vld [vmem:[%s3 + $0xb8] sm:$0xff]
        %v2585 = vld [vmem:[%s3 + $0xc0] sm:$0xff]
        %v2586 = vld [vmem:[%s3 + $0xc8] sm:$0xff]
        %v2587 = vld [vmem:[%s3 + $0xd0] sm:$0xff]
        %v2588 = vld [vmem:[%s3 + $0xd8] sm:$0xff]
        %v2589 = vld [vmem:[%s3 + $0xe0] sm:$0xff]
        %v2590 = vld [vmem:[%s3 + $0xe8] sm:$0xff]
        %v2591 = vld [vmem:[%s3 + $0xf0] sm:$0xff]
        %v2592 = vld [vmem:[%s3 + $0xf8] sm:$0xff]
        %v2593 = vld [vmem:[#allocation2 + $0x1] sm:$0xff]
        %v2594 = vld [vmem:[#allocation2 + $0x9] sm:$0xff]
        %v2595 = vld [vmem:[#allocation2 + $0x11] sm:$0xff]
        %v2596 = vld [vmem:[#allocation2 + $0x19] sm:$0xff]
        %v2597 = vld [vmem:[#allocation2 + $0x21] sm:$0xff]
        %v2598 = vld [vmem:[#allocation2 + $0x29] sm:$0xff]
        %v2599 = vld [vmem:[#allocation2 + $0x31] sm:$0xff]
        %v2600 = vld [vmem:[#allocation2 + $0x39] sm:$0xff]
        %s2601 = scalar_lea.vmem %s3, 256
        %v2602 = vld [vmem:[%s2601] sm:$0xff]
        %v2603 = vld [vmem:[%s2601 + $0x8] sm:$0xff]
        %v2604 = vld [vmem:[%s2601 + $0x10] sm:$0xff]
        %v2605 = vld [vmem:[%s2601 + $0x18] sm:$0xff]
        %v2606 = vld [vmem:[%s2601 + $0x20] sm:$0xff]
        %v2607 = vld [vmem:[%s2601 + $0x28] sm:$0xff]
        %v2608 = vld [vmem:[%s2601 + $0x30] sm:$0xff]
        %v2609 = vld [vmem:[%s2601 + $0x38] sm:$0xff]
        %v2610 = vld [vmem:[%s2601 + $0x40] sm:$0xff]
        %v2611 = vld [vmem:[%s2601 + $0x48] sm:$0xff]
        %v2612 = vld [vmem:[%s2601 + $0x50] sm:$0xff]
        %v2613 = vld [vmem:[%s2601 + $0x58] sm:$0xff]
        %v2614 = vld [vmem:[%s2601 + $0x60] sm:$0xff]
        %v2615 = vld [vmem:[%s2601 + $0x68] sm:$0xff]
        %v2616 = vld [vmem:[%s2601 + $0x70] sm:$0xff]
        %v2617 = vld [vmem:[%s2601 + $0x78] sm:$0xff]
        %v2618 = vld [vmem:[%s2601 + $0x80] sm:$0xff]
        %v2619 = vld [vmem:[%s2601 + $0x88] sm:$0xff]
        %v2620 = vld [vmem:[%s2601 + $0x90] sm:$0xff]
        %v2621 = vld [vmem:[%s2601 + $0x98] sm:$0xff]
        %v2622 = vld [vmem:[%s2601 + $0xa0] sm:$0xff]
        %v2623 = vld [vmem:[%s2601 + $0xa8] sm:$0xff]
        %v2624 = vld [vmem:[%s2601 + $0xb0] sm:$0xff]
        %v2625 = vld [vmem:[%s2601 + $0xb8] sm:$0xff]
        %v2626 = vld [vmem:[%s2601 + $0xc0] sm:$0xff]
        %v2627 = vld [vmem:[%s2601 + $0xc8] sm:$0xff]
        %v2628 = vld [vmem:[%s2601 + $0xd0] sm:$0xff]
        %v2629 = vld [vmem:[%s2601 + $0xd8] sm:$0xff]
        %v2630 = vld [vmem:[%s2601 + $0xe0] sm:$0xff]
        %v2631 = vld [vmem:[%s2601 + $0xe8] sm:$0xff]
        %v2632 = vld [vmem:[%s2601 + $0xf0] sm:$0xff]
        %v2633 = vld [vmem:[%s2601 + $0xf8] sm:$0xff]
        %2634 = vmatprep.subr.mxu0 %v2603
        %2635 = vmatpush1.msra.mxu0 %v2602
        %2636 = vmatprep.subr.mxu0 %v2605
        %2637 = vmatpush1.msra.mxu0 %v2604
        %2638 = vmatprep.subr.mxu0 %v2607
        %2639 = vmatpush1.msra.mxu0 %v2606
        %2640 = vmatprep.subr.mxu0 %v2609
        %2641 = vmatpush1.msra.mxu0 %v2608
        %2642 = vmatprep.subr.mxu0 %v2611
        %2643 = vmatpush1.msra.mxu0 %v2610
        %2644 = vmatprep.subr.mxu0 %v2613
        %2645 = vmatpush1.msra.mxu0 %v2612
        %2646 = vmatprep.subr.mxu0 %v2615
        %2647 = vmatpush1.msra.mxu0 %v2614
        %2648 = vmatprep.subr.mxu0 %v2617
        %2649 = vmatpush1.msra.mxu0 %v2616
        %2650 = vmatprep.subr.mxu0 %v2619
        %2651 = vmatpush1.msra.mxu0 %v2618
        %2652 = vmatprep.subr.mxu0 %v2621
        %2653 = vmatpush1.msra.mxu0 %v2620
        %2654 = vmatprep.subr.mxu0 %v2623
        %2655 = vmatpush1.msra.mxu0 %v2622
        %2656 = vmatprep.subr.mxu0 %v2625
        %2657 = vmatpush1.msra.mxu0 %v2624
        %2658 = vmatprep.subr.mxu0 %v2627
        %2659 = vmatpush1.msra.mxu0 %v2626
        %2660 = vmatprep.subr.mxu0 %v2629
        %2661 = vmatpush1.msra.mxu0 %v2628
        %2662 = vmatprep.subr.mxu0 %v2631
        %2663 = vmatpush1.msra.mxu0 %v2630
        %2664 = vmatprep.subr.mxu0 %v2633
        %2665 = vmatpush1.msra.mxu0 %v2632
        %2666 = vmatprep.subr.mxu0 0.0
        %2667 = vmatpush1.msra.mxu0 0.0
        %2668 = vmatprep.subr.mxu0 0.0
        %2669 = vmatpush1.msra.mxu0 0.0
        %2670 = vmatprep.subr.mxu0 0.0
        %2671 = vmatpush1.msra.mxu0 0.0
        %2672 = vmatprep.subr.mxu0 0.0
        %2673 = vmatpush1.msra.mxu0 0.0
        %2674 = vmatprep.subr.mxu0 0.0
        %2675 = vmatpush1.msra.mxu0 0.0
        %2676 = vmatprep.subr.mxu0 0.0
        %2677 = vmatpush1.msra.mxu0 0.0
        %2678 = vmatprep.subr.mxu0 0.0
        %2679 = vmatpush1.msra.mxu0 0.0
        %2680 = vmatprep.subr.mxu0 0.0
        %2681 = vmatpush1.msra.mxu0 0.0
        %2682 = vmatprep.subr.mxu0 0.0
        %2683 = vmatpush1.msra.mxu0 0.0
        %2684 = vmatprep.subr.mxu0 0.0
        %2685 = vmatpush1.msra.mxu0 0.0
        %2686 = vmatprep.subr.mxu0 0.0
        %2687 = vmatpush1.msra.mxu0 0.0
        %2688 = vmatprep.subr.mxu0 0.0
        %2689 = vmatpush1.msra.mxu0 0.0
        %2690 = vmatprep.subr.mxu0 0.0
        %2691 = vmatpush1.msra.mxu0 0.0
        %2692 = vmatprep.subr.mxu0 0.0
        %2693 = vmatpush1.msra.mxu0 0.0
        %2694 = vmatprep.subr.mxu0 0.0
        %2695 = vmatpush1.msra.mxu0 0.0
        %2696 = vmatprep.subr.mxu0 0.0
        %2697 = vmatpush1.msra.mxu0 0.0
        %2698 = vmatprep.mubr.f32.mxu0 0.0
        %2699 = vmatmul.mubr.f32.gmra.mrb[0].mxu0 %v2593
        %v2700 = vpop.f32.mrb[0].mxu0
        %v2701 = vadd.f32 0.0, %v2700
        %v2702 = vpop.f32.mrb[0].mxu0
        %v2703 = vadd.f32 0.0, %v2702
        %2704 = vmatprep.mubr.f32.mxu0 0.0
        %2705 = vmatmul.mubr.f32.gmra.mrb[0].mxu0 %v2594
        %v2706 = vpop.f32.mrb[0].mxu0
        %v2707 = vadd.f32 0.0, %v2706
        %v2708 = vpop.f32.mrb[0].mxu0
        %v2709 = vadd.f32 0.0, %v2708
        %2710 = vmatprep.mubr.f32.mxu0 0.0
        %2711 = vmatmul.mubr.f32.gmra.mrb[0].mxu0 %v2595
        %v2712 = vpop.f32.mrb[0].mxu0
        %v2713 = vadd.f32 0.0, %v2712
        %v2714 = vpop.f32.mrb[0].mxu0
        %v2715 = vadd.f32 0.0, %v2714
        %2716 = vmatprep.mubr.f32.mxu0 0.0
        %2717 = vmatmul.mubr.f32.gmra.mrb[0].mxu0 %v2596
        %v2718 = vpop.f32.mrb[0].mxu0
        %v2719 = vadd.f32 0.0, %v2718
        %v2720 = vpop.f32.mrb[0].mxu0
        %v2721 = vadd.f32 0.0, %v2720
        %2722 = vmatprep.mubr.f32.mxu0 0.0
        %2723 = vmatmul.mubr.f32.gmra.mrb[0].mxu0 %v2597
        %v2724 = vpop.f32.mrb[0].mxu0
        %v2725 = vadd.f32 0.0, %v2724
        %v2726 = vpop.f32.mrb[0].mxu0
        %v2727 = vadd.f32 0.0, %v2726
        %2728 = vmatprep.mubr.f32.mxu0 0.0
        %2729 = vmatmul.mubr.f32.gmra.mrb[0].mxu0 %v2598
        %v2730 = vpop.f32.mrb[0].mxu0
        %v2731 = vadd.f32 0.0, %v2730
        %v2732 = vpop.f32.mrb[0].mxu0
        %v2733 = vadd.f32 0.0, %v2732
        %2734 = vmatprep.mubr.f32.mxu0 0.0
        %2735 = vmatmul.mubr.f32.gmra.mrb[0].mxu0 %v2599
        %v2736 = vpop.f32.mrb[0].mxu0
        %v2737 = vadd.f32 0.0, %v2736
        %v2738 = vpop.f32.mrb[0].mxu0
        %v2739 = vadd.f32 0.0, %v2738
        %2740 = vmatprep.mubr.f32.mxu0 0.0
        %2741 = vmatmul.mubr.f32.gmra.mrb[0].mxu0 %v2600
        %v2742 = vpop.f32.mrb[0].mxu0
        %v2743 = vadd.f32 0.0, %v2742
        %v2744 = vpop.f32.mrb[0].mxu0
        %v2745 = vadd.f32 0.0, %v2744
        %2746 = vdwg.mxu0
        %2747 = vmatprep.subr.mxu0 %v2562
        %2748 = vmatpush1.msra.mxu0 %v2561
        %2749 = vmatprep.subr.mxu0 %v2564
        %2750 = vmatpush1.msra.mxu0 %v2563
        %2751 = vmatprep.subr.mxu0 %v2566
        %2752 = vmatpush1.msra.mxu0 %v2565
        %2753 = vmatprep.subr.mxu0 %v2568
        %2754 = vmatpush1.msra.mxu0 %v2567
        %2755 = vmatprep.subr.mxu0 %v2570
        %2756 = vmatpush1.msra.mxu0 %v2569
        %2757 = vmatprep.subr.mxu0 %v2572
        %2758 = vmatpush1.msra.mxu0 %v2571
        %2759 = vmatprep.subr.mxu0 %v2574
        %2760 = vmatpush1.msra.mxu0 %v2573
        %2761 = vmatprep.subr.mxu0 %v2576
        %2762 = vmatpush1.msra.mxu0 %v2575
        %2763 = vmatprep.subr.mxu0 %v2578
        %2764 = vmatpush1.msra.mxu0 %v2577
        %2765 = vmatprep.subr.mxu0 %v2580
        %2766 = vmatpush1.msra.mxu0 %v2579
        %2767 = vmatprep.subr.mxu0 %v2582
        %2768 = vmatpush1.msra.mxu0 %v2581
        %2769 = vmatprep.subr.mxu0 %v2584
        %2770 = vmatpush1.msra.mxu0 %v2583
        %2771 = vmatprep.subr.mxu0 %v2586
        %2772 = vmatpush1.msra.mxu0 %v2585
        %2773 = vmatprep.subr.mxu0 %v2588
        %2774 = vmatpush1.msra.mxu0 %v2587
        %2775 = vmatprep.subr.mxu0 %v2590
        %2776 = vmatpush1.msra.mxu0 %v2589
        %2777 = vmatprep.subr.mxu0 %v2592
        %2778 = vmatpush1.msra.mxu0 %v2591
        %2779 = vmatprep.subr.mxu0 0.0
        %2780 = vmatpush1.msra.mxu0 0.0
        %2781 = vmatprep.subr.mxu0 0.0
        %2782 = vmatpush1.msra.mxu0 0.0
        %2783 = vmatprep.subr.mxu0 0.0
        %2784 = vmatpush1.msra.mxu0 0.0
        %2785 = vmatprep.subr.mxu0 0.0
        %2786 = vmatpush1.msra.mxu0 0.0
        %2787 = vmatprep.subr.mxu0 0.0
        %2788 = vmatpush1.msra.mxu0 0.0
        %2789 = vmatprep.subr.mxu0 0.0
        %2790 = vmatpush1.msra.mxu0 0.0
        %2791 = vmatprep.subr.mxu0 0.0
        %2792 = vmatpush1.msra.mxu0 0.0
        %2793 = vmatprep.subr.mxu0 0.0
        %2794 = vmatpush1.msra.mxu0 0.0
        %2795 = vmatprep.subr.mxu0 0.0
        %2796 = vmatpush1.msra.mxu0 0.0
        %2797 = vmatprep.subr.mxu0 0.0
        %2798 = vmatpush1.msra.mxu0 0.0
        %2799 = vmatprep.subr.mxu0 0.0
        %2800 = vmatpush1.msra.mxu0 0.0
        %2801 = vmatprep.subr.mxu0 0.0
        %2802 = vmatpush1.msra.mxu0 0.0
        %2803 = vmatprep.subr.mxu0 0.0
        %2804 = vmatpush1.msra.mxu0 0.0
        %2805 = vmatprep.subr.mxu0 0.0
        %2806 = vmatpush1.msra.mxu0 0.0
        %2807 = vmatprep.subr.mxu0 0.0
        %2808 = vmatpush1.msra.mxu0 0.0
        %2809 = vmatprep.subr.mxu0 0.0
        %2810 = vmatpush1.msra.mxu0 0.0
        %2811 = vmatprep.mubr.f32.mxu0 0.0
        %2812 = vmatmul.mubr.f32.gmra.mrb[0].mxu0 %v2553
        %v2813 = vpop.f32.mrb[0].mxu0
        %v2814 = vadd.f32 %v2701, %v2813
        %v2815 = vpop.f32.mrb[0].mxu0
        %v2816 = vadd.f32 %v2703, %v2815
        %2817 = vmatprep.mubr.f32.mxu0 0.0
        %2818 = vmatmul.mubr.f32.gmra.mrb[0].mxu0 %v2554
        %v2819 = vpop.f32.mrb[0].mxu0
        %v2820 = vadd.f32 %v2707, %v2819
        %v2821 = vpop.f32.mrb[0].mxu0
        %v2822 = vadd.f32 %v2709, %v2821
        %2823 = vmatprep.mubr.f32.mxu0 0.0
        %2824 = vmatmul.mubr.f32.gmra.mrb[0].mxu0 %v2555
        %v2825 = vpop.f32.mrb[0].mxu0
        %v2826 = vadd.f32 %v2713, %v2825
        %v2827 = vpop.f32.mrb[0].mxu0
        %v2828 = vadd.f32 %v2715, %v2827
        %2829 = vmatprep.mubr.f32.mxu0 0.0
        %2830 = vmatmul.mubr.f32.gmra.mrb[0].mxu0 %v2556
        %v2831 = vpop.f32.mrb[0].mxu0
        %v2832 = vadd.f32 %v2719, %v2831
        %v2833 = vpop.f32.mrb[0].mxu0
        %v2834 = vadd.f32 %v2721, %v2833
        %2835 = vmatprep.mubr.f32.mxu0 0.0
        %2836 = vmatmul.mubr.f32.gmra.mrb[0].mxu0 %v2557
        %v2837 = vpop.f32.mrb[0].mxu0
        %v2838 = vadd.f32 %v2725, %v2837
        %v2839 = vpop.f32.mrb[0].mxu0
        %v2840 = vadd.f32 %v2727, %v2839
        %2841 = vmatprep.mubr.f32.mxu0 0.0
        %2842 = vmatmul.mubr.f32.gmra.mrb[0].mxu0 %v2558
        %v2843 = vpop.f32.mrb[0].mxu0
        %v2844 = vadd.f32 %v2731, %v2843
        %v2845 = vpop.f32.mrb[0].mxu0
        %v2846 = vadd.f32 %v2733, %v2845
        %2847 = vmatprep.mubr.f32.mxu0 0.0
        %2848 = vmatmul.mubr.f32.gmra.mrb[0].mxu0 %v2559
        %v2849 = vpop.f32.mrb[0].mxu0
        %v2850 = vadd.f32 %v2737, %v2849
        %v2851 = vpop.f32.mrb[0].mxu0
        %v2852 = vadd.f32 %v2739, %v2851
        %2853 = vmatprep.mubr.f32.mxu0 0.0
        %2854 = vmatmul.mubr.f32.gmra.mrb[0].mxu0 %v2560
        %v2855 = vpop.f32.mrb[0].mxu0
        %v2856 = vadd.f32 %v2743, %v2855
        %v2857 = vpop.f32.mrb[0].mxu0
        %v2858 = vadd.f32 %v2745, %v2857
        %2859 = vdwg.mxu0
        %v2860 = vld [vmem:[#allocation2 + $0x2] sm:$0xff]
        %v2861 = vld [vmem:[#allocation2 + $0xa] sm:$0xff]
        %v2862 = vld [vmem:[#allocation2 + $0x12] sm:$0xff]
        %v2863 = vld [vmem:[#allocation2 + $0x1a] sm:$0xff]
        %v2864 = vld [vmem:[#allocation2 + $0x22] sm:$0xff]
        %v2865 = vld [vmem:[#allocation2 + $0x2a] sm:$0xff]
        %v2866 = vld [vmem:[#allocation2 + $0x32] sm:$0xff]
        %v2867 = vld [vmem:[#allocation2 + $0x3a] sm:$0xff]
        %s2868 = scalar_lea.vmem %s3, 512
        %v2869 = vld [vmem:[%s2868] sm:$0xff]
        %v2870 = vld [vmem:[%s2868 + $0x8] sm:$0xff]
        %v2871 = vld [vmem:[%s2868 + $0x10] sm:$0xff]
        %v2872 = vld [vmem:[%s2868 + $0x18] sm:$0xff]
        %v2873 = vld [vmem:[%s2868 + $0x20] sm:$0xff]
        %v2874 = vld [vmem:[%s2868 + $0x28] sm:$0xff]
        %v2875 = vld [vmem:[%s2868 + $0x30] sm:$0xff]
        %v2876 = vld [vmem:[%s2868 + $0x38] sm:$0xff]
        %v2877 = vld [vmem:[%s2868 + $0x40] sm:$0xff]
        %v2878 = vld [vmem:[%s2868 + $0x48] sm:$0xff]
        %v2879 = vld [vmem:[%s2868 + $0x50] sm:$0xff]
        %v2880 = vld [vmem:[%s2868 + $0x58] sm:$0xff]
        %v2881 = vld [vmem:[%s2868 + $0x60] sm:$0xff]
        %v2882 = vld [vmem:[%s2868 + $0x68] sm:$0xff]
        %v2883 = vld [vmem:[%s2868 + $0x70] sm:$0xff]
        %v2884 = vld [vmem:[%s2868 + $0x78] sm:$0xff]
        %v2885 = vld [vmem:[%s2868 + $0x80] sm:$0xff]
        %v2886 = vld [vmem:[%s2868 + $0x88] sm:$0xff]
        %v2887 = vld [vmem:[%s2868 + $0x90] sm:$0xff]
        %v2888 = vld [vmem:[%s2868 + $0x98] sm:$0xff]
        %v2889 = vld [vmem:[%s2868 + $0xa0] sm:$0xff]
        %v2890 = vld [vmem:[%s2868 + $0xa8] sm:$0xff]
        %v2891 = vld [vmem:[%s2868 + $0xb0] sm:$0xff]
        %v2892 = vld [vmem:[%s2868 + $0xb8] sm:$0xff]
        %v2893 = vld [vmem:[%s2868 + $0xc0] sm:$0xff]
        %v2894 = vld [vmem:[%s2868 + $0xc8] sm:$0xff]
        %v2895 = vld [vmem:[%s2868 + $0xd0] sm:$0xff]
        %v2896 = vld [vmem:[%s2868 + $0xd8] sm:$0xff]
        %v2897 = vld [vmem:[%s2868 + $0xe0] sm:$0xff]
        %v2898 = vld [vmem:[%s2868 + $0xe8] sm:$0xff]
        %v2899 = vld [vmem:[%s2868 + $0xf0] sm:$0xff]
        %v2900 = vld [vmem:[%s2868 + $0xf8] sm:$0xff]
        %2901 = vmatprep.subr.mxu0 %v2870
        %2902 = vmatpush1.msra.mxu0 %v2869
        %2903 = vmatprep.subr.mxu0 %v2872
        %2904 = vmatpush1.msra.mxu0 %v2871
        %2905 = vmatprep.subr.mxu0 %v2874
        %2906 = vmatpush1.msra.mxu0 %v2873
        %2907 = vmatprep.subr.mxu0 %v2876
        %2908 = vmatpush1.msra.mxu0 %v2875
        %2909 = vmatprep.subr.mxu0 %v2878
        %2910 = vmatpush1.msra.mxu0 %v2877
        %2911 = vmatprep.subr.mxu0 %v2880
        %2912 = vmatpush1.msra.mxu0 %v2879
        %2913 = vmatprep.subr.mxu0 %v2882
        %2914 = vmatpush1.msra.mxu0 %v2881
        %2915 = vmatprep.subr.mxu0 %v2884
        %2916 = vmatpush1.msra.mxu0 %v2883
        %2917 = vmatprep.subr.mxu0 %v2886
        %2918 = vmatpush1.msra.mxu0 %v2885
        %2919 = vmatprep.subr.mxu0 %v2888
        %2920 = vmatpush1.msra.mxu0 %v2887
        %2921 = vmatprep.subr.mxu0 %v2890
        %2922 = vmatpush1.msra.mxu0 %v2889
        %2923 = vmatprep.subr.mxu0 %v2892
        %2924 = vmatpush1.msra.mxu0 %v2891
        %2925 = vmatprep.subr.mxu0 %v2894
        %2926 = vmatpush1.msra.mxu0 %v2893
        %2927 = vmatprep.subr.mxu0 %v2896
        %2928 = vmatpush1.msra.mxu0 %v2895
        %2929 = vmatprep.subr.mxu0 %v2898
        %2930 = vmatpush1.msra.mxu0 %v2897
        %2931 = vmatprep.subr.mxu0 %v2900
        %2932 = vmatpush1.msra.mxu0 %v2899
        %2933 = vmatprep.subr.mxu0 0.0
        %2934 = vmatpush1.msra.mxu0 0.0
        %2935 = vmatprep.subr.mxu0 0.0
        %2936 = vmatpush1.msra.mxu0 0.0
        %2937 = vmatprep.subr.mxu0 0.0
        %2938 = vmatpush1.msra.mxu0 0.0
        %2939 = vmatprep.subr.mxu0 0.0
        %2940 = vmatpush1.msra.mxu0 0.0
        %2941 = vmatprep.subr.mxu0 0.0
        %2942 = vmatpush1.msra.mxu0 0.0
        %2943 = vmatprep.subr.mxu0 0.0
        %2944 = vmatpush1.msra.mxu0 0.0
        %2945 = vmatprep.subr.mxu0 0.0
        %2946 = vmatpush1.msra.mxu0 0.0
        %2947 = vmatprep.subr.mxu0 0.0
        %2948 = vmatpush1.msra.mxu0 0.0
        %2949 = vmatprep.subr.mxu0 0.0
        %2950 = vmatpush1.msra.mxu0 0.0
        %2951 = vmatprep.subr.mxu0 0.0
        %2952 = vmatpush1.msra.mxu0 0.0
        %2953 = vmatprep.subr.mxu0 0.0
        %2954 = vmatpush1.msra.mxu0 0.0
        %2955 = vmatprep.subr.mxu0 0.0
        %2956 = vmatpush1.msra.mxu0 0.0
        %2957 = vmatprep.subr.mxu0 0.0
        %2958 = vmatpush1.msra.mxu0 0.0
        %2959 = vmatprep.subr.mxu0 0.0
        %2960 = vmatpush1.msra.mxu0 0.0
        %2961 = vmatprep.subr.mxu0 0.0
        %2962 = vmatpush1.msra.mxu0 0.0
        %2963 = vmatprep.subr.mxu0 0.0
        %2964 = vmatpush1.msra.mxu0 0.0
        %2965 = vmatprep.mubr.f32.mxu0 0.0
        %2966 = vmatmul.mubr.f32.gmra.mrb[0].mxu0 %v2860
        %v2967 = vpop.f32.mrb[0].mxu0
        %v2968 = vadd.f32 0.0, %v2967
        %v2969 = vpop.f32.mrb[0].mxu0
        %v2970 = vadd.f32 0.0, %v2969
        %2971 = vmatprep.mubr.f32.mxu0 0.0
        %2972 = vmatmul.mubr.f32.gmra.mrb[0].mxu0 %v2861
        %v2973 = vpop.f32.mrb[0].mxu0
        %v2974 = vadd.f32 0.0, %v2973
        %v2975 = vpop.f32.mrb[0].mxu0
        %v2976 = vadd.f32 0.0, %v2975
        %2977 = vmatprep.mubr.f32.mxu0 0.0
        %2978 = vmatmul.mubr.f32.gmra.mrb[0].mxu0 %v2862
        %v2979 = vpop.f32.mrb[0].mxu0
        %v2980 = vadd.f32 0.0, %v2979
        %v2981 = vpop.f32.mrb[0].mxu0
        %v2982 = vadd.f32 0.0, %v2981
        %2983 = vmatprep.mubr.f32.mxu0 0.0
        %2984 = vmatmul.mubr.f32.gmra.mrb[0].mxu0 %v2863
        %v2985 = vpop.f32.mrb[0].mxu0
        %v2986 = vadd.f32 0.0, %v2985
        %v2987 = vpop.f32.mrb[0].mxu0
        %v2988 = vadd.f32 0.0, %v2987
        %2989 = vmatprep.mubr.f32.mxu0 0.0
        %2990 = vmatmul.mubr.f32.gmra.mrb[0].mxu0 %v2864
        %v2991 = vpop.f32.mrb[0].mxu0
        %v2992 = vadd.f32 0.0, %v2991
        %v2993 = vpop.f32.mrb[0].mxu0
        %v2994 = vadd.f32 0.0, %v2993
        %2995 = vmatprep.mubr.f32.mxu0 0.0
        %2996 = vmatmul.mubr.f32.gmra.mrb[0].mxu0 %v2865
        %v2997 = vpop.f32.mrb[0].mxu0
        %v2998 = vadd.f32 0.0, %v2997
        %v2999 = vpop.f32.mrb[0].mxu0
        %v3000 = vadd.f32 0.0, %v2999
        %3001 = vmatprep.mubr.f32.mxu0 0.0
        %3002 = vmatmul.mubr.f32.gmra.mrb[0].mxu0 %v2866
        %v3003 = vpop.f32.mrb[0].mxu0
        %v3004 = vadd.f32 0.0, %v3003
        %v3005 = vpop.f32.mrb[0].mxu0
        %v3006 = vadd.f32 0.0, %v3005
        %3007 = vmatprep.mubr.f32.mxu0 0.0
        %3008 = vmatmul.mubr.f32.gmra.mrb[0].mxu0 %v2867
        %v3009 = vpop.f32.mrb[0].mxu0
        %v3010 = vadd.f32 0.0, %v3009
        %v3011 = vpop.f32.mrb[0].mxu0
        %v3012 = vadd.f32 0.0, %v3011
        %3013 = vdwg.mxu0
        %v3014 = vadd.f32 %v2814, %v2968
        %v3015 = vadd.f32 %v2816, %v2970
        %v3016 = vadd.f32 %v2820, %v2974
        %v3017 = vadd.f32 %v2822, %v2976
        %v3018 = vadd.f32 %v2826, %v2980
        %v3019 = vadd.f32 %v2828, %v2982
        %v3020 = vadd.f32 %v2832, %v2986
        %v3021 = vadd.f32 %v2834, %v2988
        %v3022 = vadd.f32 %v2838, %v2992
        %v3023 = vadd.f32 %v2840, %v2994
        %v3024 = vadd.f32 %v2844, %v2998
        %v3025 = vadd.f32 %v2846, %v3000
        %v3026 = vadd.f32 %v2850, %v3004
        %v3027 = vadd.f32 %v2852, %v3006
        %v3028 = vadd.f32 %v2856, %v3010
        %v3029 = vadd.f32 %v2858, %v3012
        %v3030 = vld [vmem:[#allocation2 + $0x3] sm:$0xff]
        %v3031 = vld [vmem:[#allocation2 + $0xb] sm:$0xff]
        %v3032 = vld [vmem:[#allocation2 + $0x13] sm:$0xff]
        %v3033 = vld [vmem:[#allocation2 + $0x1b] sm:$0xff]
        %v3034 = vld [vmem:[#allocation2 + $0x23] sm:$0xff]
        %v3035 = vld [vmem:[#allocation2 + $0x2b] sm:$0xff]
        %v3036 = vld [vmem:[#allocation2 + $0x33] sm:$0xff]
        %v3037 = vld [vmem:[#allocation2 + $0x3b] sm:$0xff]
        %s3038 = scalar_lea.vmem %s3, 768
        %v3039 = vld [vmem:[%s3038] sm:$0xff]
        %v3040 = vld [vmem:[%s3038 + $0x8] sm:$0xff]
        %v3041 = vld [vmem:[%s3038 + $0x10] sm:$0xff]
        %v3042 = vld [vmem:[%s3038 + $0x18] sm:$0xff]
        %v3043 = vld [vmem:[%s3038 + $0x20] sm:$0xff]
        %v3044 = vld [vmem:[%s3038 + $0x28] sm:$0xff]
        %v3045 = vld [vmem:[%s3038 + $0x30] sm:$0xff]
        %v3046 = vld [vmem:[%s3038 + $0x38] sm:$0xff]
        %v3047 = vld [vmem:[%s3038 + $0x40] sm:$0xff]
        %v3048 = vld [vmem:[%s3038 + $0x48] sm:$0xff]
        %v3049 = vld [vmem:[%s3038 + $0x50] sm:$0xff]
        %v3050 = vld [vmem:[%s3038 + $0x58] sm:$0xff]
        %v3051 = vld [vmem:[%s3038 + $0x60] sm:$0xff]
        %v3052 = vld [vmem:[%s3038 + $0x68] sm:$0xff]
        %v3053 = vld [vmem:[%s3038 + $0x70] sm:$0xff]
        %v3054 = vld [vmem:[%s3038 + $0x78] sm:$0xff]
        %v3055 = vld [vmem:[%s3038 + $0x80] sm:$0xff]
        %v3056 = vld [vmem:[%s3038 + $0x88] sm:$0xff]
        %v3057 = vld [vmem:[%s3038 + $0x90] sm:$0xff]
        %v3058 = vld [vmem:[%s3038 + $0x98] sm:$0xff]
        %v3059 = vld [vmem:[%s3038 + $0xa0] sm:$0xff]
        %v3060 = vld [vmem:[%s3038 + $0xa8] sm:$0xff]
        %v3061 = vld [vmem:[%s3038 + $0xb0] sm:$0xff]
        %v3062 = vld [vmem:[%s3038 + $0xb8] sm:$0xff]
        %v3063 = vld [vmem:[%s3038 + $0xc0] sm:$0xff]
        %v3064 = vld [vmem:[%s3038 + $0xc8] sm:$0xff]
        %v3065 = vld [vmem:[%s3038 + $0xd0] sm:$0xff]
        %v3066 = vld [vmem:[%s3038 + $0xd8] sm:$0xff]
        %v3067 = vld [vmem:[%s3038 + $0xe0] sm:$0xff]
        %v3068 = vld [vmem:[%s3038 + $0xe8] sm:$0xff]
        %v3069 = vld [vmem:[%s3038 + $0xf0] sm:$0xff]
        %v3070 = vld [vmem:[%s3038 + $0xf8] sm:$0xff]
        %3071 = vmatprep.subr.mxu0 %v3040
        %3072 = vmatpush1.msra.mxu0 %v3039
        %3073 = vmatprep.subr.mxu0 %v3042
        %3074 = vmatpush1.msra.mxu0 %v3041
        %3075 = vmatprep.subr.mxu0 %v3044
        %3076 = vmatpush1.msra.mxu0 %v3043
        %3077 = vmatprep.subr.mxu0 %v3046
        %3078 = vmatpush1.msra.mxu0 %v3045
        %3079 = vmatprep.subr.mxu0 %v3048
        %3080 = vmatpush1.msra.mxu0 %v3047
        %3081 = vmatprep.subr.mxu0 %v3050
        %3082 = vmatpush1.msra.mxu0 %v3049
        %3083 = vmatprep.subr.mxu0 %v3052
        %3084 = vmatpush1.msra.mxu0 %v3051
        %3085 = vmatprep.subr.mxu0 %v3054
        %3086 = vmatpush1.msra.mxu0 %v3053
        %3087 = vmatprep.subr.mxu0 %v3056
        %3088 = vmatpush1.msra.mxu0 %v3055
        %3089 = vmatprep.subr.mxu0 %v3058
        %3090 = vmatpush1.msra.mxu0 %v3057
        %3091 = vmatprep.subr.mxu0 %v3060
        %3092 = vmatpush1.msra.mxu0 %v3059
        %3093 = vmatprep.subr.mxu0 %v3062
        %3094 = vmatpush1.msra.mxu0 %v3061
        %3095 = vmatprep.subr.mxu0 %v3064
        %3096 = vmatpush1.msra.mxu0 %v3063
        %3097 = vmatprep.subr.mxu0 %v3066
        %3098 = vmatpush1.msra.mxu0 %v3065
        %3099 = vmatprep.subr.mxu0 %v3068
        %3100 = vmatpush1.msra.mxu0 %v3067
        %3101 = vmatprep.subr.mxu0 %v3070
        %3102 = vmatpush1.msra.mxu0 %v3069
        %3103 = vmatprep.subr.mxu0 0.0
        %3104 = vmatpush1.msra.mxu0 0.0
        %3105 = vmatprep.subr.mxu0 0.0
        %3106 = vmatpush1.msra.mxu0 0.0
        %3107 = vmatprep.subr.mxu0 0.0
        %3108 = vmatpush1.msra.mxu0 0.0
        %3109 = vmatprep.subr.mxu0 0.0
        %3110 = vmatpush1.msra.mxu0 0.0
        %3111 = vmatprep.subr.mxu0 0.0
        %3112 = vmatpush1.msra.mxu0 0.0
        %3113 = vmatprep.subr.mxu0 0.0
        %3114 = vmatpush1.msra.mxu0 0.0
        %3115 = vmatprep.subr.mxu0 0.0
        %3116 = vmatpush1.msra.mxu0 0.0
        %3117 = vmatprep.subr.mxu0 0.0
        %3118 = vmatpush1.msra.mxu0 0.0
        %3119 = vmatprep.subr.mxu0 0.0
        %3120 = vmatpush1.msra.mxu0 0.0
        %3121 = vmatprep.subr.mxu0 0.0
        %3122 = vmatpush1.msra.mxu0 0.0
        %3123 = vmatprep.subr.mxu0 0.0
        %3124 = vmatpush1.msra.mxu0 0.0
        %3125 = vmatprep.subr.mxu0 0.0
        %3126 = vmatpush1.msra.mxu0 0.0
        %3127 = vmatprep.subr.mxu0 0.0
        %3128 = vmatpush1.msra.mxu0 0.0
        %3129 = vmatprep.subr.mxu0 0.0
        %3130 = vmatpush1.msra.mxu0 0.0
        %3131 = vmatprep.subr.mxu0 0.0
        %3132 = vmatpush1.msra.mxu0 0.0
        %3133 = vmatprep.subr.mxu0 0.0
        %3134 = vmatpush1.msra.mxu0 0.0
        %3135 = vmatprep.mubr.f32.mxu0 0.0
        %3136 = vmatmul.mubr.f32.gmra.mrb[0].mxu0 %v3030
        %v3137 = vpop.f32.mrb[0].mxu0
        %v3138 = vadd.f32 0.0, %v3137
        %v3139 = vpop.f32.mrb[0].mxu0
        %v3140 = vadd.f32 0.0, %v3139
        %3141 = vmatprep.mubr.f32.mxu0 0.0
        %3142 = vmatmul.mubr.f32.gmra.mrb[0].mxu0 %v3031
        %v3143 = vpop.f32.mrb[0].mxu0
        %v3144 = vadd.f32 0.0, %v3143
        %v3145 = vpop.f32.mrb[0].mxu0
        %v3146 = vadd.f32 0.0, %v3145
        %3147 = vmatprep.mubr.f32.mxu0 0.0
        %3148 = vmatmul.mubr.f32.gmra.mrb[0].mxu0 %v3032
        %v3149 = vpop.f32.mrb[0].mxu0
        %v3150 = vadd.f32 0.0, %v3149
        %v3151 = vpop.f32.mrb[0].mxu0
        %v3152 = vadd.f32 0.0, %v3151
        %3153 = vmatprep.mubr.f32.mxu0 0.0
        %3154 = vmatmul.mubr.f32.gmra.mrb[0].mxu0 %v3033
        %v3155 = vpop.f32.mrb[0].mxu0
        %v3156 = vadd.f32 0.0, %v3155
        %v3157 = vpop.f32.mrb[0].mxu0
        %v3158 = vadd.f32 0.0, %v3157
        %3159 = vmatprep.mubr.f32.mxu0 0.0
        %3160 = vmatmul.mubr.f32.gmra.mrb[0].mxu0 %v3034
        %v3161 = vpop.f32.mrb[0].mxu0
        %v3162 = vadd.f32 0.0, %v3161
        %v3163 = vpop.f32.mrb[0].mxu0
        %v3164 = vadd.f32 0.0, %v3163
        %3165 = vmatprep.mubr.f32.mxu0 0.0
        %3166 = vmatmul.mubr.f32.gmra.mrb[0].mxu0 %v3035
        %v3167 = vpop.f32.mrb[0].mxu0
        %v3168 = vadd.f32 0.0, %v3167
        %v3169 = vpop.f32.mrb[0].mxu0
        %v3170 = vadd.f32 0.0, %v3169
        %3171 = vmatprep.mubr.f32.mxu0 0.0
        %3172 = vmatmul.mubr.f32.gmra.mrb[0].mxu0 %v3036
        %v3173 = vpop.f32.mrb[0].mxu0
        %v3174 = vadd.f32 0.0, %v3173
        %v3175 = vpop.f32.mrb[0].mxu0
        %v3176 = vadd.f32 0.0, %v3175
        %3177 = vmatprep.mubr.f32.mxu0 0.0
        %3178 = vmatmul.mubr.f32.gmra.mrb[0].mxu0 %v3037
        %v3179 = vpop.f32.mrb[0].mxu0
        %v3180 = vadd.f32 0.0, %v3179
        %v3181 = vpop.f32.mrb[0].mxu0
        %v3182 = vadd.f32 0.0, %v3181
        %3183 = vdwg.mxu0
        %v3184 = vadd.f32 %v3014, %v3138
        %v3185 = vadd.f32 %v3015, %v3140
        %v3186 = vadd.f32 %v3016, %v3144
        %v3187 = vadd.f32 %v3017, %v3146
        %v3188 = vadd.f32 %v3018, %v3150
        %v3189 = vadd.f32 %v3019, %v3152
        %v3190 = vadd.f32 %v3020, %v3156
        %v3191 = vadd.f32 %v3021, %v3158
        %v3192 = vadd.f32 %v3022, %v3162
        %v3193 = vadd.f32 %v3023, %v3164
        %v3194 = vadd.f32 %v3024, %v3168
        %v3195 = vadd.f32 %v3025, %v3170
        %v3196 = vadd.f32 %v3026, %v3174
        %v3197 = vadd.f32 %v3027, %v3176
        %v3198 = vadd.f32 %v3028, %v3180
        %v3199 = vadd.f32 %v3029, %v3182
        %v3200 = vld [vmem:[#allocation2 + $0x4] sm:$0xff]
        %v3201 = vld [vmem:[#allocation2 + $0xc] sm:$0xff]
        %v3202 = vld [vmem:[#allocation2 + $0x14] sm:$0xff]
        %v3203 = vld [vmem:[#allocation2 + $0x1c] sm:$0xff]
        %v3204 = vld [vmem:[#allocation2 + $0x24] sm:$0xff]
        %v3205 = vld [vmem:[#allocation2 + $0x2c] sm:$0xff]
        %v3206 = vld [vmem:[#allocation2 + $0x34] sm:$0xff]
        %v3207 = vld [vmem:[#allocation2 + $0x3c] sm:$0xff]
        %s3208 = scalar_lea.vmem %s3, 1024
        %v3209 = vld [vmem:[%s3208] sm:$0xff]
        %v3210 = vld [vmem:[%s3208 + $0x8] sm:$0xff]
        %v3211 = vld [vmem:[%s3208 + $0x10] sm:$0xff]
        %v3212 = vld [vmem:[%s3208 + $0x18] sm:$0xff]
        %v3213 = vld [vmem:[%s3208 + $0x20] sm:$0xff]
        %v3214 = vld [vmem:[%s3208 + $0x28] sm:$0xff]
        %v3215 = vld [vmem:[%s3208 + $0x30] sm:$0xff]
        %v3216 = vld [vmem:[%s3208 + $0x38] sm:$0xff]
        %v3217 = vld [vmem:[%s3208 + $0x40] sm:$0xff]
        %v3218 = vld [vmem:[%s3208 + $0x48] sm:$0xff]
        %v3219 = vld [vmem:[%s3208 + $0x50] sm:$0xff]
        %v3220 = vld [vmem:[%s3208 + $0x58] sm:$0xff]
        %v3221 = vld [vmem:[%s3208 + $0x60] sm:$0xff]
        %v3222 = vld [vmem:[%s3208 + $0x68] sm:$0xff]
        %v3223 = vld [vmem:[%s3208 + $0x70] sm:$0xff]
        %v3224 = vld [vmem:[%s3208 + $0x78] sm:$0xff]
        %v3225 = vld [vmem:[%s3208 + $0x80] sm:$0xff]
        %v3226 = vld [vmem:[%s3208 + $0x88] sm:$0xff]
        %v3227 = vld [vmem:[%s3208 + $0x90] sm:$0xff]
        %v3228 = vld [vmem:[%s3208 + $0x98] sm:$0xff]
        %v3229 = vld [vmem:[%s3208 + $0xa0] sm:$0xff]
        %v3230 = vld [vmem:[%s3208 + $0xa8] sm:$0xff]
        %v3231 = vld [vmem:[%s3208 + $0xb0] sm:$0xff]
        %v3232 = vld [vmem:[%s3208 + $0xb8] sm:$0xff]
        %v3233 = vld [vmem:[%s3208 + $0xc0] sm:$0xff]
        %v3234 = vld [vmem:[%s3208 + $0xc8] sm:$0xff]
        %v3235 = vld [vmem:[%s3208 + $0xd0] sm:$0xff]
        %v3236 = vld [vmem:[%s3208 + $0xd8] sm:$0xff]
        %v3237 = vld [vmem:[%s3208 + $0xe0] sm:$0xff]
        %v3238 = vld [vmem:[%s3208 + $0xe8] sm:$0xff]
        %v3239 = vld [vmem:[%s3208 + $0xf0] sm:$0xff]
        %v3240 = vld [vmem:[%s3208 + $0xf8] sm:$0xff]
        %3241 = vmatprep.subr.mxu0 %v3210
        %3242 = vmatpush1.msra.mxu0 %v3209
        %3243 = vmatprep.subr.mxu0 %v3212
        %3244 = vmatpush1.msra.mxu0 %v3211
        %3245 = vmatprep.subr.mxu0 %v3214
        %3246 = vmatpush1.msra.mxu0 %v3213
        %3247 = vmatprep.subr.mxu0 %v3216
        %3248 = vmatpush1.msra.mxu0 %v3215
        %3249 = vmatprep.subr.mxu0 %v3218
        %3250 = vmatpush1.msra.mxu0 %v3217
        %3251 = vmatprep.subr.mxu0 %v3220
        %3252 = vmatpush1.msra.mxu0 %v3219
        %3253 = vmatprep.subr.mxu0 %v3222
        %3254 = vmatpush1.msra.mxu0 %v3221
        %3255 = vmatprep.subr.mxu0 %v3224
        %3256 = vmatpush1.msra.mxu0 %v3223
        %3257 = vmatprep.subr.mxu0 %v3226
        %3258 = vmatpush1.msra.mxu0 %v3225
        %3259 = vmatprep.subr.mxu0 %v3228
        %3260 = vmatpush1.msra.mxu0 %v3227
        %3261 = vmatprep.subr.mxu0 %v3230
        %3262 = vmatpush1.msra.mxu0 %v3229
        %3263 = vmatprep.subr.mxu0 %v3232
        %3264 = vmatpush1.msra.mxu0 %v3231
        %3265 = vmatprep.subr.mxu0 %v3234
        %3266 = vmatpush1.msra.mxu0 %v3233
        %3267 = vmatprep.subr.mxu0 %v3236
        %3268 = vmatpush1.msra.mxu0 %v3235
        %3269 = vmatprep.subr.mxu0 %v3238
        %3270 = vmatpush1.msra.mxu0 %v3237
        %3271 = vmatprep.subr.mxu0 %v3240
        %3272 = vmatpush1.msra.mxu0 %v3239
        %3273 = vmatprep.subr.mxu0 0.0
        %3274 = vmatpush1.msra.mxu0 0.0
        %3275 = vmatprep.subr.mxu0 0.0
        %3276 = vmatpush1.msra.mxu0 0.0
        %3277 = vmatprep.subr.mxu0 0.0
        %3278 = vmatpush1.msra.mxu0 0.0
        %3279 = vmatprep.subr.mxu0 0.0
        %3280 = vmatpush1.msra.mxu0 0.0
        %3281 = vmatprep.subr.mxu0 0.0
        %3282 = vmatpush1.msra.mxu0 0.0
        %3283 = vmatprep.subr.mxu0 0.0
        %3284 = vmatpush1.msra.mxu0 0.0
        %3285 = vmatprep.subr.mxu0 0.0
        %3286 = vmatpush1.msra.mxu0 0.0
        %3287 = vmatprep.subr.mxu0 0.0
        %3288 = vmatpush1.msra.mxu0 0.0
        %3289 = vmatprep.subr.mxu0 0.0
        %3290 = vmatpush1.msra.mxu0 0.0
        %3291 = vmatprep.subr.mxu0 0.0
        %3292 = vmatpush1.msra.mxu0 0.0
        %3293 = vmatprep.subr.mxu0 0.0
        %3294 = vmatpush1.msra.mxu0 0.0
        %3295 = vmatprep.subr.mxu0 0.0
        %3296 = vmatpush1.msra.mxu0 0.0
        %3297 = vmatprep.subr.mxu0 0.0
        %3298 = vmatpush1.msra.mxu0 0.0
        %3299 = vmatprep.subr.mxu0 0.0
        %3300 = vmatpush1.msra.mxu0 0.0
        %3301 = vmatprep.subr.mxu0 0.0
        %3302 = vmatpush1.msra.mxu0 0.0
        %3303 = vmatprep.subr.mxu0 0.0
        %3304 = vmatpush1.msra.mxu0 0.0
        %3305 = vmatprep.mubr.f32.mxu0 0.0
        %3306 = vmatmul.mubr.f32.gmra.mrb[0].mxu0 %v3200
        %v3307 = vpop.f32.mrb[0].mxu0
        %v3308 = vadd.f32 0.0, %v3307
        %v3309 = vpop.f32.mrb[0].mxu0
        %v3310 = vadd.f32 0.0, %v3309
        %3311 = vmatprep.mubr.f32.mxu0 0.0
        %3312 = vmatmul.mubr.f32.gmra.mrb[0].mxu0 %v3201
        %v3313 = vpop.f32.mrb[0].mxu0
        %v3314 = vadd.f32 0.0, %v3313
        %v3315 = vpop.f32.mrb[0].mxu0
        %v3316 = vadd.f32 0.0, %v3315
        %3317 = vmatprep.mubr.f32.mxu0 0.0
        %3318 = vmatmul.mubr.f32.gmra.mrb[0].mxu0 %v3202
        %v3319 = vpop.f32.mrb[0].mxu0
        %v3320 = vadd.f32 0.0, %v3319
        %v3321 = vpop.f32.mrb[0].mxu0
        %v3322 = vadd.f32 0.0, %v3321
        %3323 = vmatprep.mubr.f32.mxu0 0.0
        %3324 = vmatmul.mubr.f32.gmra.mrb[0].mxu0 %v3203
        %v3325 = vpop.f32.mrb[0].mxu0
        %v3326 = vadd.f32 0.0, %v3325
        %v3327 = vpop.f32.mrb[0].mxu0
        %v3328 = vadd.f32 0.0, %v3327
        %3329 = vmatprep.mubr.f32.mxu0 0.0
        %3330 = vmatmul.mubr.f32.gmra.mrb[0].mxu0 %v3204
        %v3331 = vpop.f32.mrb[0].mxu0
        %v3332 = vadd.f32 0.0, %v3331
        %v3333 = vpop.f32.mrb[0].mxu0
        %v3334 = vadd.f32 0.0, %v3333
        %3335 = vmatprep.mubr.f32.mxu0 0.0
        %3336 = vmatmul.mubr.f32.gmra.mrb[0].mxu0 %v3205
        %v3337 = vpop.f32.mrb[0].mxu0
        %v3338 = vadd.f32 0.0, %v3337
        %v3339 = vpop.f32.mrb[0].mxu0
        %v3340 = vadd.f32 0.0, %v3339
        %3341 = vmatprep.mubr.f32.mxu0 0.0
        %3342 = vmatmul.mubr.f32.gmra.mrb[0].mxu0 %v3206
        %v3343 = vpop.f32.mrb[0].mxu0
        %v3344 = vadd.f32 0.0, %v3343
        %v3345 = vpop.f32.mrb[0].mxu0
        %v3346 = vadd.f32 0.0, %v3345
        %3347 = vmatprep.mubr.f32.mxu0 0.0
        %3348 = vmatmul.mubr.f32.gmra.mrb[0].mxu0 %v3207
        %v3349 = vpop.f32.mrb[0].mxu0
        %v3350 = vadd.f32 0.0, %v3349
        %v3351 = vpop.f32.mrb[0].mxu0
        %v3352 = vadd.f32 0.0, %v3351
        %3353 = vdwg.mxu0
        %v3354 = vadd.f32 %v3184, %v3308
        %v3355 = vadd.f32 %v3185, %v3310
        %v3356 = vadd.f32 %v3186, %v3314
        %v3357 = vadd.f32 %v3187, %v3316
        %v3358 = vadd.f32 %v3188, %v3320
        %v3359 = vadd.f32 %v3189, %v3322
        %v3360 = vadd.f32 %v3190, %v3326
        %v3361 = vadd.f32 %v3191, %v3328
        %v3362 = vadd.f32 %v3192, %v3332
        %v3363 = vadd.f32 %v3193, %v3334
        %v3364 = vadd.f32 %v3194, %v3338
        %v3365 = vadd.f32 %v3195, %v3340
        %v3366 = vadd.f32 %v3196, %v3344
        %v3367 = vadd.f32 %v3197, %v3346
        %v3368 = vadd.f32 %v3198, %v3350
        %v3369 = vadd.f32 %v3199, %v3352
        %v3370 = vld [vmem:[%s4] sm:$0x3]
        %v3372 = vlaneseq
        %v3373 = vshrl.u32 %v3372, 7
        %v3374 = vsub.s32 0, %v3373
        %v3375 = vrot.slane %v3370, %v3374
        %v3376 = vlaneseq
        %v3377 = vshrl.u32 %v3376, 7
        %v3378 = vsub.s32 1, %v3377
        %v3379 = vrot.slane %v3370, %v3378
        %v3382 = vadd.f32 %v3354, %v3375
        %v3383 = vadd.f32 %v3355, %v3379
        %v3384 = vadd.f32 %v3356, %v3375
        %v3385 = vadd.f32 %v3357, %v3379
        %v3386 = vadd.f32 %v3358, %v3375
        %v3387 = vadd.f32 %v3359, %v3379
        %v3388 = vadd.f32 %v3360, %v3375
        %v3389 = vadd.f32 %v3361, %v3379
        %v3390 = vadd.f32 %v3362, %v3375
        %v3391 = vadd.f32 %v3363, %v3379
        %v3392 = vadd.f32 %v3364, %v3375
        %v3393 = vadd.f32 %v3365, %v3379
        %v3394 = vadd.f32 %v3366, %v3375
        %v3395 = vadd.f32 %v3367, %v3379
        %v3396 = vadd.f32 %v3368, %v3375
        %v3397 = vadd.f32 %v3369, %v3379
        %v3398 = vmax.f32 %v3382, 0.0
        %v3399 = vmax.f32 %v3383, 0.0
        %v3400 = vmax.f32 %v3384, 0.0
        %v3401 = vmax.f32 %v3385, 0.0
        %v3402 = vmax.f32 %v3386, 0.0
        %v3403 = vmax.f32 %v3387, 0.0
        %v3404 = vmax.f32 %v3388, 0.0
        %v3405 = vmax.f32 %v3389, 0.0
        %v3406 = vmax.f32 %v3390, 0.0
        %v3407 = vmax.f32 %v3391, 0.0
        %v3408 = vmax.f32 %v3392, 0.0
        %v3409 = vmax.f32 %v3393, 0.0
        %v3410 = vmax.f32 %v3394, 0.0
        %v3411 = vmax.f32 %v3395, 0.0
        %v3412 = vmax.f32 %v3396, 0.0
        %v3413 = vmax.f32 %v3397, 0.0
        %v3414 = vmax.f32 %v3398, %v3399
        %v3415 = vmax.f32 %v3400, %v3401
        %v3416 = vmax.f32 %v3402, %v3403
        %v3417 = vmax.f32 %v3404, %v3405
        %v3418 = vmax.f32 %v3406, %v3407
        %v3419 = vmax.f32 %v3408, %v3409
        %v3420 = vmax.f32 %v3410, %v3411
        %v3421 = vmax.f32 %v3412, %v3413
        %v3422 = vld [vmem:[%s5] sm:$0xff]
        %v3423 = vld [vmem:[%s5 + $0x8] sm:$0xff]
        %v3424 = vld [vmem:[%s5 + $0x10] sm:$0xff]
        %v3425 = vld [vmem:[%s5 + $0x18] sm:$0xff]
        %v3426 = vld [vmem:[%s5 + $0x20] sm:$0xff]
        %vm3427 = vcmask 523264
        %v3429 = vsel %vm3427, %v3422, 0
        %v3432 = vsel %vm3427, %v3423, 0
        %v3435 = vsel %vm3427, %v3424, 0
        %v3438 = vsel %vm3427, %v3425, 0
        %v3441 = vsel %vm3427, %v3426, 0
        %3443 = vmatprep.subr.mxu0 0.0
        %3444 = vmatpush1.msra.mxu0 %v3414
        %3445 = vmatprep.subr.mxu0 0.0
        %3446 = vmatpush1.msra.mxu0 %v3415
        %3447 = vmatprep.subr.mxu0 0.0
        %3448 = vmatpush1.msra.mxu0 %v3416
        %3449 = vmatprep.subr.mxu0 0.0
        %3450 = vmatpush1.msra.mxu0 %v3417
        %3451 = vmatprep.subr.mxu0 0.0
        %3452 = vmatpush1.msra.mxu0 %v3418
        %3453 = vmatprep.subr.mxu0 0.0
        %3454 = vmatpush1.msra.mxu0 %v3419
        %3455 = vmatprep.subr.mxu0 0.0
        %3456 = vmatpush1.msra.mxu0 %v3420
        %3457 = vmatprep.subr.mxu0 0.0
        %3458 = vmatpush1.msra.mxu0 %v3421
        %3459 = vmatprep.subr.mxu0 0.0
        %3460 = vmatpush1.msra.mxu0 0.0
        %3461 = vmatprep.subr.mxu0 0.0
        %3462 = vmatpush1.msra.mxu0 0.0
        %3463 = vmatprep.subr.mxu0 0.0
        %3464 = vmatpush1.msra.mxu0 0.0
        %3465 = vmatprep.subr.mxu0 0.0
        %3466 = vmatpush1.msra.mxu0 0.0
        %3467 = vmatprep.subr.mxu0 0.0
        %3468 = vmatpush1.msra.mxu0 0.0
        %3469 = vmatprep.subr.mxu0 0.0
        %3470 = vmatpush1.msra.mxu0 0.0
        %3471 = vmatprep.subr.mxu0 0.0
        %3472 = vmatpush1.msra.mxu0 0.0
        %3473 = vmatprep.subr.mxu0 0.0
        %3474 = vmatpush1.msra.mxu0 0.0
        %3475 = vmatprep.subr.mxu0 0.0
        %3476 = vmatpush1.msra.mxu0 0.0
        %3477 = vmatprep.subr.mxu0 0.0
        %3478 = vmatpush1.msra.mxu0 0.0
        %3479 = vmatprep.subr.mxu0 0.0
        %3480 = vmatpush1.msra.mxu0 0.0
        %3481 = vmatprep.subr.mxu0 0.0
        %3482 = vmatpush1.msra.mxu0 0.0
        %3483 = vmatprep.subr.mxu0 0.0
        %3484 = vmatpush1.msra.mxu0 0.0
        %3485 = vmatprep.subr.mxu0 0.0
        %3486 = vmatpush1.msra.mxu0 0.0
        %3487 = vmatprep.subr.mxu0 0.0
        %3488 = vmatpush1.msra.mxu0 0.0
        %3489 = vmatprep.subr.mxu0 0.0
        %3490 = vmatpush1.msra.mxu0 0.0
        %3491 = vmatprep.subr.mxu0 0.0
        %3492 = vmatpush1.msra.mxu0 0.0
        %3493 = vmatprep.subr.mxu0 0.0
        %3494 = vmatpush1.msra.mxu0 0.0
        %3495 = vmatprep.subr.mxu0 0.0
        %3496 = vmatpush1.msra.mxu0 0.0
        %3497 = vmatprep.subr.mxu0 0.0
        %3498 = vmatpush1.msra.mxu0 0.0
        %3499 = vmatprep.subr.mxu0 0.0
        %3500 = vmatpush1.msra.mxu0 0.0
        %3501 = vmatprep.subr.mxu0 0.0
        %3502 = vmatpush1.msra.mxu0 0.0
        %3503 = vmatprep.subr.mxu0 0.0
        %3504 = vmatpush1.msra.mxu0 0.0
        %3505 = vmatprep.subr.mxu0 0.0
        %3506 = vmatpush1.msra.mxu0 0.0
        %3507 = vmatprep.mubr.f32.mxu0 0.0
        %3508 = vmatmul.mubr.f32.gmra.mrb[0].mxu0 %v3429
        %v3509 = vpop.f32.mrb[0].mxu0
        %v3510 = vadd.f32 0.0, %v3509
        %v3511 = vpop.f32.mrb[0].mxu0
        %3512 = vmatprep.mubr.f32.mxu0 0.0
        %3513 = vmatmul.mubr.f32.gmra.mrb[0].mxu0 %v3432
        %v3514 = vpop.f32.mrb[0].mxu0
        %v3515 = vadd.f32 0.0, %v3514
        %v3516 = vpop.f32.mrb[0].mxu0
        %3517 = vmatprep.mubr.f32.mxu0 0.0
        %3518 = vmatmul.mubr.f32.gmra.mrb[0].mxu0 %v3435
        %v3519 = vpop.f32.mrb[0].mxu0
        %v3520 = vadd.f32 0.0, %v3519
        %v3521 = vpop.f32.mrb[0].mxu0
        %3522 = vmatprep.mubr.f32.mxu0 0.0
        %3523 = vmatmul.mubr.f32.gmra.mrb[0].mxu0 %v3438
        %v3524 = vpop.f32.mrb[0].mxu0
        %v3525 = vadd.f32 0.0, %v3524
        %v3526 = vpop.f32.mrb[0].mxu0
        %3527 = vmatprep.mubr.f32.mxu0 0.0
        %3528 = vmatmul.mubr.f32.gmra.mrb[0].mxu0 %v3441
        %v3529 = vpop.f32.mrb[0].mxu0
        %v3530 = vadd.f32 0.0, %v3529
        %v3531 = vpop.f32.mrb[0].mxu0
        %3532 = vdwg.mxu0
        %s3533 = scalar_lea.vmem %s5, 40
        %v3534 = vld [vmem:[%s3533] sm:$0xff]
        %v3535 = vld [vmem:[%s3533 + $0x8] sm:$0xff]
        %v3536 = vld [vmem:[%s3533 + $0x10] sm:$0xff]
        %v3537 = vld [vmem:[%s3533 + $0x18] sm:$0xff]
        %v3538 = vld [vmem:[%s3533 + $0x20] sm:$0xff]
        %v3540 = vsel %vm3427, %v3534, 0
        %v3543 = vsel %vm3427, %v3535, 0
        %v3546 = vsel %vm3427, %v3536, 0
        %v3549 = vsel %vm3427, %v3537, 0
        %v3552 = vsel %vm3427, %v3538, 0
        %3554 = vmatprep.subr.mxu0 0.0
        %3555 = vmatpush1.msra.mxu0 %v3414
        %3556 = vmatprep.subr.mxu0 0.0
        %3557 = vmatpush1.msra.mxu0 %v3415
        %3558 = vmatprep.subr.mxu0 0.0
        %3559 = vmatpush1.msra.mxu0 %v3416
        %3560 = vmatprep.subr.mxu0 0.0
        %3561 = vmatpush1.msra.mxu0 %v3417
        %3562 = vmatprep.subr.mxu0 0.0
        %3563 = vmatpush1.msra.mxu0 %v3418
        %3564 = vmatprep.subr.mxu0 0.0
        %3565 = vmatpush1.msra.mxu0 %v3419
        %3566 = vmatprep.subr.mxu0 0.0
        %3567 = vmatpush1.msra.mxu0 %v3420
        %3568 = vmatprep.subr.mxu0 0.0
        %3569 = vmatpush1.msra.mxu0 %v3421
        %3570 = vmatprep.subr.mxu0 0.0
        %3571 = vmatpush1.msra.mxu0 0.0
        %3572 = vmatprep.subr.mxu0 0.0
        %3573 = vmatpush1.msra.mxu0 0.0
        %3574 = vmatprep.subr.mxu0 0.0
        %3575 = vmatpush1.msra.mxu0 0.0
        %3576 = vmatprep.subr.mxu0 0.0
        %3577 = vmatpush1.msra.mxu0 0.0
        %3578 = vmatprep.subr.mxu0 0.0
        %3579 = vmatpush1.msra.mxu0 0.0
        %3580 = vmatprep.subr.mxu0 0.0
        %3581 = vmatpush1.msra.mxu0 0.0
        %3582 = vmatprep.subr.mxu0 0.0
        %3583 = vmatpush1.msra.mxu0 0.0
        %3584 = vmatprep.subr.mxu0 0.0
        %3585 = vmatpush1.msra.mxu0 0.0
        %3586 = vmatprep.subr.mxu0 0.0
        %3587 = vmatpush1.msra.mxu0 0.0
        %3588 = vmatprep.subr.mxu0 0.0
        %3589 = vmatpush1.msra.mxu0 0.0
        %3590 = vmatprep.subr.mxu0 0.0
        %3591 = vmatpush1.msra.mxu0 0.0
        %3592 = vmatprep.subr.mxu0 0.0
        %3593 = vmatpush1.msra.mxu0 0.0
        %3594 = vmatprep.subr.mxu0 0.0
        %3595 = vmatpush1.msra.mxu0 0.0
        %3596 = vmatprep.subr.mxu0 0.0
        %3597 = vmatpush1.msra.mxu0 0.0
        %3598 = vmatprep.subr.mxu0 0.0
        %3599 = vmatpush1.msra.mxu0 0.0
        %3600 = vmatprep.subr.mxu0 0.0
        %3601 = vmatpush1.msra.mxu0 0.0
        %3602 = vmatprep.subr.mxu0 0.0
        %3603 = vmatpush1.msra.mxu0 0.0
        %3604 = vmatprep.subr.mxu0 0.0
        %3605 = vmatpush1.msra.mxu0 0.0
        %3606 = vmatprep.subr.mxu0 0.0
        %3607 = vmatpush1.msra.mxu0 0.0
        %3608 = vmatprep.subr.mxu0 0.0
        %3609 = vmatpush1.msra.mxu0 0.0
        %3610 = vmatprep.subr.mxu0 0.0
        %3611 = vmatpush1.msra.mxu0 0.0
        %3612 = vmatprep.subr.mxu0 0.0
        %3613 = vmatpush1.msra.mxu0 0.0
        %3614 = vmatprep.subr.mxu0 0.0
        %3615 = vmatpush1.msra.mxu0 0.0
        %3616 = vmatprep.subr.mxu0 0.0
        %3617 = vmatpush1.msra.mxu0 0.0
        %3618 = vmatprep.mubr.f32.mxu0 0.0
        %3619 = vmatmul.mubr.f32.gmra.mrb[0].mxu0 %v3540
        %v3620 = vpop.f32.mrb[0].mxu0
        %v3621 = vadd.f32 0.0, %v3620
        %v3622 = vpop.f32.mrb[0].mxu0
        %3623 = vmatprep.mubr.f32.mxu0 0.0
        %3624 = vmatmul.mubr.f32.gmra.mrb[0].mxu0 %v3543
        %v3625 = vpop.f32.mrb[0].mxu0
        %v3626 = vadd.f32 0.0, %v3625
        %v3627 = vpop.f32.mrb[0].mxu0
        %3628 = vmatprep.mubr.f32.mxu0 0.0
        %3629 = vmatmul.mubr.f32.gmra.mrb[0].mxu0 %v3546
        %v3630 = vpop.f32.mrb[0].mxu0
        %v3631 = vadd.f32 0.0, %v3630
        %v3632 = vpop.f32.mrb[0].mxu0
        %3633 = vmatprep.mubr.f32.mxu0 0.0
        %3634 = vmatmul.mubr.f32.gmra.mrb[0].mxu0 %v3549
        %v3635 = vpop.f32.mrb[0].mxu0
        %v3636 = vadd.f32 0.0, %v3635
        %v3637 = vpop.f32.mrb[0].mxu0
        %3638 = vmatprep.mubr.f32.mxu0 0.0
        %3639 = vmatmul.mubr.f32.gmra.mrb[0].mxu0 %v3552
        %v3640 = vpop.f32.mrb[0].mxu0
        %v3641 = vadd.f32 0.0, %v3640
        %v3642 = vpop.f32.mrb[0].mxu0
        %3643 = vdwg.mxu0
        %v3644 = vmax.f32 %v3510, %v3621
        %v3645 = vmax.f32 %v3515, %v3626
        %v3646 = vmax.f32 %v3520, %v3631
        %v3647 = vmax.f32 %v3525, %v3636
        %v3648 = vmax.f32 %v3530, %v3641
        %v3649 = vld [vmem:[%s6] sm:$0xff]
        %v3650 = vld [vmem:[%s6 + $0x8] sm:$0xff]
        %v3651 = vld [vmem:[%s6 + $0x10] sm:$0xff]
        %v3652 = vld [vmem:[%s6 + $0x18] sm:$0xff]
        %v3653 = vld [vmem:[%s6 + $0x20] sm:$0xff]
        %v3654 = vld [vmem:[%s6 + $0x28] sm:$0xff]
        %v3655 = vld [vmem:[%s6 + $0x30] sm:$0xff]
        %v3656 = vld [vmem:[%s6 + $0x38] sm:$0xff]
        %v3657 = vld [vmem:[%s6 + $0x40] sm:$0xff]
        %v3658 = vld [vmem:[%s6 + $0x48] sm:$0xff]
        %v3659 = vld [vmem:[%s6 + $0x50] sm:$0xff]
        %v3660 = vld [vmem:[%s6 + $0x58] sm:$0xff]
        %v3661 = vld [vmem:[%s6 + $0x60] sm:$0xff]
        %v3662 = vld [vmem:[%s6 + $0x68] sm:$0xff]
        %v3663 = vld [vmem:[%s6 + $0x70] sm:$0xff]
        %v3664 = vld [vmem:[%s6 + $0x78] sm:$0xff]
        %s3665 = scalar_lea.vmem %s6, 128
        %v3666 = vld [vmem:[%s3665] sm:$0xff]
        %v3667 = vld [vmem:[%s3665 + $0x8] sm:$0xff]
        %v3668 = vld [vmem:[%s3665 + $0x10] sm:$0xff]
        %v3669 = vld [vmem:[%s3665 + $0x18] sm:$0xff]
        %v3670 = vld [vmem:[%s3665 + $0x20] sm:$0xff]
        %v3671 = vld [vmem:[%s3665 + $0x28] sm:$0xff]
        %v3672 = vld [vmem:[%s3665 + $0x30] sm:$0xff]
        %v3673 = vld [vmem:[%s3665 + $0x38] sm:$0xff]
        %v3674 = vld [vmem:[%s3665 + $0x40] sm:$0xff]
        %v3675 = vld [vmem:[%s3665 + $0x48] sm:$0xff]
        %v3676 = vld [vmem:[%s3665 + $0x50] sm:$0xff]
        %v3677 = vld [vmem:[%s3665 + $0x58] sm:$0xff]
        %v3678 = vld [vmem:[%s3665 + $0x60] sm:$0xff]
        %v3679 = vld [vmem:[%s3665 + $0x68] sm:$0xff]
        %v3680 = vld [vmem:[%s3665 + $0x70] sm:$0xff]
        %v3681 = vld [vmem:[%s3665 + $0x78] sm:$0xff]
        %3682 = vmatprep.subr.mxu0 0.0
        %3683 = vmatpush1.msra.mxu0 %v3666
        %3684 = vmatprep.subr.mxu0 0.0
        %3685 = vmatpush1.msra.mxu0 %v3667
        %3686 = vmatprep.subr.mxu0 0.0
        %3687 = vmatpush1.msra.mxu0 %v3668
        %3688 = vmatprep.subr.mxu0 0.0
        %3689 = vmatpush1.msra.mxu0 %v3669
        %3690 = vmatprep.subr.mxu0 0.0
        %3691 = vmatpush1.msra.mxu0 %v3670
        %3692 = vmatprep.subr.mxu0 0.0
        %3693 = vmatpush1.msra.mxu0 %v3671
        %3694 = vmatprep.subr.mxu0 0.0
        %3695 = vmatpush1.msra.mxu0 %v3672
        %3696 = vmatprep.subr.mxu0 0.0
        %3697 = vmatpush1.msra.mxu0 %v3673
        %3698 = vmatprep.subr.mxu0 0.0
        %3699 = vmatpush1.msra.mxu0 %v3674
        %3700 = vmatprep.subr.mxu0 0.0
        %3701 = vmatpush1.msra.mxu0 %v3675
        %3702 = vmatprep.subr.mxu0 0.0
        %3703 = vmatpush1.msra.mxu0 %v3676
        %3704 = vmatprep.subr.mxu0 0.0
        %3705 = vmatpush1.msra.mxu0 %v3677
        %3706 = vmatprep.subr.mxu0 0.0
        %3707 = vmatpush1.msra.mxu0 %v3678
        %3708 = vmatprep.subr.mxu0 0.0
        %3709 = vmatpush1.msra.mxu0 %v3679
        %3710 = vmatprep.subr.mxu0 0.0
        %3711 = vmatpush1.msra.mxu0 %v3680
        %3712 = vmatprep.subr.mxu0 0.0
        %3713 = vmatpush1.msra.mxu0 %v3681
        %3714 = vmatprep.subr.mxu0 0.0
        %3715 = vmatpush1.msra.mxu0 0.0
        %3716 = vmatprep.subr.mxu0 0.0
        %3717 = vmatpush1.msra.mxu0 0.0
        %3718 = vmatprep.subr.mxu0 0.0
        %3719 = vmatpush1.msra.mxu0 0.0
        %3720 = vmatprep.subr.mxu0 0.0
        %3721 = vmatpush1.msra.mxu0 0.0
        %3722 = vmatprep.subr.mxu0 0.0
        %3723 = vmatpush1.msra.mxu0 0.0
        %3724 = vmatprep.subr.mxu0 0.0
        %3725 = vmatpush1.msra.mxu0 0.0
        %3726 = vmatprep.subr.mxu0 0.0
        %3727 = vmatpush1.msra.mxu0 0.0
        %3728 = vmatprep.subr.mxu0 0.0
        %3729 = vmatpush1.msra.mxu0 0.0
        %3730 = vmatprep.subr.mxu0 0.0
        %3731 = vmatpush1.msra.mxu0 0.0
        %3732 = vmatprep.subr.mxu0 0.0
        %3733 = vmatpush1.msra.mxu0 0.0
        %3734 = vmatprep.subr.mxu0 0.0
        %3735 = vmatpush1.msra.mxu0 0.0
        %3736 = vmatprep.subr.mxu0 0.0
        %3737 = vmatpush1.msra.mxu0 0.0
        %3738 = vmatprep.subr.mxu0 0.0
        %3739 = vmatpush1.msra.mxu0 0.0
        %3740 = vmatprep.subr.mxu0 0.0
        %3741 = vmatpush1.msra.mxu0 0.0
        %3742 = vmatprep.subr.mxu0 0.0
        %3743 = vmatpush1.msra.mxu0 0.0
        %3744 = vmatprep.subr.mxu0 0.0
        %3745 = vmatpush1.msra.mxu0 0.0
        %3746 = vmatprep.mubr.f32.mxu0 0.0
        %3747 = vmatmul.mubr.f32.gmra.mrb[0].mxu0 %v3645
        %v3748 = vpop.f32.mrb[0].mxu0
        %v3749 = vadd.f32 0.0, %v3748
        %v3750 = vpop.f32.mrb[0].mxu0
        %3751 = vdwg.mxu0
        %3752 = vmatprep.subr.mxu0 0.0
        %3753 = vmatpush1.msra.mxu0 %v3649
        %3754 = vmatprep.subr.mxu0 0.0
        %3755 = vmatpush1.msra.mxu0 %v3650
        %3756 = vmatprep.subr.mxu0 0.0
        %3757 = vmatpush1.msra.mxu0 %v3651
        %3758 = vmatprep.subr.mxu0 0.0
        %3759 = vmatpush1.msra.mxu0 %v3652
        %3760 = vmatprep.subr.mxu0 0.0
        %3761 = vmatpush1.msra.mxu0 %v3653
        %3762 = vmatprep.subr.mxu0 0.0
        %3763 = vmatpush1.msra.mxu0 %v3654
        %3764 = vmatprep.subr.mxu0 0.0
        %3765 = vmatpush1.msra.mxu0 %v3655
        %3766 = vmatprep.subr.mxu0 0.0
        %3767 = vmatpush1.msra.mxu0 %v3656
        %3768 = vmatprep.subr.mxu0 0.0
        %3769 = vmatpush1.msra.mxu0 %v3657
        %3770 = vmatprep.subr.mxu0 0.0
        %3771 = vmatpush1.msra.mxu0 %v3658
        %3772 = vmatprep.subr.mxu0 0.0
        %3773 = vmatpush1.msra.mxu0 %v3659
        %3774 = vmatprep.subr.mxu0 0.0
        %3775 = vmatpush1.msra.mxu0 %v3660
        %3776 = vmatprep.subr.mxu0 0.0
        %3777 = vmatpush1.msra.mxu0 %v3661
        %3778 = vmatprep.subr.mxu0 0.0
        %3779 = vmatpush1.msra.mxu0 %v3662
        %3780 = vmatprep.subr.mxu0 0.0
        %3781 = vmatpush1.msra.mxu0 %v3663
        %3782 = vmatprep.subr.mxu0 0.0
        %3783 = vmatpush1.msra.mxu0 %v3664
        %3784 = vmatprep.subr.mxu0 0.0
        %3785 = vmatpush1.msra.mxu0 0.0
        %3786 = vmatprep.subr.mxu0 0.0
        %3787 = vmatpush1.msra.mxu0 0.0
        %3788 = vmatprep.subr.mxu0 0.0
        %3789 = vmatpush1.msra.mxu0 0.0
        %3790 = vmatprep.subr.mxu0 0.0
        %3791 = vmatpush1.msra.mxu0 0.0
        %3792 = vmatprep.subr.mxu0 0.0
        %3793 = vmatpush1.msra.mxu0 0.0
        %3794 = vmatprep.subr.mxu0 0.0
        %3795 = vmatpush1.msra.mxu0 0.0
        %3796 = vmatprep.subr.mxu0 0.0
        %3797 = vmatpush1.msra.mxu0 0.0
        %3798 = vmatprep.subr.mxu0 0.0
        %3799 = vmatpush1.msra.mxu0 0.0
        %3800 = vmatprep.subr.mxu0 0.0
        %3801 = vmatpush1.msra.mxu0 0.0
        %3802 = vmatprep.subr.mxu0 0.0
        %3803 = vmatpush1.msra.mxu0 0.0
        %3804 = vmatprep.subr.mxu0 0.0
        %3805 = vmatpush1.msra.mxu0 0.0
        %3806 = vmatprep.subr.mxu0 0.0
        %3807 = vmatpush1.msra.mxu0 0.0
        %3808 = vmatprep.subr.mxu0 0.0
        %3809 = vmatpush1.msra.mxu0 0.0
        %3810 = vmatprep.subr.mxu0 0.0
        %3811 = vmatpush1.msra.mxu0 0.0
        %3812 = vmatprep.subr.mxu0 0.0
        %3813 = vmatpush1.msra.mxu0 0.0
        %3814 = vmatprep.subr.mxu0 0.0
        %3815 = vmatpush1.msra.mxu0 0.0
        %3816 = vmatprep.mubr.f32.mxu0 0.0
        %3817 = vmatmul.mubr.f32.gmra.mrb[0].mxu0 %v3644
        %v3818 = vpop.f32.mrb[0].mxu0
        %v3819 = vadd.f32 %v3749, %v3818
        %v3820 = vpop.f32.mrb[0].mxu0
        %3821 = vdwg.mxu0
        %s3822 = scalar_lea.vmem %s6, 256
        %v3823 = vld [vmem:[%s3822] sm:$0xff]
        %v3824 = vld [vmem:[%s3822 + $0x8] sm:$0xff]
        %v3825 = vld [vmem:[%s3822 + $0x10] sm:$0xff]
        %v3826 = vld [vmem:[%s3822 + $0x18] sm:$0xff]
        %v3827 = vld [vmem:[%s3822 + $0x20] sm:$0xff]
        %v3828 = vld [vmem:[%s3822 + $0x28] sm:$0xff]
        %v3829 = vld [vmem:[%s3822 + $0x30] sm:$0xff]
        %v3830 = vld [vmem:[%s3822 + $0x38] sm:$0xff]
        %v3831 = vld [vmem:[%s3822 + $0x40] sm:$0xff]
        %v3832 = vld [vmem:[%s3822 + $0x48] sm:$0xff]
        %v3833 = vld [vmem:[%s3822 + $0x50] sm:$0xff]
        %v3834 = vld [vmem:[%s3822 + $0x58] sm:$0xff]
        %v3835 = vld [vmem:[%s3822 + $0x60] sm:$0xff]
        %v3836 = vld [vmem:[%s3822 + $0x68] sm:$0xff]
        %v3837 = vld [vmem:[%s3822 + $0x70] sm:$0xff]
        %v3838 = vld [vmem:[%s3822 + $0x78] sm:$0xff]
        %3839 = vmatprep.subr.mxu0 0.0
        %3840 = vmatpush1.msra.mxu0 %v3823
        %3841 = vmatprep.subr.mxu0 0.0
        %3842 = vmatpush1.msra.mxu0 %v3824
        %3843 = vmatprep.subr.mxu0 0.0
        %3844 = vmatpush1.msra.mxu0 %v3825
        %3845 = vmatprep.subr.mxu0 0.0
        %3846 = vmatpush1.msra.mxu0 %v3826
        %3847 = vmatprep.subr.mxu0 0.0
        %3848 = vmatpush1.msra.mxu0 %v3827
        %3849 = vmatprep.subr.mxu0 0.0
        %3850 = vmatpush1.msra.mxu0 %v3828
        %3851 = vmatprep.subr.mxu0 0.0
        %3852 = vmatpush1.msra.mxu0 %v3829
        %3853 = vmatprep.subr.mxu0 0.0
        %3854 = vmatpush1.msra.mxu0 %v3830
        %3855 = vmatprep.subr.mxu0 0.0
        %3856 = vmatpush1.msra.mxu0 %v3831
        %3857 = vmatprep.subr.mxu0 0.0
        %3858 = vmatpush1.msra.mxu0 %v3832
        %3859 = vmatprep.subr.mxu0 0.0
        %3860 = vmatpush1.msra.mxu0 %v3833
        %3861 = vmatprep.subr.mxu0 0.0
        %3862 = vmatpush1.msra.mxu0 %v3834
        %3863 = vmatprep.subr.mxu0 0.0
        %3864 = vmatpush1.msra.mxu0 %v3835
        %3865 = vmatprep.subr.mxu0 0.0
        %3866 = vmatpush1.msra.mxu0 %v3836
        %3867 = vmatprep.subr.mxu0 0.0
        %3868 = vmatpush1.msra.mxu0 %v3837
        %3869 = vmatprep.subr.mxu0 0.0
        %3870 = vmatpush1.msra.mxu0 %v3838
        %3871 = vmatprep.subr.mxu0 0.0
        %3872 = vmatpush1.msra.mxu0 0.0
        %3873 = vmatprep.subr.mxu0 0.0
        %3874 = vmatpush1.msra.mxu0 0.0
        %3875 = vmatprep.subr.mxu0 0.0
        %3876 = vmatpush1.msra.mxu0 0.0
        %3877 = vmatprep.subr.mxu0 0.0
        %3878 = vmatpush1.msra.mxu0 0.0
        %3879 = vmatprep.subr.mxu0 0.0
        %3880 = vmatpush1.msra.mxu0 0.0
        %3881 = vmatprep.subr.mxu0 0.0
        %3882 = vmatpush1.msra.mxu0 0.0
        %3883 = vmatprep.subr.mxu0 0.0
        %3884 = vmatpush1.msra.mxu0 0.0
        %3885 = vmatprep.subr.mxu0 0.0
        %3886 = vmatpush1.msra.mxu0 0.0
        %3887 = vmatprep.subr.mxu0 0.0
        %3888 = vmatpush1.msra.mxu0 0.0
        %3889 = vmatprep.subr.mxu0 0.0
        %3890 = vmatpush1.msra.mxu0 0.0
        %3891 = vmatprep.subr.mxu0 0.0
        %3892 = vmatpush1.msra.mxu0 0.0
        %3893 = vmatprep.subr.mxu0 0.0
        %3894 = vmatpush1.msra.mxu0 0.0
        %3895 = vmatprep.subr.mxu0 0.0
        %3896 = vmatpush1.msra.mxu0 0.0
        %3897 = vmatprep.subr.mxu0 0.0
        %3898 = vmatpush1.msra.mxu0 0.0
        %3899 = vmatprep.subr.mxu0 0.0
        %3900 = vmatpush1.msra.mxu0 0.0
        %3901 = vmatprep.subr.mxu0 0.0
        %3902 = vmatpush1.msra.mxu0 0.0
        %3903 = vmatprep.mubr.f32.mxu0 0.0
        %3904 = vmatmul.mubr.f32.gmra.mrb[0].mxu0 %v3646
        %v3905 = vpop.f32.mrb[0].mxu0
        %v3906 = vadd.f32 0.0, %v3905
        %v3907 = vpop.f32.mrb[0].mxu0
        %3908 = vdwg.mxu0
        %v3909 = vadd.f32 %v3819, %v3906
        %s3910 = scalar_lea.vmem %s6, 384
        %v3911 = vld [vmem:[%s3910] sm:$0xff]
        %v3912 = vld [vmem:[%s3910 + $0x8] sm:$0xff]
        %v3913 = vld [vmem:[%s3910 + $0x10] sm:$0xff]
        %v3914 = vld [vmem:[%s3910 + $0x18] sm:$0xff]
        %v3915 = vld [vmem:[%s3910 + $0x20] sm:$0xff]
        %v3916 = vld [vmem:[%s3910 + $0x28] sm:$0xff]
        %v3917 = vld [vmem:[%s3910 + $0x30] sm:$0xff]
        %v3918 = vld [vmem:[%s3910 + $0x38] sm:$0xff]
        %v3919 = vld [vmem:[%s3910 + $0x40] sm:$0xff]
        %v3920 = vld [vmem:[%s3910 + $0x48] sm:$0xff]
        %v3921 = vld [vmem:[%s3910 + $0x50] sm:$0xff]
        %v3922 = vld [vmem:[%s3910 + $0x58] sm:$0xff]
        %v3923 = vld [vmem:[%s3910 + $0x60] sm:$0xff]
        %v3924 = vld [vmem:[%s3910 + $0x68] sm:$0xff]
        %v3925 = vld [vmem:[%s3910 + $0x70] sm:$0xff]
        %v3926 = vld [vmem:[%s3910 + $0x78] sm:$0xff]
        %3927 = vmatprep.subr.mxu0 0.0
        %3928 = vmatpush1.msra.mxu0 %v3911
        %3929 = vmatprep.subr.mxu0 0.0
        %3930 = vmatpush1.msra.mxu0 %v3912
        %3931 = vmatprep.subr.mxu0 0.0
        %3932 = vmatpush1.msra.mxu0 %v3913
        %3933 = vmatprep.subr.mxu0 0.0
        %3934 = vmatpush1.msra.mxu0 %v3914
        %3935 = vmatprep.subr.mxu0 0.0
        %3936 = vmatpush1.msra.mxu0 %v3915
        %3937 = vmatprep.subr.mxu0 0.0
        %3938 = vmatpush1.msra.mxu0 %v3916
        %3939 = vmatprep.subr.mxu0 0.0
        %3940 = vmatpush1.msra.mxu0 %v3917
        %3941 = vmatprep.subr.mxu0 0.0
        %3942 = vmatpush1.msra.mxu0 %v3918
        %3943 = vmatprep.subr.mxu0 0.0
        %3944 = vmatpush1.msra.mxu0 %v3919
        %3945 = vmatprep.subr.mxu0 0.0
        %3946 = vmatpush1.msra.mxu0 %v3920
        %3947 = vmatprep.subr.mxu0 0.0
        %3948 = vmatpush1.msra.mxu0 %v3921
        %3949 = vmatprep.subr.mxu0 0.0
        %3950 = vmatpush1.msra.mxu0 %v3922
        %3951 = vmatprep.subr.mxu0 0.0
        %3952 = vmatpush1.msra.mxu0 %v3923
        %3953 = vmatprep.subr.mxu0 0.0
        %3954 = vmatpush1.msra.mxu0 %v3924
        %3955 = vmatprep.subr.mxu0 0.0
        %3956 = vmatpush1.msra.mxu0 %v3925
        %3957 = vmatprep.subr.mxu0 0.0
        %3958 = vmatpush1.msra.mxu0 %v3926
        %3959 = vmatprep.subr.mxu0 0.0
        %3960 = vmatpush1.msra.mxu0 0.0
        %3961 = vmatprep.subr.mxu0 0.0
        %3962 = vmatpush1.msra.mxu0 0.0
        %3963 = vmatprep.subr.mxu0 0.0
        %3964 = vmatpush1.msra.mxu0 0.0
        %3965 = vmatprep.subr.mxu0 0.0
        %3966 = vmatpush1.msra.mxu0 0.0
        %3967 = vmatprep.subr.mxu0 0.0
        %3968 = vmatpush1.msra.mxu0 0.0
        %3969 = vmatprep.subr.mxu0 0.0
        %3970 = vmatpush1.msra.mxu0 0.0
        %3971 = vmatprep.subr.mxu0 0.0
        %3972 = vmatpush1.msra.mxu0 0.0
        %3973 = vmatprep.subr.mxu0 0.0
        %3974 = vmatpush1.msra.mxu0 0.0
        %3975 = vmatprep.subr.mxu0 0.0
        %3976 = vmatpush1.msra.mxu0 0.0
        %3977 = vmatprep.subr.mxu0 0.0
        %3978 = vmatpush1.msra.mxu0 0.0
        %3979 = vmatprep.subr.mxu0 0.0
        %3980 = vmatpush1.msra.mxu0 0.0
        %3981 = vmatprep.subr.mxu0 0.0
        %3982 = vmatpush1.msra.mxu0 0.0
        %3983 = vmatprep.subr.mxu0 0.0
        %3984 = vmatpush1.msra.mxu0 0.0
        %3985 = vmatprep.subr.mxu0 0.0
        %3986 = vmatpush1.msra.mxu0 0.0
        %3987 = vmatprep.subr.mxu0 0.0
        %3988 = vmatpush1.msra.mxu0 0.0
        %3989 = vmatprep.subr.mxu0 0.0
        %3990 = vmatpush1.msra.mxu0 0.0
        %3991 = vmatprep.mubr.f32.mxu0 0.0
        %3992 = vmatmul.mubr.f32.gmra.mrb[0].mxu0 %v3647
        %v3993 = vpop.f32.mrb[0].mxu0
        %v3994 = vadd.f32 0.0, %v3993
        %v3995 = vpop.f32.mrb[0].mxu0
        %3996 = vdwg.mxu0
        %v3997 = vadd.f32 %v3909, %v3994
        %s3998 = scalar_lea.vmem %s6, 512
        %v3999 = vld [vmem:[%s3998] sm:$0xff]
        %v4000 = vld [vmem:[%s3998 + $0x8] sm:$0xff]
        %v4001 = vld [vmem:[%s3998 + $0x10] sm:$0xff]
        %v4002 = vld [vmem:[%s3998 + $0x18] sm:$0xff]
        %v4003 = vld [vmem:[%s3998 + $0x20] sm:$0xff]
        %v4004 = vld [vmem:[%s3998 + $0x28] sm:$0xff]
        %v4005 = vld [vmem:[%s3998 + $0x30] sm:$0xff]
        %v4006 = vld [vmem:[%s3998 + $0x38] sm:$0xff]
        %v4007 = vld [vmem:[%s3998 + $0x40] sm:$0xff]
        %v4008 = vld [vmem:[%s3998 + $0x48] sm:$0xff]
        %v4009 = vld [vmem:[%s3998 + $0x50] sm:$0xff]
        %v4010 = vld [vmem:[%s3998 + $0x58] sm:$0xff]
        %v4011 = vld [vmem:[%s3998 + $0x60] sm:$0xff]
        %v4012 = vld [vmem:[%s3998 + $0x68] sm:$0xff]
        %v4013 = vld [vmem:[%s3998 + $0x70] sm:$0xff]
        %v4014 = vld [vmem:[%s3998 + $0x78] sm:$0xff]
        %4015 = vmatprep.subr.mxu0 0.0
        %4016 = vmatpush1.msra.mxu0 %v3999
        %4017 = vmatprep.subr.mxu0 0.0
        %4018 = vmatpush1.msra.mxu0 %v4000
        %4019 = vmatprep.subr.mxu0 0.0
        %4020 = vmatpush1.msra.mxu0 %v4001
        %4021 = vmatprep.subr.mxu0 0.0
        %4022 = vmatpush1.msra.mxu0 %v4002
        %4023 = vmatprep.subr.mxu0 0.0
        %4024 = vmatpush1.msra.mxu0 %v4003
        %4025 = vmatprep.subr.mxu0 0.0
        %4026 = vmatpush1.msra.mxu0 %v4004
        %4027 = vmatprep.subr.mxu0 0.0
        %4028 = vmatpush1.msra.mxu0 %v4005
        %4029 = vmatprep.subr.mxu0 0.0
        %4030 = vmatpush1.msra.mxu0 %v4006
        %4031 = vmatprep.subr.mxu0 0.0
        %4032 = vmatpush1.msra.mxu0 %v4007
        %4033 = vmatprep.subr.mxu0 0.0
        %4034 = vmatpush1.msra.mxu0 %v4008
        %4035 = vmatprep.subr.mxu0 0.0
        %4036 = vmatpush1.msra.mxu0 %v4009
        %4037 = vmatprep.subr.mxu0 0.0
        %4038 = vmatpush1.msra.mxu0 %v4010
        %4039 = vmatprep.subr.mxu0 0.0
        %4040 = vmatpush1.msra.mxu0 %v4011
        %4041 = vmatprep.subr.mxu0 0.0
        %4042 = vmatpush1.msra.mxu0 %v4012
        %4043 = vmatprep.subr.mxu0 0.0
        %4044 = vmatpush1.msra.mxu0 %v4013
        %4045 = vmatprep.subr.mxu0 0.0
        %4046 = vmatpush1.msra.mxu0 %v4014
        %4047 = vmatprep.subr.mxu0 0.0
        %4048 = vmatpush1.msra.mxu0 0.0
        %4049 = vmatprep.subr.mxu0 0.0
        %4050 = vmatpush1.msra.mxu0 0.0
        %4051 = vmatprep.subr.mxu0 0.0
        %4052 = vmatpush1.msra.mxu0 0.0
        %4053 = vmatprep.subr.mxu0 0.0
        %4054 = vmatpush1.msra.mxu0 0.0
        %4055 = vmatprep.subr.mxu0 0.0
        %4056 = vmatpush1.msra.mxu0 0.0
        %4057 = vmatprep.subr.mxu0 0.0
        %4058 = vmatpush1.msra.mxu0 0.0
        %4059 = vmatprep.subr.mxu0 0.0
        %4060 = vmatpush1.msra.mxu0 0.0
        %4061 = vmatprep.subr.mxu0 0.0
        %4062 = vmatpush1.msra.mxu0 0.0
        %4063 = vmatprep.subr.mxu0 0.0
        %4064 = vmatpush1.msra.mxu0 0.0
        %4065 = vmatprep.subr.mxu0 0.0
        %4066 = vmatpush1.msra.mxu0 0.0
        %4067 = vmatprep.subr.mxu0 0.0
        %4068 = vmatpush1.msra.mxu0 0.0
        %4069 = vmatprep.subr.mxu0 0.0
        %4070 = vmatpush1.msra.mxu0 0.0
        %4071 = vmatprep.subr.mxu0 0.0
        %4072 = vmatpush1.msra.mxu0 0.0
        %4073 = vmatprep.subr.mxu0 0.0
        %4074 = vmatpush1.msra.mxu0 0.0
        %4075 = vmatprep.subr.mxu0 0.0
        %4076 = vmatpush1.msra.mxu0 0.0
        %4077 = vmatprep.subr.mxu0 0.0
        %4078 = vmatpush1.msra.mxu0 0.0
        %4079 = vmatprep.mubr.f32.mxu0 0.0
        %4080 = vmatmul.mubr.f32.gmra.mrb[0].mxu0 %v3648
        %v4081 = vpop.f32.mrb[0].mxu0
        %v4082 = vadd.f32 0.0, %v4081
        %v4083 = vpop.f32.mrb[0].mxu0
        %4084 = vdwg.mxu0
        %v4085 = vadd.f32 %v3997, %v4082
        %v4086 = vld [vmem:[%s7] sm:$0x1]
        %v4088 = vlaneseq
        %v4089 = vshrl.u32 %v4088, 7
        %v4090 = vsub.s32 0, %v4089
        %v4091 = vrot.slane %v4086, %v4090
        %v4093 = vadd.f32 %v4085, %v4091
        %v4094 = vmax.f32 %v4093, 0.0
        %v4095 = vld [vmem:[%s8] sm:$0xff]
        %v4096 = vld [vmem:[%s8 + $0x8] sm:$0xff]
        %v4097 = vld [vmem:[%s8 + $0x10] sm:$0xff]
        %v4098 = vld [vmem:[%s8 + $0x18] sm:$0xff]
        %v4099 = vld [vmem:[%s8 + $0x20] sm:$0xff]
        %v4100 = vld [vmem:[%s8 + $0x28] sm:$0xff]
        %v4101 = vld [vmem:[%s8 + $0x30] sm:$0xff]
        %v4102 = vld [vmem:[%s8 + $0x38] sm:$0xff]
        %v4103 = vld [vmem:[%s8 + $0x40] sm:$0xff]
        %v4104 = vld [vmem:[%s8 + $0x48] sm:$0xff]
        %v4105 = vld [vmem:[%s8 + $0x50] sm:$0xff]
        %v4106 = vld [vmem:[%s8 + $0x58] sm:$0xff]
        %v4107 = vld [vmem:[%s8 + $0x60] sm:$0xff]
        %v4108 = vld [vmem:[%s8 + $0x68] sm:$0xff]
        %v4109 = vld [vmem:[%s8 + $0x70] sm:$0xff]
        %v4110 = vld [vmem:[%s8 + $0x78] sm:$0xff]
        %v4111 = vld [vmem:[%s9] sm:$0x1]
        %v4113 = vlaneseq
        %v4114 = vshrl.u32 %v4113, 7
        %v4115 = vsub.s32 0, %v4114
        %v4116 = vrot.slane %v4111, %v4115
        %4118 = vmatprep.subr.mxu0 0.0
        %4119 = vmatpush1.msra.mxu0 %v4095
        %4120 = vmatprep.subr.mxu0 0.0
        %4121 = vmatpush1.msra.mxu0 %v4096
        %4122 = vmatprep.subr.mxu0 0.0
        %4123 = vmatpush1.msra.mxu0 %v4097
        %4124 = vmatprep.subr.mxu0 0.0
        %4125 = vmatpush1.msra.mxu0 %v4098
        %4126 = vmatprep.subr.mxu0 0.0
        %4127 = vmatpush1.msra.mxu0 %v4099
        %4128 = vmatprep.subr.mxu0 0.0
        %4129 = vmatpush1.msra.mxu0 %v4100
        %4130 = vmatprep.subr.mxu0 0.0
        %4131 = vmatpush1.msra.mxu0 %v4101
        %4132 = vmatprep.subr.mxu0 0.0
        %4133 = vmatpush1.msra.mxu0 %v4102
        %4134 = vmatprep.subr.mxu0 0.0
        %4135 = vmatpush1.msra.mxu0 %v4103
        %4136 = vmatprep.subr.mxu0 0.0
        %4137 = vmatpush1.msra.mxu0 %v4104
        %4138 = vmatprep.subr.mxu0 0.0
        %4139 = vmatpush1.msra.mxu0 %v4105
        %4140 = vmatprep.subr.mxu0 0.0
        %4141 = vmatpush1.msra.mxu0 %v4106
        %4142 = vmatprep.subr.mxu0 0.0
        %4143 = vmatpush1.msra.mxu0 %v4107
        %4144 = vmatprep.subr.mxu0 0.0
        %4145 = vmatpush1.msra.mxu0 %v4108
        %4146 = vmatprep.subr.mxu0 0.0
        %4147 = vmatpush1.msra.mxu0 %v4109
        %4148 = vmatprep.subr.mxu0 0.0
        %4149 = vmatpush1.msra.mxu0 %v4110
        %4150 = vmatprep.subr.mxu0 0.0
        %4151 = vmatpush1.msra.mxu0 0.0
        %4152 = vmatprep.subr.mxu0 0.0
        %4153 = vmatpush1.msra.mxu0 0.0
        %4154 = vmatprep.subr.mxu0 0.0
        %4155 = vmatpush1.msra.mxu0 0.0
        %4156 = vmatprep.subr.mxu0 0.0
        %4157 = vmatpush1.msra.mxu0 0.0
        %4158 = vmatprep.subr.mxu0 0.0
        %4159 = vmatpush1.msra.mxu0 0.0
        %4160 = vmatprep.subr.mxu0 0.0
        %4161 = vmatpush1.msra.mxu0 0.0
        %4162 = vmatprep.subr.mxu0 0.0
        %4163 = vmatpush1.msra.mxu0 0.0
        %4164 = vmatprep.subr.mxu0 0.0
        %4165 = vmatpush1.msra.mxu0 0.0
        %4166 = vmatprep.subr.mxu0 0.0
        %4167 = vmatpush1.msra.mxu0 0.0
        %4168 = vmatprep.subr.mxu0 0.0
        %4169 = vmatpush1.msra.mxu0 0.0
        %4170 = vmatprep.subr.mxu0 0.0
        %4171 = vmatpush1.msra.mxu0 0.0
        %4172 = vmatprep.subr.mxu0 0.0
        %4173 = vmatpush1.msra.mxu0 0.0
        %4174 = vmatprep.subr.mxu0 0.0
        %4175 = vmatpush1.msra.mxu0 0.0
        %4176 = vmatprep.subr.mxu0 0.0
        %4177 = vmatpush1.msra.mxu0 0.0
        %4178 = vmatprep.subr.mxu0 0.0
        %4179 = vmatpush1.msra.mxu0 0.0
        %4180 = vmatprep.subr.mxu0 0.0
        %4181 = vmatpush1.msra.mxu0 0.0
        %4182 = vmatprep.mubr.f32.mxu0 0.0
        %4183 = vmatmul.mubr.f32.gmra.mrb[0].mxu0 %v4094
        %v4184 = vpop.f32.mrb[0].mxu0
        %v4185 = vadd.f32 %v4116, %v4184
        %v4186 = vpop.f32.mrb[0].mxu0
        %4187 = vdwg.mxu0
        %v4188 = vmax.f32 %v4185, 0.0
        %v4189 = vld [vmem:[%s10] sm:$0xff]
        %v4190 = vld [vmem:[%s10 + $0x8] sm:$0xff]
        %v4191 = vld [vmem:[%s10 + $0x10] sm:$0xff]
        %v4192 = vld [vmem:[%s10 + $0x18] sm:$0xff]
        %v4193 = vld [vmem:[%s10 + $0x20] sm:$0xff]
        %v4194 = vld [vmem:[%s10 + $0x28] sm:$0xff]
        %v4195 = vld [vmem:[%s10 + $0x30] sm:$0xff]
        %v4196 = vld [vmem:[%s10 + $0x38] sm:$0xff]
        %v4197 = vld [vmem:[%s10 + $0x40] sm:$0xff]
        %v4198 = vld [vmem:[%s10 + $0x48] sm:$0xff]
        %v4199 = vld [vmem:[%s10 + $0x50] sm:$0xff]
        %v4200 = vld [vmem:[%s10 + $0x58] sm:$0xff]
        %v4201 = vld [vmem:[%s10 + $0x60] sm:$0xff]
        %v4202 = vld [vmem:[%s10 + $0x68] sm:$0xff]
        %v4203 = vld [vmem:[%s10 + $0x70] sm:$0xff]
        %v4204 = vld [vmem:[%s10 + $0x78] sm:$0xff]
        %v4205 = vld [vmem:[%s11] sm:$0x1]
        %v4207 = vlaneseq
        %v4208 = vshrl.u32 %v4207, 7
        %v4209 = vsub.s32 0, %v4208
        %v4210 = vrot.slane %v4205, %v4209
        %4212 = vmatprep.subr.mxu0 0.0
        %4213 = vmatpush1.msra.mxu0 %v4189
        %4214 = vmatprep.subr.mxu0 0.0
        %4215 = vmatpush1.msra.mxu0 %v4190
        %4216 = vmatprep.subr.mxu0 0.0
        %4217 = vmatpush1.msra.mxu0 %v4191
        %4218 = vmatprep.subr.mxu0 0.0
        %4219 = vmatpush1.msra.mxu0 %v4192
        %4220 = vmatprep.subr.mxu0 0.0
        %4221 = vmatpush1.msra.mxu0 %v4193
        %4222 = vmatprep.subr.mxu0 0.0
        %4223 = vmatpush1.msra.mxu0 %v4194
        %4224 = vmatprep.subr.mxu0 0.0
        %4225 = vmatpush1.msra.mxu0 %v4195
        %4226 = vmatprep.subr.mxu0 0.0
        %4227 = vmatpush1.msra.mxu0 %v4196
        %4228 = vmatprep.subr.mxu0 0.0
        %4229 = vmatpush1.msra.mxu0 %v4197
        %4230 = vmatprep.subr.mxu0 0.0
        %4231 = vmatpush1.msra.mxu0 %v4198
        %4232 = vmatprep.subr.mxu0 0.0
        %4233 = vmatpush1.msra.mxu0 %v4199
        %4234 = vmatprep.subr.mxu0 0.0
        %4235 = vmatpush1.msra.mxu0 %v4200
        %4236 = vmatprep.subr.mxu0 0.0
        %4237 = vmatpush1.msra.mxu0 %v4201
        %4238 = vmatprep.subr.mxu0 0.0
        %4239 = vmatpush1.msra.mxu0 %v4202
        %4240 = vmatprep.subr.mxu0 0.0
        %4241 = vmatpush1.msra.mxu0 %v4203
        %4242 = vmatprep.subr.mxu0 0.0
        %4243 = vmatpush1.msra.mxu0 %v4204
        %4244 = vmatprep.subr.mxu0 0.0
        %4245 = vmatpush1.msra.mxu0 0.0
        %4246 = vmatprep.subr.mxu0 0.0
        %4247 = vmatpush1.msra.mxu0 0.0
        %4248 = vmatprep.subr.mxu0 0.0
        %4249 = vmatpush1.msra.mxu0 0.0
        %4250 = vmatprep.subr.mxu0 0.0
        %4251 = vmatpush1.msra.mxu0 0.0
        %4252 = vmatprep.subr.mxu0 0.0
        %4253 = vmatpush1.msra.mxu0 0.0
        %4254 = vmatprep.subr.mxu0 0.0
        %4255 = vmatpush1.msra.mxu0 0.0
        %4256 = vmatprep.subr.mxu0 0.0
        %4257 = vmatpush1.msra.mxu0 0.0
        %4258 = vmatprep.subr.mxu0 0.0
        %4259 = vmatpush1.msra.mxu0 0.0
        %4260 = vmatprep.subr.mxu0 0.0
        %4261 = vmatpush1.msra.mxu0 0.0
        %4262 = vmatprep.subr.mxu0 0.0
        %4263 = vmatpush1.msra.mxu0 0.0
        %4264 = vmatprep.subr.mxu0 0.0
        %4265 = vmatpush1.msra.mxu0 0.0
        %4266 = vmatprep.subr.mxu0 0.0
        %4267 = vmatpush1.msra.mxu0 0.0
        %4268 = vmatprep.subr.mxu0 0.0
        %4269 = vmatpush1.msra.mxu0 0.0
        %4270 = vmatprep.subr.mxu0 0.0
        %4271 = vmatpush1.msra.mxu0 0.0
        %4272 = vmatprep.subr.mxu0 0.0
        %4273 = vmatpush1.msra.mxu0 0.0
        %4274 = vmatprep.subr.mxu0 0.0
        %4275 = vmatpush1.msra.mxu0 0.0
        %4276 = vmatprep.mubr.f32.mxu0 0.0
        %4277 = vmatmul.mubr.f32.gmra.mrb[0].mxu0 %v4188
        %v4278 = vpop.f32.mrb[0].mxu0
        %v4279 = vadd.f32 %v4210, %v4278
        %v4280 = vpop.f32.mrb[0].mxu0
        %4281 = vdwg.mxu0
        %4282 = vst [vmem:[%s762] sm:$0xf] %v4279
        %s4283 = sand.u32 %s291, 1
        %s4284 = scalar_lea.sflag [#allocation5], %s4283
        %s4285 = sand.u32 %s291, 1
        %s4286 = smul.addr %s4285, 4
        %s4287 = scalar_lea.vmem [#allocation4], %s4286
        // Predicated region
        $region107: #{lenet_forward.1} parent=101 // pred_check
          %p4288 = pneg %p301
        $region108: #{lenet_forward.1} parent=101 // pred_check_branch
          %4290 = sbr.rel (%p4288) target = $region110
        $region109: #{lenet_forward.1} parent=101 // pred_region
          %s4292 = ssub.s32 64, 64
          %4293 = vsyncadd %s4284, %s4292
          %s4294 = smul.addr %s26, 64
          %s4295 = scalar_lea.hbm %s12, %s4294
          %s4297 = sshll.u32 %s4287, 4
          %s4298 = int_to_ptr.vmem [resolvable:$true] %s4297
          %4300 = dma.vmem_to_hbm [thread:$0]  %s4298, 64, %s4295, %s4284
        $region110: #{lenet_forward.1} parent=101 // pred_fallthru
          _
      $region102: #{lenet_forward.1} parent=5 // pred_fallthru
        _
      %p4301 = scmp.le.s32.totalorder 2, %s21
      // Predicated region
      $region111: #{lenet_forward.1} parent=5 // pred_check
        %p4302 = pneg %p4301
      $region112: #{lenet_forward.1} parent=5 // pred_check_branch
        %4304 = sbr.rel (%p4302) target = $region114
      $region113: #{lenet_forward.1} parent=5 // pred_region
        %s4305 = ssub.s32 %s21, 2
        // Predicated region
        $region115: #{lenet_forward.1} parent=113 // pred_check
          %p4306 = pneg %p307
        $region116: #{lenet_forward.1} parent=113 // pred_check_branch
          %4308 = sbr.rel (%p4306) target = $region118
        $region117: #{lenet_forward.1} parent=113 // pred_region
          %s4309 = sand.u32 %s292, 1
          %s4310 = scalar_lea.sflag [#allocation5], %s4309
          %s4311 = sand.u32 %s292, 1
          %s4312 = smul.addr %s4311, 4
          %s4313 = scalar_lea.vmem [#allocation4], %s4312
          %4314 = dma.done %s4310, 64
        $region118: #{lenet_forward.1} parent=113 // pred_fallthru
          _
      $region114: #{lenet_forward.1} parent=5 // pred_fallthru
        _
    $region6: #{lenet_forward.1} parent=1 // loop_footer
      %s25 = sadd.s32 1, %s21
    $region7: #{lenet_forward.1} parent=1 // loop_footer_branch
      %20 = sbr.rel target = $region3
    $region8: #{lenet_forward.1} parent=1 // loop_exit
      _
    %4315 = vsyncpa [#allocation5], 1
    %s4316 = scalar_lea.sflag [#allocation5], 1
    %4317 = vsyncpa %s4316, 1

</llo_original>
